<compile_context>
chip_gen: v6e
topology: v6e:2x2x1
jax: 0.10.0
libtpu: 0.0.40
codegen_flags: <defaults>
</compile_context>

<pallas_src>
import random

import jax
import jax.numpy as jnp
from jax import lax
from jax.experimental import pallas as pl
from jax.experimental.pallas import tpu as pltpu

# ----------------------------- model sizes -----------------------------
B = 2          # batch
SRC_T = 8      # source sequence length
TRG_T = 8      # target sequence length
E = 32         # embedding dim
H = 32         # hidden dim
SRC_V = 16     # source vocab size
TRG_V = 16     # target vocab size (len(vocab) in the reference)


def _lstm_cell(x, h, c, w_ih, w_hh, b):
    """Fused LSTM cell: one (B,E)@(E,4H) + one (B,H)@(H,4H) MXU push.

    Gate order along the 4H axis matches PyTorch: i, f, g, o.
    """
    gates = (jnp.dot(x, w_ih, preferred_element_type=jnp.float32)
             + jnp.dot(h, w_hh, preferred_element_type=jnp.float32)
             + b)                                           # (B, 4H), 128 lanes
    i = jax.nn.sigmoid(gates[:, 0 * H:1 * H])
    f = jax.nn.sigmoid(gates[:, 1 * H:2 * H])
    g = jnp.tanh(gates[:, 2 * H:3 * H])
    o = jax.nn.sigmoid(gates[:, 3 * H:4 * H])
    c_new = f * c + i * g
    h_new = o * jnp.tanh(c_new)
    return h_new, c_new


# ------------------------- fused seq2seq kernel -------------------------
def seq2seq_kernel(src_ref, tgt_oh_ref, tf_ref,
                   enc_wih_ref, enc_whh_ref, enc_b_ref,
                   dec_emb_ref, dec_wih_ref, dec_whh_ref, dec_b_ref,
                   fc_w_ref, fc_b_ref,
                   out_ref, h_sc, c_sc):
    # -------- init recurrent state (resident in VMEM scratch) --------
    h_sc[...] = jnp.zeros_like(h_sc)
    c_sc[...] = jnp.zeros_like(c_sc)

    # Hoist loop-invariant weight loads out of the unrolled step loops.
    enc_wih = enc_wih_ref[...]
    enc_whh = enc_whh_ref[...]
    enc_b = enc_b_ref[...]

    # ------------------------- encoder recurrence -------------------------
    def enc_step(t, carry):
        x = src_ref[t]                                      # (B, E)
        h_new, c_new = _lstm_cell(x, h_sc[...], c_sc[...], enc_wih, enc_whh, enc_b)
        h_sc[...] = h_new
        c_sc[...] = c_new
        return carry

    lax.fori_loop(0, SRC_T, enc_step, 0, unroll=True)

    # ------------------------------ decoder ------------------------------
    out_ref[0] = jnp.zeros((B, TRG_V), jnp.float32)         # outputs[0] == 0

    dec_emb = dec_emb_ref[...]
    dec_wih = dec_wih_ref[...]
    dec_whh = dec_whh_ref[...]
    dec_b = dec_b_ref[...]
    fc_w = fc_w_ref[...]
    fc_b = fc_b_ref[...]
    ids = lax.broadcasted_iota(jnp.int32, (B, TRG_V), 1)    # hoisted broadcast

    def dec_step(t, inp_oh):
        # In-kernel embedding gather: one-hot (B,V) @ (V,E).
        x = jnp.dot(inp_oh, dec_emb, preferred_element_type=jnp.float32)
        h_new, c_new = _lstm_cell(x, h_sc[...], c_sc[...], dec_wih, dec_whh, dec_b)
        h_sc[...] = h_new
        c_sc[...] = c_new

        logits = jnp.dot(h_new, fc_w, preferred_element_type=jnp.float32) + fc_b
        out_ref[t] = logits                                 # (B, V)

        # argmax (first occurrence) as a one-hot, for the next input token.
        mx = jnp.max(logits, axis=1, keepdims=True)
        first_idx = jnp.min(jnp.where(logits == mx, ids, TRG_V),
                            axis=1, keepdims=True)          # (B, 1)
        pred_oh = (ids == first_idx).astype(jnp.float32)    # (B, V)

        # Teacher-forcing select (per-step scalar mask, precomputed host-side).
        tf = tf_ref[t]                                      # (1, 1) -> broadcasts
        return tf * tgt_oh_ref[t] + (1.0 - tf) * pred_oh

    # input = target[0] (one-hot), then decode steps t = 1 .. TRG_T-1.
    lax.fori_loop(1, TRG_T, dec_step, tgt_oh_ref[0], unroll=True)


def run_seq2seq(src_emb, tgt_onehot, tf_mask, params):
    n_in = 12
    return pl.pallas_call(
        seq2seq_kernel,
        out_shape=jax.ShapeDtypeStruct((TRG_T, B, TRG_V), jnp.float32),
        in_specs=[pl.BlockSpec(memory_space=pltpu.MemorySpace.VMEM)] * n_in,
        out_specs=pl.BlockSpec(memory_space=pltpu.MemorySpace.VMEM),
        scratch_shapes=[pltpu.VMEM((B, H), jnp.float32),    # hidden
                        pltpu.VMEM((B, H), jnp.float32)],   # cell
    )(src_emb, tgt_onehot, tf_mask,
      params["enc_w_ih"], params["enc_w_hh"], params["enc_b"],
      params["dec_emb"], params["dec_w_ih"], params["dec_w_hh"], params["dec_b"],
      params["fc_w"], params["fc_b"])


# ----------------------------- parameters -----------------------------
def init_params(key):
    ks = jax.random.split(key, 8)
    scale = 0.1
    return dict(
        enc_emb=jax.random.normal(ks[0], (SRC_V, E), jnp.float32) * scale,
        # Fused, pre-transposed LSTM weights: (in_dim, 4H), gate order i,f,g,o.
        enc_w_ih=jax.random.normal(ks[1], (E, 4 * H), jnp.float32) * scale,
        enc_w_hh=jax.random.normal(ks[2], (H, 4 * H), jnp.float32) * scale,
        enc_b=jax.random.normal(ks[3], (1, 4 * H), jnp.float32) * scale,
        dec_emb=jax.random.normal(ks[4], (TRG_V, E), jnp.float32) * scale,
        dec_w_ih=jax.random.normal(ks[5], (E, 4 * H), jnp.float32) * scale,
        dec_w_hh=jax.random.normal(ks[6], (H, 4 * H), jnp.float32) * scale,
        dec_b=jnp.zeros((1, 4 * H), jnp.float32),
        # Pre-transposed vocab projection: (H, V).
        fc_w=jax.random.normal(ks[7], (H, TRG_V), jnp.float32) * scale,
        fc_b=jnp.zeros((1, TRG_V), jnp.float32),
    )


# ----------------------------- Seq2Seq forward -----------------------------
def seq2seq_forward(params, source, target, teacher_forcing_ratio=0.5):
    """source: (SRC_T, B) int32, target: (TRG_T, B) int32
       -> outputs (TRG_T, B, TRG_V) fp32 with outputs[0] == 0."""
    target_len = target.shape[0]

    # Host-side glue: static-index embedding lookup + target one-hot.
    src_emb = jnp.take(params["enc_emb"], source, axis=0)           # (T, B, E)
    tgt_onehot = jax.nn.one_hot(target, TRG_V, dtype=jnp.float32)   # (T, B, V)

    # Host-side teacher-forcing schedule (mirrors `random.random()` in torch),
    # passed as a per-step float mask so the kernel stays data-independent.
    rng = random.Random(0)
    tf = [0.0]                                                      # step 0 unused
    for _ in range(1, target_len):
        tf.append(1.0 if rng.random() < teacher_forcing_ratio else 0.0)
    tf_mask = jnp.asarray(tf, jnp.float32).reshape(target_len, 1, 1)

    return run_seq2seq(src_emb, tgt_onehot, tf_mask, params)        # (T, B, V)


if __name__ == "__main__":
    key = jax.random.PRNGKey(0)
    pkey, skey, tkey = jax.random.split(key, 3)

    params = init_params(pkey)
    source = jax.random.randint(skey, (SRC_T, B), 0, SRC_V, dtype=jnp.int32)
    target = jax.random.randint(tkey, (TRG_T, B), 0, TRG_V, dtype=jnp.int32)

    outputs = seq2seq_forward(params, source, target, teacher_forcing_ratio=0.5)
    outputs = jax.block_until_ready(outputs)

    assert outputs.shape == (TRG_T, B, TRG_V)
    assert outputs.dtype == jnp.float32
    assert bool(jnp.all(outputs[0] == 0.0))
    assert bool(jnp.all(jnp.isfinite(outputs)))
    print("KERNEL_OK")
</pallas_src>

<mosaic_0001>
module attributes {stable_mosaic.version = 11 : i64} {
  func.func @seq2seq_kernel(%arg0: memref<8x2x32xf32, #tpu.memory_space<vmem>>, %arg1: memref<8x2x16xf32, #tpu.memory_space<vmem>>, %arg2: memref<8x1x1xf32, #tpu.memory_space<vmem>>, %arg3: memref<32x128xf32, #tpu.memory_space<vmem>>, %arg4: memref<32x128xf32, #tpu.memory_space<vmem>>, %arg5: memref<1x128xf32, #tpu.memory_space<vmem>>, %arg6: memref<16x32xf32, #tpu.memory_space<vmem>>, %arg7: memref<32x128xf32, #tpu.memory_space<vmem>>, %arg8: memref<32x128xf32, #tpu.memory_space<vmem>>, %arg9: memref<1x128xf32, #tpu.memory_space<vmem>>, %arg10: memref<32x16xf32, #tpu.memory_space<vmem>>, %arg11: memref<1x16xf32, #tpu.memory_space<vmem>>, %arg12: memref<8x2x16xf32, #tpu.memory_space<vmem>>, %arg13: memref<2x32xf32, #tpu.memory_space<vmem>>, %arg14: memref<2x32xf32, #tpu.memory_space<vmem>>) attributes {dimension_semantics = [], scalar_prefetch = 0 : i64, scratch_operands = 2 : i64, tpu.core_type = #tpu.core_type<tc>} {
    %cst = arith.constant 0.000000e+00 : f32
    %0 = vector.broadcast %cst : f32 to vector<2x32xf32>
    %c0 = arith.constant 0 : index
    %c0_0 = arith.constant 0 : index
    %1 = vector.load %arg13[%c0, %c0_0] : memref<2x32xf32, #tpu.memory_space<vmem>>, vector<2x32xf32>
    tpu.vector_store %arg13[%c0, %c0_0], %0 {strides = array<i32>} : memref<2x32xf32, #tpu.memory_space<vmem>>, vector<2x32xf32>,
    %cst_1 = arith.constant 0.000000e+00 : f32
    %2 = vector.broadcast %cst_1 : f32 to vector<2x32xf32>
    %c0_2 = arith.constant 0 : index
    %c0_3 = arith.constant 0 : index
    %3 = vector.load %arg14[%c0_2, %c0_3] : memref<2x32xf32, #tpu.memory_space<vmem>>, vector<2x32xf32>
    tpu.vector_store %arg14[%c0_2, %c0_3], %2 {strides = array<i32>} : memref<2x32xf32, #tpu.memory_space<vmem>>, vector<2x32xf32>,
    %c0_4 = arith.constant 0 : index
    %c0_5 = arith.constant 0 : index
    %4 = vector.load %arg3[%c0_4, %c0_5] : memref<32x128xf32, #tpu.memory_space<vmem>>, vector<32x128xf32>
    %c0_6 = arith.constant 0 : index
    %c0_7 = arith.constant 0 : index
    %5 = vector.load %arg4[%c0_6, %c0_7] : memref<32x128xf32, #tpu.memory_space<vmem>>, vector<32x128xf32>
    %c0_8 = arith.constant 0 : index
    %c0_9 = arith.constant 0 : index
    %6 = vector.load %arg5[%c0_8, %c0_9] : memref<1x128xf32, #tpu.memory_space<vmem>>, vector<1x128xf32>
    %c0_i32 = arith.constant 0 : i32
    %7 = arith.index_cast %c0_i32 : i32 to index
    %c0_10 = arith.constant 0 : index
    %c0_11 = arith.constant 0 : index
    %8 = vector.load %arg0[%7, %c0_10, %c0_11] : memref<8x2x32xf32, #tpu.memory_space<vmem>>, vector<1x2x32xf32>
    %9 = vector.shape_cast %8 : vector<1x2x32xf32> to vector<2x32xf32>
    %c0_12 = arith.constant 0 : index
    %c0_13 = arith.constant 0 : index
    %10 = vector.load %arg13[%c0_12, %c0_13] : memref<2x32xf32, #tpu.memory_space<vmem>>, vector<2x32xf32>
    %c0_14 = arith.constant 0 : index
    %c0_15 = arith.constant 0 : index
    %11 = vector.load %arg14[%c0_14, %c0_15] : memref<2x32xf32, #tpu.memory_space<vmem>>, vector<2x32xf32>
    %cst_16 = arith.constant dense<0.000000e+00> : vector<2x128xf32>
    %12 = tpu.matmul %9, %4, %cst_16 {dimension_numbers = #tpu.dot_dimension_numbers<[1], [0], [0], [1], [0, 0, 1, 1], [], []>} : vector<2x32xf32>, vector<32x128xf32>, vector<2x128xf32> -> vector<2x128xf32>
    %cst_17 = arith.constant dense<0.000000e+00> : vector<2x128xf32>
    %13 = tpu.matmul %10, %5, %cst_17 {dimension_numbers = #tpu.dot_dimension_numbers<[1], [0], [0], [1], [0, 0, 1, 1], [], []>} : vector<2x32xf32>, vector<32x128xf32>, vector<2x128xf32> -> vector<2x128xf32>
    %14 = arith.addf %12, %13 : vector<2x128xf32>
    %15 = vector.broadcast %6 : vector<1x128xf32> to vector<2x128xf32>
    %16 = arith.addf %14, %15 : vector<2x128xf32>
    %17 = vector.extract_strided_slice %16 {offsets = [0, 0], sizes = [2, 32], strides = [1, 1]} : vector<2x128xf32> to vector<2x32xf32>
    %18 = arith.negf %17 : vector<2x32xf32>
    %19 = math.exp %18 : vector<2x32xf32>
    %cst_18 = arith.constant 1.000000e+00 : f32
    %20 = vector.broadcast %cst_18 : f32 to vector<2x32xf32>
    %21 = arith.addf %20, %19 : vector<2x32xf32>
    %22 = arith.divf %20, %21 : vector<2x32xf32>
    %23 = vector.extract_strided_slice %16 {offsets = [0, 32], sizes = [2, 32], strides = [1, 1]} : vector<2x128xf32> to vector<2x32xf32>
    %24 = arith.negf %23 : vector<2x32xf32>
    %25 = math.exp %24 : vector<2x32xf32>
    %cst_19 = arith.constant 1.000000e+00 : f32
    %26 = vector.broadcast %cst_19 : f32 to vector<2x32xf32>
    %27 = arith.addf %26, %25 : vector<2x32xf32>
    %28 = arith.divf %26, %27 : vector<2x32xf32>
    %29 = vector.extract_strided_slice %16 {offsets = [0, 64], sizes = [2, 32], strides = [1, 1]} : vector<2x128xf32> to vector<2x32xf32>
    %30 = math.tanh %29 : vector<2x32xf32>
    %31 = vector.extract_strided_slice %16 {offsets = [0, 96], sizes = [2, 32], strides = [1, 1]} : vector<2x128xf32> to vector<2x32xf32>
    %32 = arith.negf %31 : vector<2x32xf32>
    %33 = math.exp %32 : vector<2x32xf32>
    %cst_20 = arith.constant 1.000000e+00 : f32
    %34 = vector.broadcast %cst_20 : f32 to vector<2x32xf32>
    %35 = arith.addf %34, %33 : vector<2x32xf32>
    %36 = arith.divf %34, %35 : vector<2x32xf32>
    %37 = arith.mulf %28, %11 : vector<2x32xf32>
    %38 = arith.mulf %22, %30 : vector<2x32xf32>
    %39 = arith.addf %37, %38 : vector<2x32xf32>
    %40 = math.tanh %39 : vector<2x32xf32>
    %41 = arith.mulf %36, %40 : vector<2x32xf32>
    %c0_21 = arith.constant 0 : index
    %c0_22 = arith.constant 0 : index
    %42 = vector.load %arg13[%c0_21, %c0_22] : memref<2x32xf32, #tpu.memory_space<vmem>>, vector<2x32xf32>
    tpu.vector_store %arg13[%c0_21, %c0_22], %41 {strides = array<i32>} : memref<2x32xf32, #tpu.memory_space<vmem>>, vector<2x32xf32>,
    %c0_23 = arith.constant 0 : index
    %c0_24 = arith.constant 0 : index
    %43 = vector.load %arg14[%c0_23, %c0_24] : memref<2x32xf32, #tpu.memory_space<vmem>>, vector<2x32xf32>
    tpu.vector_store %arg14[%c0_23, %c0_24], %39 {strides = array<i32>} : memref<2x32xf32, #tpu.memory_space<vmem>>, vector<2x32xf32>,
    %c1_i32 = arith.constant 1 : i32
    %44 = arith.index_cast %c1_i32 : i32 to index
    %c0_25 = arith.constant 0 : index
    %c0_26 = arith.constant 0 : index
    %45 = vector.load %arg0[%44, %c0_25, %c0_26] : memref<8x2x32xf32, #tpu.memory_space<vmem>>, vector<1x2x32xf32>
    %46 = vector.shape_cast %45 : vector<1x2x32xf32> to vector<2x32xf32>
    %c0_27 = arith.constant 0 : index
    %c0_28 = arith.constant 0 : index
    %47 = vector.load %arg13[%c0_27, %c0_28] : memref<2x32xf32, #tpu.memory_space<vmem>>, vector<2x32xf32>
    %c0_29 = arith.constant 0 : index
    %c0_30 = arith.constant 0 : index
    %48 = vector.load %arg14[%c0_29, %c0_30] : memref<2x32xf32, #tpu.memory_space<vmem>>, vector<2x32xf32>
    %cst_31 = arith.constant dense<0.000000e+00> : vector<2x128xf32>
    %49 = tpu.matmul %46, %4, %cst_31 {dimension_numbers = #tpu.dot_dimension_numbers<[1], [0], [0], [1], [0, 0, 1, 1], [], []>} : vector<2x32xf32>, vector<32x128xf32>, vector<2x128xf32> -> vector<2x128xf32>
    %cst_32 = arith.constant dense<0.000000e+00> : vector<2x128xf32>
    %50 = tpu.matmul %47, %5, %cst_32 {dimension_numbers = #tpu.dot_dimension_numbers<[1], [0], [0], [1], [0, 0, 1, 1], [], []>} : vector<2x32xf32>, vector<32x128xf32>, vector<2x128xf32> -> vector<2x128xf32>
    %51 = arith.addf %49, %50 : vector<2x128xf32>
    %52 = vector.broadcast %6 : vector<1x128xf32> to vector<2x128xf32>
    %53 = arith.addf %51, %52 : vector<2x128xf32>
    %54 = vector.extract_strided_slice %53 {offsets = [0, 0], sizes = [2, 32], strides = [1, 1]} : vector<2x128xf32> to vector<2x32xf32>
    %55 = arith.negf %54 : vector<2x32xf32>
    %56 = math.exp %55 : vector<2x32xf32>
    %cst_33 = arith.constant 1.000000e+00 : f32
    %57 = vector.broadcast %cst_33 : f32 to vector<2x32xf32>
    %58 = arith.addf %57, %56 : vector<2x32xf32>
    %59 = arith.divf %57, %58 : vector<2x32xf32>
    %60 = vector.extract_strided_slice %53 {offsets = [0, 32], sizes = [2, 32], strides = [1, 1]} : vector<2x128xf32> to vector<2x32xf32>
    %61 = arith.negf %60 : vector<2x32xf32>
    %62 = math.exp %61 : vector<2x32xf32>
    %cst_34 = arith.constant 1.000000e+00 : f32
    %63 = vector.broadcast %cst_34 : f32 to vector<2x32xf32>
    %64 = arith.addf %63, %62 : vector<2x32xf32>
    %65 = arith.divf %63, %64 : vector<2x32xf32>
    %66 = vector.extract_strided_slice %53 {offsets = [0, 64], sizes = [2, 32], strides = [1, 1]} : vector<2x128xf32> to vector<2x32xf32>
    %67 = math.tanh %66 : vector<2x32xf32>
    %68 = vector.extract_strided_slice %53 {offsets = [0, 96], sizes = [2, 32], strides = [1, 1]} : vector<2x128xf32> to vector<2x32xf32>
    %69 = arith.negf %68 : vector<2x32xf32>
    %70 = math.exp %69 : vector<2x32xf32>
    %cst_35 = arith.constant 1.000000e+00 : f32
    %71 = vector.broadcast %cst_35 : f32 to vector<2x32xf32>
    %72 = arith.addf %71, %70 : vector<2x32xf32>
    %73 = arith.divf %71, %72 : vector<2x32xf32>
    %74 = arith.mulf %65, %48 : vector<2x32xf32>
    %75 = arith.mulf %59, %67 : vector<2x32xf32>
    %76 = arith.addf %74, %75 : vector<2x32xf32>
    %77 = math.tanh %76 : vector<2x32xf32>
    %78 = arith.mulf %73, %77 : vector<2x32xf32>
    %c0_36 = arith.constant 0 : index
    %c0_37 = arith.constant 0 : index
    %79 = vector.load %arg13[%c0_36, %c0_37] : memref<2x32xf32, #tpu.memory_space<vmem>>, vector<2x32xf32>
    tpu.vector_store %arg13[%c0_36, %c0_37], %78 {strides = array<i32>} : memref<2x32xf32, #tpu.memory_space<vmem>>, vector<2x32xf32>,
    %c0_38 = arith.constant 0 : index
    %c0_39 = arith.constant 0 : index
    %80 = vector.load %arg14[%c0_38, %c0_39] : memref<2x32xf32, #tpu.memory_space<vmem>>, vector<2x32xf32>
    tpu.vector_store %arg14[%c0_38, %c0_39], %76 {strides = array<i32>} : memref<2x32xf32, #tpu.memory_space<vmem>>, vector<2x32xf32>,
    %c2_i32 = arith.constant 2 : i32
    %81 = arith.index_cast %c2_i32 : i32 to index
    %c0_40 = arith.constant 0 : index
    %c0_41 = arith.constant 0 : index
    %82 = vector.load %arg0[%81, %c0_40, %c0_41] : memref<8x2x32xf32, #tpu.memory_space<vmem>>, vector<1x2x32xf32>
    %83 = vector.shape_cast %82 : vector<1x2x32xf32> to vector<2x32xf32>
    %c0_42 = arith.constant 0 : index
    %c0_43 = arith.constant 0 : index
    %84 = vector.load %arg13[%c0_42, %c0_43] : memref<2x32xf32, #tpu.memory_space<vmem>>, vector<2x32xf32>
    %c0_44 = arith.constant 0 : index
    %c0_45 = arith.constant 0 : index
    %85 = vector.load %arg14[%c0_44, %c0_45] : memref<2x32xf32, #tpu.memory_space<vmem>>, vector<2x32xf32>
    %cst_46 = arith.constant dense<0.000000e+00> : vector<2x128xf32>
    %86 = tpu.matmul %83, %4, %cst_46 {dimension_numbers = #tpu.dot_dimension_numbers<[1], [0], [0], [1], [0, 0, 1, 1], [], []>} : vector<2x32xf32>, vector<32x128xf32>, vector<2x128xf32> -> vector<2x128xf32>
    %cst_47 = arith.constant dense<0.000000e+00> : vector<2x128xf32>
    %87 = tpu.matmul %84, %5, %cst_47 {dimension_numbers = #tpu.dot_dimension_numbers<[1], [0], [0], [1], [0, 0, 1, 1], [], []>} : vector<2x32xf32>, vector<32x128xf32>, vector<2x128xf32> -> vector<2x128xf32>
    %88 = arith.addf %86, %87 : vector<2x128xf32>
    %89 = vector.broadcast %6 : vector<1x128xf32> to vector<2x128xf32>
    %90 = arith.addf %88, %89 : vector<2x128xf32>
    %91 = vector.extract_strided_slice %90 {offsets = [0, 0], sizes = [2, 32], strides = [1, 1]} : vector<2x128xf32> to vector<2x32xf32>
    %92 = arith.negf %91 : vector<2x32xf32>
    %93 = math.exp %92 : vector<2x32xf32>
    %cst_48 = arith.constant 1.000000e+00 : f32
    %94 = vector.broadcast %cst_48 : f32 to vector<2x32xf32>
    %95 = arith.addf %94, %93 : vector<2x32xf32>
    %96 = arith.divf %94, %95 : vector<2x32xf32>
    %97 = vector.extract_strided_slice %90 {offsets = [0, 32], sizes = [2, 32], strides = [1, 1]} : vector<2x128xf32> to vector<2x32xf32>
    %98 = arith.negf %97 : vector<2x32xf32>
    %99 = math.exp %98 : vector<2x32xf32>
    %cst_49 = arith.constant 1.000000e+00 : f32
    %100 = vector.broadcast %cst_49 : f32 to vector<2x32xf32>
    %101 = arith.addf %100, %99 : vector<2x32xf32>
    %102 = arith.divf %100, %101 : vector<2x32xf32>
    %103 = vector.extract_strided_slice %90 {offsets = [0, 64], sizes = [2, 32], strides = [1, 1]} : vector<2x128xf32> to vector<2x32xf32>
    %104 = math.tanh %103 : vector<2x32xf32>
    %105 = vector.extract_strided_slice %90 {offsets = [0, 96], sizes = [2, 32], strides = [1, 1]} : vector<2x128xf32> to vector<2x32xf32>
    %106 = arith.negf %105 : vector<2x32xf32>
    %107 = math.exp %106 : vector<2x32xf32>
    %cst_50 = arith.constant 1.000000e+00 : f32
    %108 = vector.broadcast %cst_50 : f32 to vector<2x32xf32>
    %109 = arith.addf %108, %107 : vector<2x32xf32>
    %110 = arith.divf %108, %109 : vector<2x32xf32>
    %111 = arith.mulf %102, %85 : vector<2x32xf32>
    %112 = arith.mulf %96, %104 : vector<2x32xf32>
    %113 = arith.addf %111, %112 : vector<2x32xf32>
    %114 = math.tanh %113 : vector<2x32xf32>
    %115 = arith.mulf %110, %114 : vector<2x32xf32>
    %c0_51 = arith.constant 0 : index
    %c0_52 = arith.constant 0 : index
    %116 = vector.load %arg13[%c0_51, %c0_52] : memref<2x32xf32, #tpu.memory_space<vmem>>, vector<2x32xf32>
    tpu.vector_store %arg13[%c0_51, %c0_52], %115 {strides = array<i32>} : memref<2x32xf32, #tpu.memory_space<vmem>>, vector<2x32xf32>,
    %c0_53 = arith.constant 0 : index
    %c0_54 = arith.constant 0 : index
    %117 = vector.load %arg14[%c0_53, %c0_54] : memref<2x32xf32, #tpu.memory_space<vmem>>, vector<2x32xf32>
    tpu.vector_store %arg14[%c0_53, %c0_54], %113 {strides = array<i32>} : memref<2x32xf32, #tpu.memory_space<vmem>>, vector<2x32xf32>,
    %c3_i32 = arith.constant 3 : i32
    %118 = arith.index_cast %c3_i32 : i32 to index
    %c0_55 = arith.constant 0 : index
    %c0_56 = arith.constant 0 : index
    %119 = vector.load %arg0[%118, %c0_55, %c0_56] : memref<8x2x32xf32, #tpu.memory_space<vmem>>, vector<1x2x32xf32>
    %120 = vector.shape_cast %119 : vector<1x2x32xf32> to vector<2x32xf32>
    %c0_57 = arith.constant 0 : index
    %c0_58 = arith.constant 0 : index
    %121 = vector.load %arg13[%c0_57, %c0_58] : memref<2x32xf32, #tpu.memory_space<vmem>>, vector<2x32xf32>
    %c0_59 = arith.constant 0 : index
    %c0_60 = arith.constant 0 : index
    %122 = vector.load %arg14[%c0_59, %c0_60] : memref<2x32xf32, #tpu.memory_space<vmem>>, vector<2x32xf32>
    %cst_61 = arith.constant dense<0.000000e+00> : vector<2x128xf32>
    %123 = tpu.matmul %120, %4, %cst_61 {dimension_numbers = #tpu.dot_dimension_numbers<[1], [0], [0], [1], [0, 0, 1, 1], [], []>} : vector<2x32xf32>, vector<32x128xf32>, vector<2x128xf32> -> vector<2x128xf32>
    %cst_62 = arith.constant dense<0.000000e+00> : vector<2x128xf32>
    %124 = tpu.matmul %121, %5, %cst_62 {dimension_numbers = #tpu.dot_dimension_numbers<[1], [0], [0], [1], [0, 0, 1, 1], [], []>} : vector<2x32xf32>, vector<32x128xf32>, vector<2x128xf32> -> vector<2x128xf32>
    %125 = arith.addf %123, %124 : vector<2x128xf32>
    %126 = vector.broadcast %6 : vector<1x128xf32> to vector<2x128xf32>
    %127 = arith.addf %125, %126 : vector<2x128xf32>
    %128 = vector.extract_strided_slice %127 {offsets = [0, 0], sizes = [2, 32], strides = [1, 1]} : vector<2x128xf32> to vector<2x32xf32>
    %129 = arith.negf %128 : vector<2x32xf32>
    %130 = math.exp %129 : vector<2x32xf32>
    %cst_63 = arith.constant 1.000000e+00 : f32
    %131 = vector.broadcast %cst_63 : f32 to vector<2x32xf32>
    %132 = arith.addf %131, %130 : vector<2x32xf32>
    %133 = arith.divf %131, %132 : vector<2x32xf32>
    %134 = vector.extract_strided_slice %127 {offsets = [0, 32], sizes = [2, 32], strides = [1, 1]} : vector<2x128xf32> to vector<2x32xf32>
    %135 = arith.negf %134 : vector<2x32xf32>
    %136 = math.exp %135 : vector<2x32xf32>
    %cst_64 = arith.constant 1.000000e+00 : f32
    %137 = vector.broadcast %cst_64 : f32 to vector<2x32xf32>
    %138 = arith.addf %137, %136 : vector<2x32xf32>
    %139 = arith.divf %137, %138 : vector<2x32xf32>
    %140 = vector.extract_strided_slice %127 {offsets = [0, 64], sizes = [2, 32], strides = [1, 1]} : vector<2x128xf32> to vector<2x32xf32>
    %141 = math.tanh %140 : vector<2x32xf32>
    %142 = vector.extract_strided_slice %127 {offsets = [0, 96], sizes = [2, 32], strides = [1, 1]} : vector<2x128xf32> to vector<2x32xf32>
    %143 = arith.negf %142 : vector<2x32xf32>
    %144 = math.exp %143 : vector<2x32xf32>
    %cst_65 = arith.constant 1.000000e+00 : f32
    %145 = vector.broadcast %cst_65 : f32 to vector<2x32xf32>
    %146 = arith.addf %145, %144 : vector<2x32xf32>
    %147 = arith.divf %145, %146 : vector<2x32xf32>
    %148 = arith.mulf %139, %122 : vector<2x32xf32>
    %149 = arith.mulf %133, %141 : vector<2x32xf32>
    %150 = arith.addf %148, %149 : vector<2x32xf32>
    %151 = math.tanh %150 : vector<2x32xf32>
    %152 = arith.mulf %147, %151 : vector<2x32xf32>
    %c0_66 = arith.constant 0 : index
    %c0_67 = arith.constant 0 : index
    %153 = vector.load %arg13[%c0_66, %c0_67] : memref<2x32xf32, #tpu.memory_space<vmem>>, vector<2x32xf32>
    tpu.vector_store %arg13[%c0_66, %c0_67], %152 {strides = array<i32>} : memref<2x32xf32, #tpu.memory_space<vmem>>, vector<2x32xf32>,
    %c0_68 = arith.constant 0 : index
    %c0_69 = arith.constant 0 : index
    %154 = vector.load %arg14[%c0_68, %c0_69] : memref<2x32xf32, #tpu.memory_space<vmem>>, vector<2x32xf32>
    tpu.vector_store %arg14[%c0_68, %c0_69], %150 {strides = array<i32>} : memref<2x32xf32, #tpu.memory_space<vmem>>, vector<2x32xf32>,
    %c4_i32 = arith.constant 4 : i32
    %155 = arith.index_cast %c4_i32 : i32 to index
    %c0_70 = arith.constant 0 : index
    %c0_71 = arith.constant 0 : index
    %156 = vector.load %arg0[%155, %c0_70, %c0_71] : memref<8x2x32xf32, #tpu.memory_space<vmem>>, vector<1x2x32xf32>
    %157 = vector.shape_cast %156 : vector<1x2x32xf32> to vector<2x32xf32>
    %c0_72 = arith.constant 0 : index
    %c0_73 = arith.constant 0 : index
    %158 = vector.load %arg13[%c0_72, %c0_73] : memref<2x32xf32, #tpu.memory_space<vmem>>, vector<2x32xf32>
    %c0_74 = arith.constant 0 : index
    %c0_75 = arith.constant 0 : index
    %159 = vector.load %arg14[%c0_74, %c0_75] : memref<2x32xf32, #tpu.memory_space<vmem>>, vector<2x32xf32>
    %cst_76 = arith.constant dense<0.000000e+00> : vector<2x128xf32>
    %160 = tpu.matmul %157, %4, %cst_76 {dimension_numbers = #tpu.dot_dimension_numbers<[1], [0], [0], [1], [0, 0, 1, 1], [], []>} : vector<2x32xf32>, vector<32x128xf32>, vector<2x128xf32> -> vector<2x128xf32>
    %cst_77 = arith.constant dense<0.000000e+00> : vector<2x128xf32>
    %161 = tpu.matmul %158, %5, %cst_77 {dimension_numbers = #tpu.dot_dimension_numbers<[1], [0], [0], [1], [0, 0, 1, 1], [], []>} : vector<2x32xf32>, vector<32x128xf32>, vector<2x128xf32> -> vector<2x128xf32>
    %162 = arith.addf %160, %161 : vector<2x128xf32>
    %163 = vector.broadcast %6 : vector<1x128xf32> to vector<2x128xf32>
    %164 = arith.addf %162, %163 : vector<2x128xf32>
    %165 = vector.extract_strided_slice %164 {offsets = [0, 0], sizes = [2, 32], strides = [1, 1]} : vector<2x128xf32> to vector<2x32xf32>
    %166 = arith.negf %165 : vector<2x32xf32>
    %167 = math.exp %166 : vector<2x32xf32>
    %cst_78 = arith.constant 1.000000e+00 : f32
    %168 = vector.broadcast %cst_78 : f32 to vector<2x32xf32>
    %169 = arith.addf %168, %167 : vector<2x32xf32>
    %170 = arith.divf %168, %169 : vector<2x32xf32>
    %171 = vector.extract_strided_slice %164 {offsets = [0, 32], sizes = [2, 32], strides = [1, 1]} : vector<2x128xf32> to vector<2x32xf32>
    %172 = arith.negf %171 : vector<2x32xf32>
    %173 = math.exp %172 : vector<2x32xf32>
    %cst_79 = arith.constant 1.000000e+00 : f32
    %174 = vector.broadcast %cst_79 : f32 to vector<2x32xf32>
    %175 = arith.addf %174, %173 : vector<2x32xf32>
    %176 = arith.divf %174, %175 : vector<2x32xf32>
    %177 = vector.extract_strided_slice %164 {offsets = [0, 64], sizes = [2, 32], strides = [1, 1]} : vector<2x128xf32> to vector<2x32xf32>
    %178 = math.tanh %177 : vector<2x32xf32>
    %179 = vector.extract_strided_slice %164 {offsets = [0, 96], sizes = [2, 32], strides = [1, 1]} : vector<2x128xf32> to vector<2x32xf32>
    %180 = arith.negf %179 : vector<2x32xf32>
    %181 = math.exp %180 : vector<2x32xf32>
    %cst_80 = arith.constant 1.000000e+00 : f32
    %182 = vector.broadcast %cst_80 : f32 to vector<2x32xf32>
    %183 = arith.addf %182, %181 : vector<2x32xf32>
    %184 = arith.divf %182, %183 : vector<2x32xf32>
    %185 = arith.mulf %176, %159 : vector<2x32xf32>
    %186 = arith.mulf %170, %178 : vector<2x32xf32>
    %187 = arith.addf %185, %186 : vector<2x32xf32>
    %188 = math.tanh %187 : vector<2x32xf32>
    %189 = arith.mulf %184, %188 : vector<2x32xf32>
    %c0_81 = arith.constant 0 : index
    %c0_82 = arith.constant 0 : index
    %190 = vector.load %arg13[%c0_81, %c0_82] : memref<2x32xf32, #tpu.memory_space<vmem>>, vector<2x32xf32>
    tpu.vector_store %arg13[%c0_81, %c0_82], %189 {strides = array<i32>} : memref<2x32xf32, #tpu.memory_space<vmem>>, vector<2x32xf32>,
    %c0_83 = arith.constant 0 : index
    %c0_84 = arith.constant 0 : index
    %191 = vector.load %arg14[%c0_83, %c0_84] : memref<2x32xf32, #tpu.memory_space<vmem>>, vector<2x32xf32>
    tpu.vector_store %arg14[%c0_83, %c0_84], %187 {strides = array<i32>} : memref<2x32xf32, #tpu.memory_space<vmem>>, vector<2x32xf32>,
    %c5_i32 = arith.constant 5 : i32
    %192 = arith.index_cast %c5_i32 : i32 to index
    %c0_85 = arith.constant 0 : index
    %c0_86 = arith.constant 0 : index
    %193 = vector.load %arg0[%192, %c0_85, %c0_86] : memref<8x2x32xf32, #tpu.memory_space<vmem>>, vector<1x2x32xf32>
    %194 = vector.shape_cast %193 : vector<1x2x32xf32> to vector<2x32xf32>
    %c0_87 = arith.constant 0 : index
    %c0_88 = arith.constant 0 : index
    %195 = vector.load %arg13[%c0_87, %c0_88] : memref<2x32xf32, #tpu.memory_space<vmem>>, vector<2x32xf32>
    %c0_89 = arith.constant 0 : index
    %c0_90 = arith.constant 0 : index
    %196 = vector.load %arg14[%c0_89, %c0_90] : memref<2x32xf32, #tpu.memory_space<vmem>>, vector<2x32xf32>
    %cst_91 = arith.constant dense<0.000000e+00> : vector<2x128xf32>
    %197 = tpu.matmul %194, %4, %cst_91 {dimension_numbers = #tpu.dot_dimension_numbers<[1], [0], [0], [1], [0, 0, 1, 1], [], []>} : vector<2x32xf32>, vector<32x128xf32>, vector<2x128xf32> -> vector<2x128xf32>
    %cst_92 = arith.constant dense<0.000000e+00> : vector<2x128xf32>
    %198 = tpu.matmul %195, %5, %cst_92 {dimension_numbers = #tpu.dot_dimension_numbers<[1], [0], [0], [1], [0, 0, 1, 1], [], []>} : vector<2x32xf32>, vector<32x128xf32>, vector<2x128xf32> -> vector<2x128xf32>
    %199 = arith.addf %197, %198 : vector<2x128xf32>
    %200 = vector.broadcast %6 : vector<1x128xf32> to vector<2x128xf32>
    %201 = arith.addf %199, %200 : vector<2x128xf32>
    %202 = vector.extract_strided_slice %201 {offsets = [0, 0], sizes = [2, 32], strides = [1, 1]} : vector<2x128xf32> to vector<2x32xf32>
    %203 = arith.negf %202 : vector<2x32xf32>
    %204 = math.exp %203 : vector<2x32xf32>
    %cst_93 = arith.constant 1.000000e+00 : f32
    %205 = vector.broadcast %cst_93 : f32 to vector<2x32xf32>
    %206 = arith.addf %205, %204 : vector<2x32xf32>
    %207 = arith.divf %205, %206 : vector<2x32xf32>
    %208 = vector.extract_strided_slice %201 {offsets = [0, 32], sizes = [2, 32], strides = [1, 1]} : vector<2x128xf32> to vector<2x32xf32>
    %209 = arith.negf %208 : vector<2x32xf32>
    %210 = math.exp %209 : vector<2x32xf32>
    %cst_94 = arith.constant 1.000000e+00 : f32
    %211 = vector.broadcast %cst_94 : f32 to vector<2x32xf32>
    %212 = arith.addf %211, %210 : vector<2x32xf32>
    %213 = arith.divf %211, %212 : vector<2x32xf32>
    %214 = vector.extract_strided_slice %201 {offsets = [0, 64], sizes = [2, 32], strides = [1, 1]} : vector<2x128xf32> to vector<2x32xf32>
    %215 = math.tanh %214 : vector<2x32xf32>
    %216 = vector.extract_strided_slice %201 {offsets = [0, 96], sizes = [2, 32], strides = [1, 1]} : vector<2x128xf32> to vector<2x32xf32>
    %217 = arith.negf %216 : vector<2x32xf32>
    %218 = math.exp %217 : vector<2x32xf32>
    %cst_95 = arith.constant 1.000000e+00 : f32
    %219 = vector.broadcast %cst_95 : f32 to vector<2x32xf32>
    %220 = arith.addf %219, %218 : vector<2x32xf32>
    %221 = arith.divf %219, %220 : vector<2x32xf32>
    %222 = arith.mulf %213, %196 : vector<2x32xf32>
    %223 = arith.mulf %207, %215 : vector<2x32xf32>
    %224 = arith.addf %222, %223 : vector<2x32xf32>
    %225 = math.tanh %224 : vector<2x32xf32>
    %226 = arith.mulf %221, %225 : vector<2x32xf32>
    %c0_96 = arith.constant 0 : index
    %c0_97 = arith.constant 0 : index
    %227 = vector.load %arg13[%c0_96, %c0_97] : memref<2x32xf32, #tpu.memory_space<vmem>>, vector<2x32xf32>
    tpu.vector_store %arg13[%c0_96, %c0_97], %226 {strides = array<i32>} : memref<2x32xf32, #tpu.memory_space<vmem>>, vector<2x32xf32>,
    %c0_98 = arith.constant 0 : index
    %c0_99 = arith.constant 0 : index
    %228 = vector.load %arg14[%c0_98, %c0_99] : memref<2x32xf32, #tpu.memory_space<vmem>>, vector<2x32xf32>
    tpu.vector_store %arg14[%c0_98, %c0_99], %224 {strides = array<i32>} : memref<2x32xf32, #tpu.memory_space<vmem>>, vector<2x32xf32>,
    %c6_i32 = arith.constant 6 : i32
    %229 = arith.index_cast %c6_i32 : i32 to index
    %c0_100 = arith.constant 0 : index
    %c0_101 = arith.constant 0 : index
    %230 = vector.load %arg0[%229, %c0_100, %c0_101] : memref<8x2x32xf32, #tpu.memory_space<vmem>>, vector<1x2x32xf32>
    %231 = vector.shape_cast %230 : vector<1x2x32xf32> to vector<2x32xf32>
    %c0_102 = arith.constant 0 : index
    %c0_103 = arith.constant 0 : index
    %232 = vector.load %arg13[%c0_102, %c0_103] : memref<2x32xf32, #tpu.memory_space<vmem>>, vector<2x32xf32>
    %c0_104 = arith.constant 0 : index
    %c0_105 = arith.constant 0 : index
    %233 = vector.load %arg14[%c0_104, %c0_105] : memref<2x32xf32, #tpu.memory_space<vmem>>, vector<2x32xf32>
    %cst_106 = arith.constant dense<0.000000e+00> : vector<2x128xf32>
    %234 = tpu.matmul %231, %4, %cst_106 {dimension_numbers = #tpu.dot_dimension_numbers<[1], [0], [0], [1], [0, 0, 1, 1], [], []>} : vector<2x32xf32>, vector<32x128xf32>, vector<2x128xf32> -> vector<2x128xf32>
    %cst_107 = arith.constant dense<0.000000e+00> : vector<2x128xf32>
    %235 = tpu.matmul %232, %5, %cst_107 {dimension_numbers = #tpu.dot_dimension_numbers<[1], [0], [0], [1], [0, 0, 1, 1], [], []>} : vector<2x32xf32>, vector<32x128xf32>, vector<2x128xf32> -> vector<2x128xf32>
    %236 = arith.addf %234, %235 : vector<2x128xf32>
    %237 = vector.broadcast %6 : vector<1x128xf32> to vector<2x128xf32>
    %238 = arith.addf %236, %237 : vector<2x128xf32>
    %239 = vector.extract_strided_slice %238 {offsets = [0, 0], sizes = [2, 32], strides = [1, 1]} : vector<2x128xf32> to vector<2x32xf32>
    %240 = arith.negf %239 : vector<2x32xf32>
    %241 = math.exp %240 : vector<2x32xf32>
    %cst_108 = arith.constant 1.000000e+00 : f32
    %242 = vector.broadcast %cst_108 : f32 to vector<2x32xf32>
    %243 = arith.addf %242, %241 : vector<2x32xf32>
    %244 = arith.divf %242, %243 : vector<2x32xf32>
    %245 = vector.extract_strided_slice %238 {offsets = [0, 32], sizes = [2, 32], strides = [1, 1]} : vector<2x128xf32> to vector<2x32xf32>
    %246 = arith.negf %245 : vector<2x32xf32>
    %247 = math.exp %246 : vector<2x32xf32>
    %cst_109 = arith.constant 1.000000e+00 : f32
    %248 = vector.broadcast %cst_109 : f32 to vector<2x32xf32>
    %249 = arith.addf %248, %247 : vector<2x32xf32>
    %250 = arith.divf %248, %249 : vector<2x32xf32>
    %251 = vector.extract_strided_slice %238 {offsets = [0, 64], sizes = [2, 32], strides = [1, 1]} : vector<2x128xf32> to vector<2x32xf32>
    %252 = math.tanh %251 : vector<2x32xf32>
    %253 = vector.extract_strided_slice %238 {offsets = [0, 96], sizes = [2, 32], strides = [1, 1]} : vector<2x128xf32> to vector<2x32xf32>
    %254 = arith.negf %253 : vector<2x32xf32>
    %255 = math.exp %254 : vector<2x32xf32>
    %cst_110 = arith.constant 1.000000e+00 : f32
    %256 = vector.broadcast %cst_110 : f32 to vector<2x32xf32>
    %257 = arith.addf %256, %255 : vector<2x32xf32>
    %258 = arith.divf %256, %257 : vector<2x32xf32>
    %259 = arith.mulf %250, %233 : vector<2x32xf32>
    %260 = arith.mulf %244, %252 : vector<2x32xf32>
    %261 = arith.addf %259, %260 : vector<2x32xf32>
    %262 = math.tanh %261 : vector<2x32xf32>
    %263 = arith.mulf %258, %262 : vector<2x32xf32>
    %c0_111 = arith.constant 0 : index
    %c0_112 = arith.constant 0 : index
    %264 = vector.load %arg13[%c0_111, %c0_112] : memref<2x32xf32, #tpu.memory_space<vmem>>, vector<2x32xf32>
    tpu.vector_store %arg13[%c0_111, %c0_112], %263 {strides = array<i32>} : memref<2x32xf32, #tpu.memory_space<vmem>>, vector<2x32xf32>,
    %c0_113 = arith.constant 0 : index
    %c0_114 = arith.constant 0 : index
    %265 = vector.load %arg14[%c0_113, %c0_114] : memref<2x32xf32, #tpu.memory_space<vmem>>, vector<2x32xf32>
    tpu.vector_store %arg14[%c0_113, %c0_114], %261 {strides = array<i32>} : memref<2x32xf32, #tpu.memory_space<vmem>>, vector<2x32xf32>,
    %c7_i32 = arith.constant 7 : i32
    %266 = arith.index_cast %c7_i32 : i32 to index
    %c0_115 = arith.constant 0 : index
    %c0_116 = arith.constant 0 : index
    %267 = vector.load %arg0[%266, %c0_115, %c0_116] : memref<8x2x32xf32, #tpu.memory_space<vmem>>, vector<1x2x32xf32>
    %268 = vector.shape_cast %267 : vector<1x2x32xf32> to vector<2x32xf32>
    %c0_117 = arith.constant 0 : index
    %c0_118 = arith.constant 0 : index
    %269 = vector.load %arg13[%c0_117, %c0_118] : memref<2x32xf32, #tpu.memory_space<vmem>>, vector<2x32xf32>
    %c0_119 = arith.constant 0 : index
    %c0_120 = arith.constant 0 : index
    %270 = vector.load %arg14[%c0_119, %c0_120] : memref<2x32xf32, #tpu.memory_space<vmem>>, vector<2x32xf32>
    %cst_121 = arith.constant dense<0.000000e+00> : vector<2x128xf32>
    %271 = tpu.matmul %268, %4, %cst_121 {dimension_numbers = #tpu.dot_dimension_numbers<[1], [0], [0], [1], [0, 0, 1, 1], [], []>} : vector<2x32xf32>, vector<32x128xf32>, vector<2x128xf32> -> vector<2x128xf32>
    %cst_122 = arith.constant dense<0.000000e+00> : vector<2x128xf32>
    %272 = tpu.matmul %269, %5, %cst_122 {dimension_numbers = #tpu.dot_dimension_numbers<[1], [0], [0], [1], [0, 0, 1, 1], [], []>} : vector<2x32xf32>, vector<32x128xf32>, vector<2x128xf32> -> vector<2x128xf32>
    %273 = arith.addf %271, %272 : vector<2x128xf32>
    %274 = vector.broadcast %6 : vector<1x128xf32> to vector<2x128xf32>
    %275 = arith.addf %273, %274 : vector<2x128xf32>
    %276 = vector.extract_strided_slice %275 {offsets = [0, 0], sizes = [2, 32], strides = [1, 1]} : vector<2x128xf32> to vector<2x32xf32>
    %277 = arith.negf %276 : vector<2x32xf32>
    %278 = math.exp %277 : vector<2x32xf32>
    %cst_123 = arith.constant 1.000000e+00 : f32
    %279 = vector.broadcast %cst_123 : f32 to vector<2x32xf32>
    %280 = arith.addf %279, %278 : vector<2x32xf32>
    %281 = arith.divf %279, %280 : vector<2x32xf32>
    %282 = vector.extract_strided_slice %275 {offsets = [0, 32], sizes = [2, 32], strides = [1, 1]} : vector<2x128xf32> to vector<2x32xf32>
    %283 = arith.negf %282 : vector<2x32xf32>
    %284 = math.exp %283 : vector<2x32xf32>
    %cst_124 = arith.constant 1.000000e+00 : f32
    %285 = vector.broadcast %cst_124 : f32 to vector<2x32xf32>
    %286 = arith.addf %285, %284 : vector<2x32xf32>
    %287 = arith.divf %285, %286 : vector<2x32xf32>
    %288 = vector.extract_strided_slice %275 {offsets = [0, 64], sizes = [2, 32], strides = [1, 1]} : vector<2x128xf32> to vector<2x32xf32>
    %289 = math.tanh %288 : vector<2x32xf32>
    %290 = vector.extract_strided_slice %275 {offsets = [0, 96], sizes = [2, 32], strides = [1, 1]} : vector<2x128xf32> to vector<2x32xf32>
    %291 = arith.negf %290 : vector<2x32xf32>
    %292 = math.exp %291 : vector<2x32xf32>
    %cst_125 = arith.constant 1.000000e+00 : f32
    %293 = vector.broadcast %cst_125 : f32 to vector<2x32xf32>
    %294 = arith.addf %293, %292 : vector<2x32xf32>
    %295 = arith.divf %293, %294 : vector<2x32xf32>
    %296 = arith.mulf %287, %270 : vector<2x32xf32>
    %297 = arith.mulf %281, %289 : vector<2x32xf32>
    %298 = arith.addf %296, %297 : vector<2x32xf32>
    %299 = math.tanh %298 : vector<2x32xf32>
    %300 = arith.mulf %295, %299 : vector<2x32xf32>
    %c0_126 = arith.constant 0 : index
    %c0_127 = arith.constant 0 : index
    %301 = vector.load %arg13[%c0_126, %c0_127] : memref<2x32xf32, #tpu.memory_space<vmem>>, vector<2x32xf32>
    tpu.vector_store %arg13[%c0_126, %c0_127], %300 {strides = array<i32>} : memref<2x32xf32, #tpu.memory_space<vmem>>, vector<2x32xf32>,
    %c0_128 = arith.constant 0 : index
    %c0_129 = arith.constant 0 : index
    %302 = vector.load %arg14[%c0_128, %c0_129] : memref<2x32xf32, #tpu.memory_space<vmem>>, vector<2x32xf32>
    tpu.vector_store %arg14[%c0_128, %c0_129], %298 {strides = array<i32>} : memref<2x32xf32, #tpu.memory_space<vmem>>, vector<2x32xf32>,
    %c8_i32 = arith.constant 8 : i32
    %cst_130 = arith.constant 0.000000e+00 : f32
    %303 = vector.broadcast %cst_130 : f32 to vector<2x16xf32>
    %c0_131 = arith.constant 0 : index
    %c0_132 = arith.constant 0 : index
    %c0_133 = arith.constant 0 : index
    %304 = vector.load %arg12[%c0_131, %c0_132, %c0_133] : memref<8x2x16xf32, #tpu.memory_space<vmem>>, vector<1x2x16xf32>
    %305 = vector.shape_cast %304 : vector<1x2x16xf32> to vector<2x16xf32>
    %306 = vector.shape_cast %303 : vector<2x16xf32> to vector<1x2x16xf32>
    tpu.vector_store %arg12[%c0_131, %c0_132, %c0_133], %306 {strides = array<i32>} : memref<8x2x16xf32, #tpu.memory_space<vmem>>, vector<1x2x16xf32>,
    %c0_134 = arith.constant 0 : index
    %c0_135 = arith.constant 0 : index
    %307 = vector.load %arg6[%c0_134, %c0_135] : memref<16x32xf32, #tpu.memory_space<vmem>>, vector<16x32xf32>
    %c0_136 = arith.constant 0 : index
    %c0_137 = arith.constant 0 : index
    %308 = vector.load %arg7[%c0_136, %c0_137] : memref<32x128xf32, #tpu.memory_space<vmem>>, vector<32x128xf32>
    %c0_138 = arith.constant 0 : index
    %c0_139 = arith.constant 0 : index
    %309 = vector.load %arg8[%c0_138, %c0_139] : memref<32x128xf32, #tpu.memory_space<vmem>>, vector<32x128xf32>
    %c0_140 = arith.constant 0 : index
    %c0_141 = arith.constant 0 : index
    %310 = vector.load %arg9[%c0_140, %c0_141] : memref<1x128xf32, #tpu.memory_space<vmem>>, vector<1x128xf32>
    %c0_142 = arith.constant 0 : index
    %c0_143 = arith.constant 0 : index
    %311 = vector.load %arg10[%c0_142, %c0_143] : memref<32x16xf32, #tpu.memory_space<vmem>>, vector<32x16xf32>
    %c0_144 = arith.constant 0 : index
    %c0_145 = arith.constant 0 : index
    %312 = vector.load %arg11[%c0_144, %c0_145] : memref<1x16xf32, #tpu.memory_space<vmem>>, vector<1x16xf32>
    %313 = tpu.iota {dimensions = array<i32: 1>} : vector<2x16xi32>
    %c0_146 = arith.constant 0 : index
    %c0_147 = arith.constant 0 : index
    %c0_148 = arith.constant 0 : index
    %314 = vector.load %arg1[%c0_146, %c0_147, %c0_148] : memref<8x2x16xf32, #tpu.memory_space<vmem>>, vector<1x2x16xf32>
    %315 = vector.shape_cast %314 : vector<1x2x16xf32> to vector<2x16xf32>
    %c1_i32_149 = arith.constant 1 : i32
    %cst_150 = arith.constant dense<0.000000e+00> : vector<2x32xf32>
    %316 = tpu.matmul %315, %307, %cst_150 {dimension_numbers = #tpu.dot_dimension_numbers<[1], [0], [0], [1], [0, 0, 1, 1], [], []>} : vector<2x16xf32>, vector<16x32xf32>, vector<2x32xf32> -> vector<2x32xf32>
    %c0_151 = arith.constant 0 : index
    %c0_152 = arith.constant 0 : index
    %317 = vector.load %arg13[%c0_151, %c0_152] : memref<2x32xf32, #tpu.memory_space<vmem>>, vector<2x32xf32>
    %c0_153 = arith.constant 0 : index
    %c0_154 = arith.constant 0 : index
    %318 = vector.load %arg14[%c0_153, %c0_154] : memref<2x32xf32, #tpu.memory_space<vmem>>, vector<2x32xf32>
    %cst_155 = arith.constant dense<0.000000e+00> : vector<2x128xf32>
    %319 = tpu.matmul %316, %308, %cst_155 {dimension_numbers = #tpu.dot_dimension_numbers<[1], [0], [0], [1], [0, 0, 1, 1], [], []>} : vector<2x32xf32>, vector<32x128xf32>, vector<2x128xf32> -> vector<2x128xf32>
    %cst_156 = arith.constant dense<0.000000e+00> : vector<2x128xf32>
    %320 = tpu.matmul %317, %309, %cst_156 {dimension_numbers = #tpu.dot_dimension_numbers<[1], [0], [0], [1], [0, 0, 1, 1], [], []>} : vector<2x32xf32>, vector<32x128xf32>, vector<2x128xf32> -> vector<2x128xf32>
    %321 = arith.addf %319, %320 : vector<2x128xf32>
    %322 = vector.broadcast %310 : vector<1x128xf32> to vector<2x128xf32>
    %323 = arith.addf %321, %322 : vector<2x128xf32>
    %324 = vector.extract_strided_slice %323 {offsets = [0, 0], sizes = [2, 32], strides = [1, 1]} : vector<2x128xf32> to vector<2x32xf32>
    %325 = arith.negf %324 : vector<2x32xf32>
    %326 = math.exp %325 : vector<2x32xf32>
    %cst_157 = arith.constant 1.000000e+00 : f32
    %327 = vector.broadcast %cst_157 : f32 to vector<2x32xf32>
    %328 = arith.addf %327, %326 : vector<2x32xf32>
    %329 = arith.divf %327, %328 : vector<2x32xf32>
    %330 = vector.extract_strided_slice %323 {offsets = [0, 32], sizes = [2, 32], strides = [1, 1]} : vector<2x128xf32> to vector<2x32xf32>
    %331 = arith.negf %330 : vector<2x32xf32>
    %332 = math.exp %331 : vector<2x32xf32>
    %cst_158 = arith.constant 1.000000e+00 : f32
    %333 = vector.broadcast %cst_158 : f32 to vector<2x32xf32>
    %334 = arith.addf %333, %332 : vector<2x32xf32>
    %335 = arith.divf %333, %334 : vector<2x32xf32>
    %336 = vector.extract_strided_slice %323 {offsets = [0, 64], sizes = [2, 32], strides = [1, 1]} : vector<2x128xf32> to vector<2x32xf32>
    %337 = math.tanh %336 : vector<2x32xf32>
    %338 = vector.extract_strided_slice %323 {offsets = [0, 96], sizes = [2, 32], strides = [1, 1]} : vector<2x128xf32> to vector<2x32xf32>
    %339 = arith.negf %338 : vector<2x32xf32>
    %340 = math.exp %339 : vector<2x32xf32>
    %cst_159 = arith.constant 1.000000e+00 : f32
    %341 = vector.broadcast %cst_159 : f32 to vector<2x32xf32>
    %342 = arith.addf %341, %340 : vector<2x32xf32>
    %343 = arith.divf %341, %342 : vector<2x32xf32>
    %344 = arith.mulf %335, %318 : vector<2x32xf32>
    %345 = arith.mulf %329, %337 : vector<2x32xf32>
    %346 = arith.addf %344, %345 : vector<2x32xf32>
    %347 = math.tanh %346 : vector<2x32xf32>
    %348 = arith.mulf %343, %347 : vector<2x32xf32>
    %c0_160 = arith.constant 0 : index
    %c0_161 = arith.constant 0 : index
    %349 = vector.load %arg13[%c0_160, %c0_161] : memref<2x32xf32, #tpu.memory_space<vmem>>, vector<2x32xf32>
    tpu.vector_store %arg13[%c0_160, %c0_161], %348 {strides = array<i32>} : memref<2x32xf32, #tpu.memory_space<vmem>>, vector<2x32xf32>,
    %c0_162 = arith.constant 0 : index
    %c0_163 = arith.constant 0 : index
    %350 = vector.load %arg14[%c0_162, %c0_163] : memref<2x32xf32, #tpu.memory_space<vmem>>, vector<2x32xf32>
    tpu.vector_store %arg14[%c0_162, %c0_163], %346 {strides = array<i32>} : memref<2x32xf32, #tpu.memory_space<vmem>>, vector<2x32xf32>,
    %cst_164 = arith.constant dense<0.000000e+00> : vector<2x16xf32>
    %351 = tpu.matmul %348, %311, %cst_164 {dimension_numbers = #tpu.dot_dimension_numbers<[1], [0], [0], [1], [0, 0, 1, 1], [], []>} : vector<2x32xf32>, vector<32x16xf32>, vector<2x16xf32> -> vector<2x16xf32>
    %352 = vector.broadcast %312 : vector<1x16xf32> to vector<2x16xf32>
    %353 = arith.addf %351, %352 : vector<2x16xf32>
    %354 = arith.index_cast %c1_i32_149 : i32 to index
    %c0_165 = arith.constant 0 : index
    %c0_166 = arith.constant 0 : index
    %355 = vector.load %arg12[%354, %c0_165, %c0_166] : memref<8x2x16xf32, #tpu.memory_space<vmem>>, vector<1x2x16xf32>
    %356 = vector.shape_cast %355 : vector<1x2x16xf32> to vector<2x16xf32>
    %357 = vector.shape_cast %353 : vector<2x16xf32> to vector<1x2x16xf32>
    tpu.vector_store %arg12[%354, %c0_165, %c0_166], %357 {strides = array<i32>} : memref<8x2x16xf32, #tpu.memory_space<vmem>>, vector<1x2x16xf32>,
    %cst_167 = arith.constant dense<0xFF800000> : vector<2xf32>
    %358 = vector.multi_reduction <maximumf>, %353, %cst_167 [1] : vector<2x16xf32> to vector<2xf32>
    %359 = vector.shape_cast %358 : vector<2xf32> to vector<2x1xf32>
    %360 = vector.broadcast %359 : vector<2x1xf32> to vector<2x16xf32>
    %361 = arith.cmpf oeq, %353, %360 : vector<2x16xf32>
    %c16_i32 = arith.constant 16 : i32
    %362 = vector.broadcast %c16_i32 : i32 to vector<2x16xi32>
    %363 = arith.select %361, %313, %362 : vector<2x16xi1>, vector<2x16xi32>
    %cst_168 = arith.constant dense<2147483647> : vector<2xi32>
    %364 = vector.multi_reduction <minsi>, %363, %cst_168 [1] : vector<2x16xi32> to vector<2xi32>
    %365 = vector.shape_cast %364 : vector<2xi32> to vector<2x1xi32>
    %366 = vector.broadcast %365 : vector<2x1xi32> to vector<2x16xi32>
    %367 = arith.cmpi eq, %313, %366 : vector<2x16xi32>
    %368 = arith.extui %367 : vector<2x16xi1> to vector<2x16xi32>
    %369 = arith.sitofp %368 : vector<2x16xi32> to vector<2x16xf32>
    %370 = arith.index_cast %c1_i32_149 : i32 to index
    %c0_169 = arith.constant 0 : index
    %c0_170 = arith.constant 0 : index
    %371 = vector.load %arg2[%370, %c0_169, %c0_170] : memref<8x1x1xf32, #tpu.memory_space<vmem>>, vector<1x1x1xf32>
    %372 = vector.shape_cast %371 : vector<1x1x1xf32> to vector<1x1xf32>
    %373 = arith.index_cast %c1_i32_149 : i32 to index
    %c0_171 = arith.constant 0 : index
    %c0_172 = arith.constant 0 : index
    %374 = vector.load %arg1[%373, %c0_171, %c0_172] : memref<8x2x16xf32, #tpu.memory_space<vmem>>, vector<1x2x16xf32>
    %375 = vector.shape_cast %374 : vector<1x2x16xf32> to vector<2x16xf32>
    %376 = vector.broadcast %372 : vector<1x1xf32> to vector<2x16xf32>
    %377 = arith.mulf %376, %375 : vector<2x16xf32>
    %cst_173 = arith.constant 1.000000e+00 : f32
    %378 = vector.broadcast %cst_173 : f32 to vector<1x1xf32>
    %379 = arith.subf %378, %372 : vector<1x1xf32>
    %380 = vector.broadcast %379 : vector<1x1xf32> to vector<2x16xf32>
    %381 = arith.mulf %380, %369 : vector<2x16xf32>
    %382 = arith.addf %377, %381 : vector<2x16xf32>
    %c2_i32_174 = arith.constant 2 : i32
    %cst_175 = arith.constant dense<0.000000e+00> : vector<2x32xf32>
    %383 = tpu.matmul %382, %307, %cst_175 {dimension_numbers = #tpu.dot_dimension_numbers<[1], [0], [0], [1], [0, 0, 1, 1], [], []>} : vector<2x16xf32>, vector<16x32xf32>, vector<2x32xf32> -> vector<2x32xf32>
    %c0_176 = arith.constant 0 : index
    %c0_177 = arith.constant 0 : index
    %384 = vector.load %arg13[%c0_176, %c0_177] : memref<2x32xf32, #tpu.memory_space<vmem>>, vector<2x32xf32>
    %c0_178 = arith.constant 0 : index
    %c0_179 = arith.constant 0 : index
    %385 = vector.load %arg14[%c0_178, %c0_179] : memref<2x32xf32, #tpu.memory_space<vmem>>, vector<2x32xf32>
    %cst_180 = arith.constant dense<0.000000e+00> : vector<2x128xf32>
    %386 = tpu.matmul %383, %308, %cst_180 {dimension_numbers = #tpu.dot_dimension_numbers<[1], [0], [0], [1], [0, 0, 1, 1], [], []>} : vector<2x32xf32>, vector<32x128xf32>, vector<2x128xf32> -> vector<2x128xf32>
    %cst_181 = arith.constant dense<0.000000e+00> : vector<2x128xf32>
    %387 = tpu.matmul %384, %309, %cst_181 {dimension_numbers = #tpu.dot_dimension_numbers<[1], [0], [0], [1], [0, 0, 1, 1], [], []>} : vector<2x32xf32>, vector<32x128xf32>, vector<2x128xf32> -> vector<2x128xf32>
    %388 = arith.addf %386, %387 : vector<2x128xf32>
    %389 = vector.broadcast %310 : vector<1x128xf32> to vector<2x128xf32>
    %390 = arith.addf %388, %389 : vector<2x128xf32>
    %391 = vector.extract_strided_slice %390 {offsets = [0, 0], sizes = [2, 32], strides = [1, 1]} : vector<2x128xf32> to vector<2x32xf32>
    %392 = arith.negf %391 : vector<2x32xf32>
    %393 = math.exp %392 : vector<2x32xf32>
    %cst_182 = arith.constant 1.000000e+00 : f32
    %394 = vector.broadcast %cst_182 : f32 to vector<2x32xf32>
    %395 = arith.addf %394, %393 : vector<2x32xf32>
    %396 = arith.divf %394, %395 : vector<2x32xf32>
    %397 = vector.extract_strided_slice %390 {offsets = [0, 32], sizes = [2, 32], strides = [1, 1]} : vector<2x128xf32> to vector<2x32xf32>
    %398 = arith.negf %397 : vector<2x32xf32>
    %399 = math.exp %398 : vector<2x32xf32>
    %cst_183 = arith.constant 1.000000e+00 : f32
    %400 = vector.broadcast %cst_183 : f32 to vector<2x32xf32>
    %401 = arith.addf %400, %399 : vector<2x32xf32>
    %402 = arith.divf %400, %401 : vector<2x32xf32>
    %403 = vector.extract_strided_slice %390 {offsets = [0, 64], sizes = [2, 32], strides = [1, 1]} : vector<2x128xf32> to vector<2x32xf32>
    %404 = math.tanh %403 : vector<2x32xf32>
    %405 = vector.extract_strided_slice %390 {offsets = [0, 96], sizes = [2, 32], strides = [1, 1]} : vector<2x128xf32> to vector<2x32xf32>
    %406 = arith.negf %405 : vector<2x32xf32>
    %407 = math.exp %406 : vector<2x32xf32>
    %cst_184 = arith.constant 1.000000e+00 : f32
    %408 = vector.broadcast %cst_184 : f32 to vector<2x32xf32>
    %409 = arith.addf %408, %407 : vector<2x32xf32>
    %410 = arith.divf %408, %409 : vector<2x32xf32>
    %411 = arith.mulf %402, %385 : vector<2x32xf32>
    %412 = arith.mulf %396, %404 : vector<2x32xf32>
    %413 = arith.addf %411, %412 : vector<2x32xf32>
    %414 = math.tanh %413 : vector<2x32xf32>
    %415 = arith.mulf %410, %414 : vector<2x32xf32>
    %c0_185 = arith.constant 0 : index
    %c0_186 = arith.constant 0 : index
    %416 = vector.load %arg13[%c0_185, %c0_186] : memref<2x32xf32, #tpu.memory_space<vmem>>, vector<2x32xf32>
    tpu.vector_store %arg13[%c0_185, %c0_186], %415 {strides = array<i32>} : memref<2x32xf32, #tpu.memory_space<vmem>>, vector<2x32xf32>,
    %c0_187 = arith.constant 0 : index
    %c0_188 = arith.constant 0 : index
    %417 = vector.load %arg14[%c0_187, %c0_188] : memref<2x32xf32, #tpu.memory_space<vmem>>, vector<2x32xf32>
    tpu.vector_store %arg14[%c0_187, %c0_188], %413 {strides = array<i32>} : memref<2x32xf32, #tpu.memory_space<vmem>>, vector<2x32xf32>,
    %cst_189 = arith.constant dense<0.000000e+00> : vector<2x16xf32>
    %418 = tpu.matmul %415, %311, %cst_189 {dimension_numbers = #tpu.dot_dimension_numbers<[1], [0], [0], [1], [0, 0, 1, 1], [], []>} : vector<2x32xf32>, vector<32x16xf32>, vector<2x16xf32> -> vector<2x16xf32>
    %419 = vector.broadcast %312 : vector<1x16xf32> to vector<2x16xf32>
    %420 = arith.addf %418, %419 : vector<2x16xf32>
    %421 = arith.index_cast %c2_i32_174 : i32 to index
    %c0_190 = arith.constant 0 : index
    %c0_191 = arith.constant 0 : index
    %422 = vector.load %arg12[%421, %c0_190, %c0_191] : memref<8x2x16xf32, #tpu.memory_space<vmem>>, vector<1x2x16xf32>
    %423 = vector.shape_cast %422 : vector<1x2x16xf32> to vector<2x16xf32>
    %424 = vector.shape_cast %420 : vector<2x16xf32> to vector<1x2x16xf32>
    tpu.vector_store %arg12[%421, %c0_190, %c0_191], %424 {strides = array<i32>} : memref<8x2x16xf32, #tpu.memory_space<vmem>>, vector<1x2x16xf32>,
    %cst_192 = arith.constant dense<0xFF800000> : vector<2xf32>
    %425 = vector.multi_reduction <maximumf>, %420, %cst_192 [1] : vector<2x16xf32> to vector<2xf32>
    %426 = vector.shape_cast %425 : vector<2xf32> to vector<2x1xf32>
    %427 = vector.broadcast %426 : vector<2x1xf32> to vector<2x16xf32>
    %428 = arith.cmpf oeq, %420, %427 : vector<2x16xf32>
    %c16_i32_193 = arith.constant 16 : i32
    %429 = vector.broadcast %c16_i32_193 : i32 to vector<2x16xi32>
    %430 = arith.select %428, %313, %429 : vector<2x16xi1>, vector<2x16xi32>
    %cst_194 = arith.constant dense<2147483647> : vector<2xi32>
    %431 = vector.multi_reduction <minsi>, %430, %cst_194 [1] : vector<2x16xi32> to vector<2xi32>
    %432 = vector.shape_cast %431 : vector<2xi32> to vector<2x1xi32>
    %433 = vector.broadcast %432 : vector<2x1xi32> to vector<2x16xi32>
    %434 = arith.cmpi eq, %313, %433 : vector<2x16xi32>
    %435 = arith.extui %434 : vector<2x16xi1> to vector<2x16xi32>
    %436 = arith.sitofp %435 : vector<2x16xi32> to vector<2x16xf32>
    %437 = arith.index_cast %c2_i32_174 : i32 to index
    %c0_195 = arith.constant 0 : index
    %c0_196 = arith.constant 0 : index
    %438 = vector.load %arg2[%437, %c0_195, %c0_196] : memref<8x1x1xf32, #tpu.memory_space<vmem>>, vector<1x1x1xf32>
    %439 = vector.shape_cast %438 : vector<1x1x1xf32> to vector<1x1xf32>
    %440 = arith.index_cast %c2_i32_174 : i32 to index
    %c0_197 = arith.constant 0 : index
    %c0_198 = arith.constant 0 : index
    %441 = vector.load %arg1[%440, %c0_197, %c0_198] : memref<8x2x16xf32, #tpu.memory_space<vmem>>, vector<1x2x16xf32>
    %442 = vector.shape_cast %441 : vector<1x2x16xf32> to vector<2x16xf32>
    %443 = vector.broadcast %439 : vector<1x1xf32> to vector<2x16xf32>
    %444 = arith.mulf %443, %442 : vector<2x16xf32>
    %cst_199 = arith.constant 1.000000e+00 : f32
    %445 = vector.broadcast %cst_199 : f32 to vector<1x1xf32>
    %446 = arith.subf %445, %439 : vector<1x1xf32>
    %447 = vector.broadcast %446 : vector<1x1xf32> to vector<2x16xf32>
    %448 = arith.mulf %447, %436 : vector<2x16xf32>
    %449 = arith.addf %444, %448 : vector<2x16xf32>
    %c3_i32_200 = arith.constant 3 : i32
    %cst_201 = arith.constant dense<0.000000e+00> : vector<2x32xf32>
    %450 = tpu.matmul %449, %307, %cst_201 {dimension_numbers = #tpu.dot_dimension_numbers<[1], [0], [0], [1], [0, 0, 1, 1], [], []>} : vector<2x16xf32>, vector<16x32xf32>, vector<2x32xf32> -> vector<2x32xf32>
    %c0_202 = arith.constant 0 : index
    %c0_203 = arith.constant 0 : index
    %451 = vector.load %arg13[%c0_202, %c0_203] : memref<2x32xf32, #tpu.memory_space<vmem>>, vector<2x32xf32>
    %c0_204 = arith.constant 0 : index
    %c0_205 = arith.constant 0 : index
    %452 = vector.load %arg14[%c0_204, %c0_205] : memref<2x32xf32, #tpu.memory_space<vmem>>, vector<2x32xf32>
    %cst_206 = arith.constant dense<0.000000e+00> : vector<2x128xf32>
    %453 = tpu.matmul %450, %308, %cst_206 {dimension_numbers = #tpu.dot_dimension_numbers<[1], [0], [0], [1], [0, 0, 1, 1], [], []>} : vector<2x32xf32>, vector<32x128xf32>, vector<2x128xf32> -> vector<2x128xf32>
    %cst_207 = arith.constant dense<0.000000e+00> : vector<2x128xf32>
    %454 = tpu.matmul %451, %309, %cst_207 {dimension_numbers = #tpu.dot_dimension_numbers<[1], [0], [0], [1], [0, 0, 1, 1], [], []>} : vector<2x32xf32>, vector<32x128xf32>, vector<2x128xf32> -> vector<2x128xf32>
    %455 = arith.addf %453, %454 : vector<2x128xf32>
    %456 = vector.broadcast %310 : vector<1x128xf32> to vector<2x128xf32>
    %457 = arith.addf %455, %456 : vector<2x128xf32>
    %458 = vector.extract_strided_slice %457 {offsets = [0, 0], sizes = [2, 32], strides = [1, 1]} : vector<2x128xf32> to vector<2x32xf32>
    %459 = arith.negf %458 : vector<2x32xf32>
    %460 = math.exp %459 : vector<2x32xf32>
    %cst_208 = arith.constant 1.000000e+00 : f32
    %461 = vector.broadcast %cst_208 : f32 to vector<2x32xf32>
    %462 = arith.addf %461, %460 : vector<2x32xf32>
    %463 = arith.divf %461, %462 : vector<2x32xf32>
    %464 = vector.extract_strided_slice %457 {offsets = [0, 32], sizes = [2, 32], strides = [1, 1]} : vector<2x128xf32> to vector<2x32xf32>
    %465 = arith.negf %464 : vector<2x32xf32>
    %466 = math.exp %465 : vector<2x32xf32>
    %cst_209 = arith.constant 1.000000e+00 : f32
    %467 = vector.broadcast %cst_209 : f32 to vector<2x32xf32>
    %468 = arith.addf %467, %466 : vector<2x32xf32>
    %469 = arith.divf %467, %468 : vector<2x32xf32>
    %470 = vector.extract_strided_slice %457 {offsets = [0, 64], sizes = [2, 32], strides = [1, 1]} : vector<2x128xf32> to vector<2x32xf32>
    %471 = math.tanh %470 : vector<2x32xf32>
    %472 = vector.extract_strided_slice %457 {offsets = [0, 96], sizes = [2, 32], strides = [1, 1]} : vector<2x128xf32> to vector<2x32xf32>
    %473 = arith.negf %472 : vector<2x32xf32>
    %474 = math.exp %473 : vector<2x32xf32>
    %cst_210 = arith.constant 1.000000e+00 : f32
    %475 = vector.broadcast %cst_210 : f32 to vector<2x32xf32>
    %476 = arith.addf %475, %474 : vector<2x32xf32>
    %477 = arith.divf %475, %476 : vector<2x32xf32>
    %478 = arith.mulf %469, %452 : vector<2x32xf32>
    %479 = arith.mulf %463, %471 : vector<2x32xf32>
    %480 = arith.addf %478, %479 : vector<2x32xf32>
    %481 = math.tanh %480 : vector<2x32xf32>
    %482 = arith.mulf %477, %481 : vector<2x32xf32>
    %c0_211 = arith.constant 0 : index
    %c0_212 = arith.constant 0 : index
    %483 = vector.load %arg13[%c0_211, %c0_212] : memref<2x32xf32, #tpu.memory_space<vmem>>, vector<2x32xf32>
    tpu.vector_store %arg13[%c0_211, %c0_212], %482 {strides = array<i32>} : memref<2x32xf32, #tpu.memory_space<vmem>>, vector<2x32xf32>,
    %c0_213 = arith.constant 0 : index
    %c0_214 = arith.constant 0 : index
    %484 = vector.load %arg14[%c0_213, %c0_214] : memref<2x32xf32, #tpu.memory_space<vmem>>, vector<2x32xf32>
    tpu.vector_store %arg14[%c0_213, %c0_214], %480 {strides = array<i32>} : memref<2x32xf32, #tpu.memory_space<vmem>>, vector<2x32xf32>,
    %cst_215 = arith.constant dense<0.000000e+00> : vector<2x16xf32>
    %485 = tpu.matmul %482, %311, %cst_215 {dimension_numbers = #tpu.dot_dimension_numbers<[1], [0], [0], [1], [0, 0, 1, 1], [], []>} : vector<2x32xf32>, vector<32x16xf32>, vector<2x16xf32> -> vector<2x16xf32>
    %486 = vector.broadcast %312 : vector<1x16xf32> to vector<2x16xf32>
    %487 = arith.addf %485, %486 : vector<2x16xf32>
    %488 = arith.index_cast %c3_i32_200 : i32 to index
    %c0_216 = arith.constant 0 : index
    %c0_217 = arith.constant 0 : index
    %489 = vector.load %arg12[%488, %c0_216, %c0_217] : memref<8x2x16xf32, #tpu.memory_space<vmem>>, vector<1x2x16xf32>
    %490 = vector.shape_cast %489 : vector<1x2x16xf32> to vector<2x16xf32>
    %491 = vector.shape_cast %487 : vector<2x16xf32> to vector<1x2x16xf32>
    tpu.vector_store %arg12[%488, %c0_216, %c0_217], %491 {strides = array<i32>} : memref<8x2x16xf32, #tpu.memory_space<vmem>>, vector<1x2x16xf32>,
    %cst_218 = arith.constant dense<0xFF800000> : vector<2xf32>
    %492 = vector.multi_reduction <maximumf>, %487, %cst_218 [1] : vector<2x16xf32> to vector<2xf32>
    %493 = vector.shape_cast %492 : vector<2xf32> to vector<2x1xf32>
    %494 = vector.broadcast %493 : vector<2x1xf32> to vector<2x16xf32>
    %495 = arith.cmpf oeq, %487, %494 : vector<2x16xf32>
    %c16_i32_219 = arith.constant 16 : i32
    %496 = vector.broadcast %c16_i32_219 : i32 to vector<2x16xi32>
    %497 = arith.select %495, %313, %496 : vector<2x16xi1>, vector<2x16xi32>
    %cst_220 = arith.constant dense<2147483647> : vector<2xi32>
    %498 = vector.multi_reduction <minsi>, %497, %cst_220 [1] : vector<2x16xi32> to vector<2xi32>
    %499 = vector.shape_cast %498 : vector<2xi32> to vector<2x1xi32>
    %500 = vector.broadcast %499 : vector<2x1xi32> to vector<2x16xi32>
    %501 = arith.cmpi eq, %313, %500 : vector<2x16xi32>
    %502 = arith.extui %501 : vector<2x16xi1> to vector<2x16xi32>
    %503 = arith.sitofp %502 : vector<2x16xi32> to vector<2x16xf32>
    %504 = arith.index_cast %c3_i32_200 : i32 to index
    %c0_221 = arith.constant 0 : index
    %c0_222 = arith.constant 0 : index
    %505 = vector.load %arg2[%504, %c0_221, %c0_222] : memref<8x1x1xf32, #tpu.memory_space<vmem>>, vector<1x1x1xf32>
    %506 = vector.shape_cast %505 : vector<1x1x1xf32> to vector<1x1xf32>
    %507 = arith.index_cast %c3_i32_200 : i32 to index
    %c0_223 = arith.constant 0 : index
    %c0_224 = arith.constant 0 : index
    %508 = vector.load %arg1[%507, %c0_223, %c0_224] : memref<8x2x16xf32, #tpu.memory_space<vmem>>, vector<1x2x16xf32>
    %509 = vector.shape_cast %508 : vector<1x2x16xf32> to vector<2x16xf32>
    %510 = vector.broadcast %506 : vector<1x1xf32> to vector<2x16xf32>
    %511 = arith.mulf %510, %509 : vector<2x16xf32>
    %cst_225 = arith.constant 1.000000e+00 : f32
    %512 = vector.broadcast %cst_225 : f32 to vector<1x1xf32>
    %513 = arith.subf %512, %506 : vector<1x1xf32>
    %514 = vector.broadcast %513 : vector<1x1xf32> to vector<2x16xf32>
    %515 = arith.mulf %514, %503 : vector<2x16xf32>
    %516 = arith.addf %511, %515 : vector<2x16xf32>
    %c4_i32_226 = arith.constant 4 : i32
    %cst_227 = arith.constant dense<0.000000e+00> : vector<2x32xf32>
    %517 = tpu.matmul %516, %307, %cst_227 {dimension_numbers = #tpu.dot_dimension_numbers<[1], [0], [0], [1], [0, 0, 1, 1], [], []>} : vector<2x16xf32>, vector<16x32xf32>, vector<2x32xf32> -> vector<2x32xf32>
    %c0_228 = arith.constant 0 : index
    %c0_229 = arith.constant 0 : index
    %518 = vector.load %arg13[%c0_228, %c0_229] : memref<2x32xf32, #tpu.memory_space<vmem>>, vector<2x32xf32>
    %c0_230 = arith.constant 0 : index
    %c0_231 = arith.constant 0 : index
    %519 = vector.load %arg14[%c0_230, %c0_231] : memref<2x32xf32, #tpu.memory_space<vmem>>, vector<2x32xf32>
    %cst_232 = arith.constant dense<0.000000e+00> : vector<2x128xf32>
    %520 = tpu.matmul %517, %308, %cst_232 {dimension_numbers = #tpu.dot_dimension_numbers<[1], [0], [0], [1], [0, 0, 1, 1], [], []>} : vector<2x32xf32>, vector<32x128xf32>, vector<2x128xf32> -> vector<2x128xf32>
    %cst_233 = arith.constant dense<0.000000e+00> : vector<2x128xf32>
    %521 = tpu.matmul %518, %309, %cst_233 {dimension_numbers = #tpu.dot_dimension_numbers<[1], [0], [0], [1], [0, 0, 1, 1], [], []>} : vector<2x32xf32>, vector<32x128xf32>, vector<2x128xf32> -> vector<2x128xf32>
    %522 = arith.addf %520, %521 : vector<2x128xf32>
    %523 = vector.broadcast %310 : vector<1x128xf32> to vector<2x128xf32>
    %524 = arith.addf %522, %523 : vector<2x128xf32>
    %525 = vector.extract_strided_slice %524 {offsets = [0, 0], sizes = [2, 32], strides = [1, 1]} : vector<2x128xf32> to vector<2x32xf32>
    %526 = arith.negf %525 : vector<2x32xf32>
    %527 = math.exp %526 : vector<2x32xf32>
    %cst_234 = arith.constant 1.000000e+00 : f32
    %528 = vector.broadcast %cst_234 : f32 to vector<2x32xf32>
    %529 = arith.addf %528, %527 : vector<2x32xf32>
    %530 = arith.divf %528, %529 : vector<2x32xf32>
    %531 = vector.extract_strided_slice %524 {offsets = [0, 32], sizes = [2, 32], strides = [1, 1]} : vector<2x128xf32> to vector<2x32xf32>
    %532 = arith.negf %531 : vector<2x32xf32>
    %533 = math.exp %532 : vector<2x32xf32>
    %cst_235 = arith.constant 1.000000e+00 : f32
    %534 = vector.broadcast %cst_235 : f32 to vector<2x32xf32>
    %535 = arith.addf %534, %533 : vector<2x32xf32>
    %536 = arith.divf %534, %535 : vector<2x32xf32>
    %537 = vector.extract_strided_slice %524 {offsets = [0, 64], sizes = [2, 32], strides = [1, 1]} : vector<2x128xf32> to vector<2x32xf32>
    %538 = math.tanh %537 : vector<2x32xf32>
    %539 = vector.extract_strided_slice %524 {offsets = [0, 96], sizes = [2, 32], strides = [1, 1]} : vector<2x128xf32> to vector<2x32xf32>
    %540 = arith.negf %539 : vector<2x32xf32>
    %541 = math.exp %540 : vector<2x32xf32>
    %cst_236 = arith.constant 1.000000e+00 : f32
    %542 = vector.broadcast %cst_236 : f32 to vector<2x32xf32>
    %543 = arith.addf %542, %541 : vector<2x32xf32>
    %544 = arith.divf %542, %543 : vector<2x32xf32>
    %545 = arith.mulf %536, %519 : vector<2x32xf32>
    %546 = arith.mulf %530, %538 : vector<2x32xf32>
    %547 = arith.addf %545, %546 : vector<2x32xf32>
    %548 = math.tanh %547 : vector<2x32xf32>
    %549 = arith.mulf %544, %548 : vector<2x32xf32>
    %c0_237 = arith.constant 0 : index
    %c0_238 = arith.constant 0 : index
    %550 = vector.load %arg13[%c0_237, %c0_238] : memref<2x32xf32, #tpu.memory_space<vmem>>, vector<2x32xf32>
    tpu.vector_store %arg13[%c0_237, %c0_238], %549 {strides = array<i32>} : memref<2x32xf32, #tpu.memory_space<vmem>>, vector<2x32xf32>,
    %c0_239 = arith.constant 0 : index
    %c0_240 = arith.constant 0 : index
    %551 = vector.load %arg14[%c0_239, %c0_240] : memref<2x32xf32, #tpu.memory_space<vmem>>, vector<2x32xf32>
    tpu.vector_store %arg14[%c0_239, %c0_240], %547 {strides = array<i32>} : memref<2x32xf32, #tpu.memory_space<vmem>>, vector<2x32xf32>,
    %cst_241 = arith.constant dense<0.000000e+00> : vector<2x16xf32>
    %552 = tpu.matmul %549, %311, %cst_241 {dimension_numbers = #tpu.dot_dimension_numbers<[1], [0], [0], [1], [0, 0, 1, 1], [], []>} : vector<2x32xf32>, vector<32x16xf32>, vector<2x16xf32> -> vector<2x16xf32>
    %553 = vector.broadcast %312 : vector<1x16xf32> to vector<2x16xf32>
    %554 = arith.addf %552, %553 : vector<2x16xf32>
    %555 = arith.index_cast %c4_i32_226 : i32 to index
    %c0_242 = arith.constant 0 : index
    %c0_243 = arith.constant 0 : index
    %556 = vector.load %arg12[%555, %c0_242, %c0_243] : memref<8x2x16xf32, #tpu.memory_space<vmem>>, vector<1x2x16xf32>
    %557 = vector.shape_cast %556 : vector<1x2x16xf32> to vector<2x16xf32>
    %558 = vector.shape_cast %554 : vector<2x16xf32> to vector<1x2x16xf32>
    tpu.vector_store %arg12[%555, %c0_242, %c0_243], %558 {strides = array<i32>} : memref<8x2x16xf32, #tpu.memory_space<vmem>>, vector<1x2x16xf32>,
    %cst_244 = arith.constant dense<0xFF800000> : vector<2xf32>
    %559 = vector.multi_reduction <maximumf>, %554, %cst_244 [1] : vector<2x16xf32> to vector<2xf32>
    %560 = vector.shape_cast %559 : vector<2xf32> to vector<2x1xf32>
    %561 = vector.broadcast %560 : vector<2x1xf32> to vector<2x16xf32>
    %562 = arith.cmpf oeq, %554, %561 : vector<2x16xf32>
    %c16_i32_245 = arith.constant 16 : i32
    %563 = vector.broadcast %c16_i32_245 : i32 to vector<2x16xi32>
    %564 = arith.select %562, %313, %563 : vector<2x16xi1>, vector<2x16xi32>
    %cst_246 = arith.constant dense<2147483647> : vector<2xi32>
    %565 = vector.multi_reduction <minsi>, %564, %cst_246 [1] : vector<2x16xi32> to vector<2xi32>
    %566 = vector.shape_cast %565 : vector<2xi32> to vector<2x1xi32>
    %567 = vector.broadcast %566 : vector<2x1xi32> to vector<2x16xi32>
    %568 = arith.cmpi eq, %313, %567 : vector<2x16xi32>
    %569 = arith.extui %568 : vector<2x16xi1> to vector<2x16xi32>
    %570 = arith.sitofp %569 : vector<2x16xi32> to vector<2x16xf32>
    %571 = arith.index_cast %c4_i32_226 : i32 to index
    %c0_247 = arith.constant 0 : index
    %c0_248 = arith.constant 0 : index
    %572 = vector.load %arg2[%571, %c0_247, %c0_248] : memref<8x1x1xf32, #tpu.memory_space<vmem>>, vector<1x1x1xf32>
    %573 = vector.shape_cast %572 : vector<1x1x1xf32> to vector<1x1xf32>
    %574 = arith.index_cast %c4_i32_226 : i32 to index
    %c0_249 = arith.constant 0 : index
    %c0_250 = arith.constant 0 : index
    %575 = vector.load %arg1[%574, %c0_249, %c0_250] : memref<8x2x16xf32, #tpu.memory_space<vmem>>, vector<1x2x16xf32>
    %576 = vector.shape_cast %575 : vector<1x2x16xf32> to vector<2x16xf32>
    %577 = vector.broadcast %573 : vector<1x1xf32> to vector<2x16xf32>
    %578 = arith.mulf %577, %576 : vector<2x16xf32>
    %cst_251 = arith.constant 1.000000e+00 : f32
    %579 = vector.broadcast %cst_251 : f32 to vector<1x1xf32>
    %580 = arith.subf %579, %573 : vector<1x1xf32>
    %581 = vector.broadcast %580 : vector<1x1xf32> to vector<2x16xf32>
    %582 = arith.mulf %581, %570 : vector<2x16xf32>
    %583 = arith.addf %578, %582 : vector<2x16xf32>
    %c5_i32_252 = arith.constant 5 : i32
    %cst_253 = arith.constant dense<0.000000e+00> : vector<2x32xf32>
    %584 = tpu.matmul %583, %307, %cst_253 {dimension_numbers = #tpu.dot_dimension_numbers<[1], [0], [0], [1], [0, 0, 1, 1], [], []>} : vector<2x16xf32>, vector<16x32xf32>, vector<2x32xf32> -> vector<2x32xf32>
    %c0_254 = arith.constant 0 : index
    %c0_255 = arith.constant 0 : index
    %585 = vector.load %arg13[%c0_254, %c0_255] : memref<2x32xf32, #tpu.memory_space<vmem>>, vector<2x32xf32>
    %c0_256 = arith.constant 0 : index
    %c0_257 = arith.constant 0 : index
    %586 = vector.load %arg14[%c0_256, %c0_257] : memref<2x32xf32, #tpu.memory_space<vmem>>, vector<2x32xf32>
    %cst_258 = arith.constant dense<0.000000e+00> : vector<2x128xf32>
    %587 = tpu.matmul %584, %308, %cst_258 {dimension_numbers = #tpu.dot_dimension_numbers<[1], [0], [0], [1], [0, 0, 1, 1], [], []>} : vector<2x32xf32>, vector<32x128xf32>, vector<2x128xf32> -> vector<2x128xf32>
    %cst_259 = arith.constant dense<0.000000e+00> : vector<2x128xf32>
    %588 = tpu.matmul %585, %309, %cst_259 {dimension_numbers = #tpu.dot_dimension_numbers<[1], [0], [0], [1], [0, 0, 1, 1], [], []>} : vector<2x32xf32>, vector<32x128xf32>, vector<2x128xf32> -> vector<2x128xf32>
    %589 = arith.addf %587, %588 : vector<2x128xf32>
    %590 = vector.broadcast %310 : vector<1x128xf32> to vector<2x128xf32>
    %591 = arith.addf %589, %590 : vector<2x128xf32>
    %592 = vector.extract_strided_slice %591 {offsets = [0, 0], sizes = [2, 32], strides = [1, 1]} : vector<2x128xf32> to vector<2x32xf32>
    %593 = arith.negf %592 : vector<2x32xf32>
    %594 = math.exp %593 : vector<2x32xf32>
    %cst_260 = arith.constant 1.000000e+00 : f32
    %595 = vector.broadcast %cst_260 : f32 to vector<2x32xf32>
    %596 = arith.addf %595, %594 : vector<2x32xf32>
    %597 = arith.divf %595, %596 : vector<2x32xf32>
    %598 = vector.extract_strided_slice %591 {offsets = [0, 32], sizes = [2, 32], strides = [1, 1]} : vector<2x128xf32> to vector<2x32xf32>
    %599 = arith.negf %598 : vector<2x32xf32>
    %600 = math.exp %599 : vector<2x32xf32>
    %cst_261 = arith.constant 1.000000e+00 : f32
    %601 = vector.broadcast %cst_261 : f32 to vector<2x32xf32>
    %602 = arith.addf %601, %600 : vector<2x32xf32>
    %603 = arith.divf %601, %602 : vector<2x32xf32>
    %604 = vector.extract_strided_slice %591 {offsets = [0, 64], sizes = [2, 32], strides = [1, 1]} : vector<2x128xf32> to vector<2x32xf32>
    %605 = math.tanh %604 : vector<2x32xf32>
    %606 = vector.extract_strided_slice %591 {offsets = [0, 96], sizes = [2, 32], strides = [1, 1]} : vector<2x128xf32> to vector<2x32xf32>
    %607 = arith.negf %606 : vector<2x32xf32>
    %608 = math.exp %607 : vector<2x32xf32>
    %cst_262 = arith.constant 1.000000e+00 : f32
    %609 = vector.broadcast %cst_262 : f32 to vector<2x32xf32>
    %610 = arith.addf %609, %608 : vector<2x32xf32>
    %611 = arith.divf %609, %610 : vector<2x32xf32>
    %612 = arith.mulf %603, %586 : vector<2x32xf32>
    %613 = arith.mulf %597, %605 : vector<2x32xf32>
    %614 = arith.addf %612, %613 : vector<2x32xf32>
    %615 = math.tanh %614 : vector<2x32xf32>
    %616 = arith.mulf %611, %615 : vector<2x32xf32>
    %c0_263 = arith.constant 0 : index
    %c0_264 = arith.constant 0 : index
    %617 = vector.load %arg13[%c0_263, %c0_264] : memref<2x32xf32, #tpu.memory_space<vmem>>, vector<2x32xf32>
    tpu.vector_store %arg13[%c0_263, %c0_264], %616 {strides = array<i32>} : memref<2x32xf32, #tpu.memory_space<vmem>>, vector<2x32xf32>,
    %c0_265 = arith.constant 0 : index
    %c0_266 = arith.constant 0 : index
    %618 = vector.load %arg14[%c0_265, %c0_266] : memref<2x32xf32, #tpu.memory_space<vmem>>, vector<2x32xf32>
    tpu.vector_store %arg14[%c0_265, %c0_266], %614 {strides = array<i32>} : memref<2x32xf32, #tpu.memory_space<vmem>>, vector<2x32xf32>,
    %cst_267 = arith.constant dense<0.000000e+00> : vector<2x16xf32>
    %619 = tpu.matmul %616, %311, %cst_267 {dimension_numbers = #tpu.dot_dimension_numbers<[1], [0], [0], [1], [0, 0, 1, 1], [], []>} : vector<2x32xf32>, vector<32x16xf32>, vector<2x16xf32> -> vector<2x16xf32>
    %620 = vector.broadcast %312 : vector<1x16xf32> to vector<2x16xf32>
    %621 = arith.addf %619, %620 : vector<2x16xf32>
    %622 = arith.index_cast %c5_i32_252 : i32 to index
    %c0_268 = arith.constant 0 : index
    %c0_269 = arith.constant 0 : index
    %623 = vector.load %arg12[%622, %c0_268, %c0_269] : memref<8x2x16xf32, #tpu.memory_space<vmem>>, vector<1x2x16xf32>
    %624 = vector.shape_cast %623 : vector<1x2x16xf32> to vector<2x16xf32>
    %625 = vector.shape_cast %621 : vector<2x16xf32> to vector<1x2x16xf32>
    tpu.vector_store %arg12[%622, %c0_268, %c0_269], %625 {strides = array<i32>} : memref<8x2x16xf32, #tpu.memory_space<vmem>>, vector<1x2x16xf32>,
    %cst_270 = arith.constant dense<0xFF800000> : vector<2xf32>
    %626 = vector.multi_reduction <maximumf>, %621, %cst_270 [1] : vector<2x16xf32> to vector<2xf32>
    %627 = vector.shape_cast %626 : vector<2xf32> to vector<2x1xf32>
    %628 = vector.broadcast %627 : vector<2x1xf32> to vector<2x16xf32>
    %629 = arith.cmpf oeq, %621, %628 : vector<2x16xf32>
    %c16_i32_271 = arith.constant 16 : i32
    %630 = vector.broadcast %c16_i32_271 : i32 to vector<2x16xi32>
    %631 = arith.select %629, %313, %630 : vector<2x16xi1>, vector<2x16xi32>
    %cst_272 = arith.constant dense<2147483647> : vector<2xi32>
    %632 = vector.multi_reduction <minsi>, %631, %cst_272 [1] : vector<2x16xi32> to vector<2xi32>
    %633 = vector.shape_cast %632 : vector<2xi32> to vector<2x1xi32>
    %634 = vector.broadcast %633 : vector<2x1xi32> to vector<2x16xi32>
    %635 = arith.cmpi eq, %313, %634 : vector<2x16xi32>
    %636 = arith.extui %635 : vector<2x16xi1> to vector<2x16xi32>
    %637 = arith.sitofp %636 : vector<2x16xi32> to vector<2x16xf32>
    %638 = arith.index_cast %c5_i32_252 : i32 to index
    %c0_273 = arith.constant 0 : index
    %c0_274 = arith.constant 0 : index
    %639 = vector.load %arg2[%638, %c0_273, %c0_274] : memref<8x1x1xf32, #tpu.memory_space<vmem>>, vector<1x1x1xf32>
    %640 = vector.shape_cast %639 : vector<1x1x1xf32> to vector<1x1xf32>
    %641 = arith.index_cast %c5_i32_252 : i32 to index
    %c0_275 = arith.constant 0 : index
    %c0_276 = arith.constant 0 : index
    %642 = vector.load %arg1[%641, %c0_275, %c0_276] : memref<8x2x16xf32, #tpu.memory_space<vmem>>, vector<1x2x16xf32>
    %643 = vector.shape_cast %642 : vector<1x2x16xf32> to vector<2x16xf32>
    %644 = vector.broadcast %640 : vector<1x1xf32> to vector<2x16xf32>
    %645 = arith.mulf %644, %643 : vector<2x16xf32>
    %cst_277 = arith.constant 1.000000e+00 : f32
    %646 = vector.broadcast %cst_277 : f32 to vector<1x1xf32>
    %647 = arith.subf %646, %640 : vector<1x1xf32>
    %648 = vector.broadcast %647 : vector<1x1xf32> to vector<2x16xf32>
    %649 = arith.mulf %648, %637 : vector<2x16xf32>
    %650 = arith.addf %645, %649 : vector<2x16xf32>
    %c6_i32_278 = arith.constant 6 : i32
    %cst_279 = arith.constant dense<0.000000e+00> : vector<2x32xf32>
    %651 = tpu.matmul %650, %307, %cst_279 {dimension_numbers = #tpu.dot_dimension_numbers<[1], [0], [0], [1], [0, 0, 1, 1], [], []>} : vector<2x16xf32>, vector<16x32xf32>, vector<2x32xf32> -> vector<2x32xf32>
    %c0_280 = arith.constant 0 : index
    %c0_281 = arith.constant 0 : index
    %652 = vector.load %arg13[%c0_280, %c0_281] : memref<2x32xf32, #tpu.memory_space<vmem>>, vector<2x32xf32>
    %c0_282 = arith.constant 0 : index
    %c0_283 = arith.constant 0 : index
    %653 = vector.load %arg14[%c0_282, %c0_283] : memref<2x32xf32, #tpu.memory_space<vmem>>, vector<2x32xf32>
    %cst_284 = arith.constant dense<0.000000e+00> : vector<2x128xf32>
    %654 = tpu.matmul %651, %308, %cst_284 {dimension_numbers = #tpu.dot_dimension_numbers<[1], [0], [0], [1], [0, 0, 1, 1], [], []>} : vector<2x32xf32>, vector<32x128xf32>, vector<2x128xf32> -> vector<2x128xf32>
    %cst_285 = arith.constant dense<0.000000e+00> : vector<2x128xf32>
    %655 = tpu.matmul %652, %309, %cst_285 {dimension_numbers = #tpu.dot_dimension_numbers<[1], [0], [0], [1], [0, 0, 1, 1], [], []>} : vector<2x32xf32>, vector<32x128xf32>, vector<2x128xf32> -> vector<2x128xf32>
    %656 = arith.addf %654, %655 : vector<2x128xf32>
    %657 = vector.broadcast %310 : vector<1x128xf32> to vector<2x128xf32>
    %658 = arith.addf %656, %657 : vector<2x128xf32>
    %659 = vector.extract_strided_slice %658 {offsets = [0, 0], sizes = [2, 32], strides = [1, 1]} : vector<2x128xf32> to vector<2x32xf32>
    %660 = arith.negf %659 : vector<2x32xf32>
    %661 = math.exp %660 : vector<2x32xf32>
    %cst_286 = arith.constant 1.000000e+00 : f32
    %662 = vector.broadcast %cst_286 : f32 to vector<2x32xf32>
    %663 = arith.addf %662, %661 : vector<2x32xf32>
    %664 = arith.divf %662, %663 : vector<2x32xf32>
    %665 = vector.extract_strided_slice %658 {offsets = [0, 32], sizes = [2, 32], strides = [1, 1]} : vector<2x128xf32> to vector<2x32xf32>
    %666 = arith.negf %665 : vector<2x32xf32>
    %667 = math.exp %666 : vector<2x32xf32>
    %cst_287 = arith.constant 1.000000e+00 : f32
    %668 = vector.broadcast %cst_287 : f32 to vector<2x32xf32>
    %669 = arith.addf %668, %667 : vector<2x32xf32>
    %670 = arith.divf %668, %669 : vector<2x32xf32>
    %671 = vector.extract_strided_slice %658 {offsets = [0, 64], sizes = [2, 32], strides = [1, 1]} : vector<2x128xf32> to vector<2x32xf32>
    %672 = math.tanh %671 : vector<2x32xf32>
    %673 = vector.extract_strided_slice %658 {offsets = [0, 96], sizes = [2, 32], strides = [1, 1]} : vector<2x128xf32> to vector<2x32xf32>
    %674 = arith.negf %673 : vector<2x32xf32>
    %675 = math.exp %674 : vector<2x32xf32>
    %cst_288 = arith.constant 1.000000e+00 : f32
    %676 = vector.broadcast %cst_288 : f32 to vector<2x32xf32>
    %677 = arith.addf %676, %675 : vector<2x32xf32>
    %678 = arith.divf %676, %677 : vector<2x32xf32>
    %679 = arith.mulf %670, %653 : vector<2x32xf32>
    %680 = arith.mulf %664, %672 : vector<2x32xf32>
    %681 = arith.addf %679, %680 : vector<2x32xf32>
    %682 = math.tanh %681 : vector<2x32xf32>
    %683 = arith.mulf %678, %682 : vector<2x32xf32>
    %c0_289 = arith.constant 0 : index
    %c0_290 = arith.constant 0 : index
    %684 = vector.load %arg13[%c0_289, %c0_290] : memref<2x32xf32, #tpu.memory_space<vmem>>, vector<2x32xf32>
    tpu.vector_store %arg13[%c0_289, %c0_290], %683 {strides = array<i32>} : memref<2x32xf32, #tpu.memory_space<vmem>>, vector<2x32xf32>,
    %c0_291 = arith.constant 0 : index
    %c0_292 = arith.constant 0 : index
    %685 = vector.load %arg14[%c0_291, %c0_292] : memref<2x32xf32, #tpu.memory_space<vmem>>, vector<2x32xf32>
    tpu.vector_store %arg14[%c0_291, %c0_292], %681 {strides = array<i32>} : memref<2x32xf32, #tpu.memory_space<vmem>>, vector<2x32xf32>,
    %cst_293 = arith.constant dense<0.000000e+00> : vector<2x16xf32>
    %686 = tpu.matmul %683, %311, %cst_293 {dimension_numbers = #tpu.dot_dimension_numbers<[1], [0], [0], [1], [0, 0, 1, 1], [], []>} : vector<2x32xf32>, vector<32x16xf32>, vector<2x16xf32> -> vector<2x16xf32>
    %687 = vector.broadcast %312 : vector<1x16xf32> to vector<2x16xf32>
    %688 = arith.addf %686, %687 : vector<2x16xf32>
    %689 = arith.index_cast %c6_i32_278 : i32 to index
    %c0_294 = arith.constant 0 : index
    %c0_295 = arith.constant 0 : index
    %690 = vector.load %arg12[%689, %c0_294, %c0_295] : memref<8x2x16xf32, #tpu.memory_space<vmem>>, vector<1x2x16xf32>
    %691 = vector.shape_cast %690 : vector<1x2x16xf32> to vector<2x16xf32>
    %692 = vector.shape_cast %688 : vector<2x16xf32> to vector<1x2x16xf32>
    tpu.vector_store %arg12[%689, %c0_294, %c0_295], %692 {strides = array<i32>} : memref<8x2x16xf32, #tpu.memory_space<vmem>>, vector<1x2x16xf32>,
    %cst_296 = arith.constant dense<0xFF800000> : vector<2xf32>
    %693 = vector.multi_reduction <maximumf>, %688, %cst_296 [1] : vector<2x16xf32> to vector<2xf32>
    %694 = vector.shape_cast %693 : vector<2xf32> to vector<2x1xf32>
    %695 = vector.broadcast %694 : vector<2x1xf32> to vector<2x16xf32>
    %696 = arith.cmpf oeq, %688, %695 : vector<2x16xf32>
    %c16_i32_297 = arith.constant 16 : i32
    %697 = vector.broadcast %c16_i32_297 : i32 to vector<2x16xi32>
    %698 = arith.select %696, %313, %697 : vector<2x16xi1>, vector<2x16xi32>
    %cst_298 = arith.constant dense<2147483647> : vector<2xi32>
    %699 = vector.multi_reduction <minsi>, %698, %cst_298 [1] : vector<2x16xi32> to vector<2xi32>
    %700 = vector.shape_cast %699 : vector<2xi32> to vector<2x1xi32>
    %701 = vector.broadcast %700 : vector<2x1xi32> to vector<2x16xi32>
    %702 = arith.cmpi eq, %313, %701 : vector<2x16xi32>
    %703 = arith.extui %702 : vector<2x16xi1> to vector<2x16xi32>
    %704 = arith.sitofp %703 : vector<2x16xi32> to vector<2x16xf32>
    %705 = arith.index_cast %c6_i32_278 : i32 to index
    %c0_299 = arith.constant 0 : index
    %c0_300 = arith.constant 0 : index
    %706 = vector.load %arg2[%705, %c0_299, %c0_300] : memref<8x1x1xf32, #tpu.memory_space<vmem>>, vector<1x1x1xf32>
    %707 = vector.shape_cast %706 : vector<1x1x1xf32> to vector<1x1xf32>
    %708 = arith.index_cast %c6_i32_278 : i32 to index
    %c0_301 = arith.constant 0 : index
    %c0_302 = arith.constant 0 : index
    %709 = vector.load %arg1[%708, %c0_301, %c0_302] : memref<8x2x16xf32, #tpu.memory_space<vmem>>, vector<1x2x16xf32>
    %710 = vector.shape_cast %709 : vector<1x2x16xf32> to vector<2x16xf32>
    %711 = vector.broadcast %707 : vector<1x1xf32> to vector<2x16xf32>
    %712 = arith.mulf %711, %710 : vector<2x16xf32>
    %cst_303 = arith.constant 1.000000e+00 : f32
    %713 = vector.broadcast %cst_303 : f32 to vector<1x1xf32>
    %714 = arith.subf %713, %707 : vector<1x1xf32>
    %715 = vector.broadcast %714 : vector<1x1xf32> to vector<2x16xf32>
    %716 = arith.mulf %715, %704 : vector<2x16xf32>
    %717 = arith.addf %712, %716 : vector<2x16xf32>
    %c7_i32_304 = arith.constant 7 : i32
    %cst_305 = arith.constant dense<0.000000e+00> : vector<2x32xf32>
    %718 = tpu.matmul %717, %307, %cst_305 {dimension_numbers = #tpu.dot_dimension_numbers<[1], [0], [0], [1], [0, 0, 1, 1], [], []>} : vector<2x16xf32>, vector<16x32xf32>, vector<2x32xf32> -> vector<2x32xf32>
    %c0_306 = arith.constant 0 : index
    %c0_307 = arith.constant 0 : index
    %719 = vector.load %arg13[%c0_306, %c0_307] : memref<2x32xf32, #tpu.memory_space<vmem>>, vector<2x32xf32>
    %c0_308 = arith.constant 0 : index
    %c0_309 = arith.constant 0 : index
    %720 = vector.load %arg14[%c0_308, %c0_309] : memref<2x32xf32, #tpu.memory_space<vmem>>, vector<2x32xf32>
    %cst_310 = arith.constant dense<0.000000e+00> : vector<2x128xf32>
    %721 = tpu.matmul %718, %308, %cst_310 {dimension_numbers = #tpu.dot_dimension_numbers<[1], [0], [0], [1], [0, 0, 1, 1], [], []>} : vector<2x32xf32>, vector<32x128xf32>, vector<2x128xf32> -> vector<2x128xf32>
    %cst_311 = arith.constant dense<0.000000e+00> : vector<2x128xf32>
    %722 = tpu.matmul %719, %309, %cst_311 {dimension_numbers = #tpu.dot_dimension_numbers<[1], [0], [0], [1], [0, 0, 1, 1], [], []>} : vector<2x32xf32>, vector<32x128xf32>, vector<2x128xf32> -> vector<2x128xf32>
    %723 = arith.addf %721, %722 : vector<2x128xf32>
    %724 = vector.broadcast %310 : vector<1x128xf32> to vector<2x128xf32>
    %725 = arith.addf %723, %724 : vector<2x128xf32>
    %726 = vector.extract_strided_slice %725 {offsets = [0, 0], sizes = [2, 32], strides = [1, 1]} : vector<2x128xf32> to vector<2x32xf32>
    %727 = arith.negf %726 : vector<2x32xf32>
    %728 = math.exp %727 : vector<2x32xf32>
    %cst_312 = arith.constant 1.000000e+00 : f32
    %729 = vector.broadcast %cst_312 : f32 to vector<2x32xf32>
    %730 = arith.addf %729, %728 : vector<2x32xf32>
    %731 = arith.divf %729, %730 : vector<2x32xf32>
    %732 = vector.extract_strided_slice %725 {offsets = [0, 32], sizes = [2, 32], strides = [1, 1]} : vector<2x128xf32> to vector<2x32xf32>
    %733 = arith.negf %732 : vector<2x32xf32>
    %734 = math.exp %733 : vector<2x32xf32>
    %cst_313 = arith.constant 1.000000e+00 : f32
    %735 = vector.broadcast %cst_313 : f32 to vector<2x32xf32>
    %736 = arith.addf %735, %734 : vector<2x32xf32>
    %737 = arith.divf %735, %736 : vector<2x32xf32>
    %738 = vector.extract_strided_slice %725 {offsets = [0, 64], sizes = [2, 32], strides = [1, 1]} : vector<2x128xf32> to vector<2x32xf32>
    %739 = math.tanh %738 : vector<2x32xf32>
    %740 = vector.extract_strided_slice %725 {offsets = [0, 96], sizes = [2, 32], strides = [1, 1]} : vector<2x128xf32> to vector<2x32xf32>
    %741 = arith.negf %740 : vector<2x32xf32>
    %742 = math.exp %741 : vector<2x32xf32>
    %cst_314 = arith.constant 1.000000e+00 : f32
    %743 = vector.broadcast %cst_314 : f32 to vector<2x32xf32>
    %744 = arith.addf %743, %742 : vector<2x32xf32>
    %745 = arith.divf %743, %744 : vector<2x32xf32>
    %746 = arith.mulf %737, %720 : vector<2x32xf32>
    %747 = arith.mulf %731, %739 : vector<2x32xf32>
    %748 = arith.addf %746, %747 : vector<2x32xf32>
    %749 = math.tanh %748 : vector<2x32xf32>
    %750 = arith.mulf %745, %749 : vector<2x32xf32>
    %c0_315 = arith.constant 0 : index
    %c0_316 = arith.constant 0 : index
    %751 = vector.load %arg13[%c0_315, %c0_316] : memref<2x32xf32, #tpu.memory_space<vmem>>, vector<2x32xf32>
    tpu.vector_store %arg13[%c0_315, %c0_316], %750 {strides = array<i32>} : memref<2x32xf32, #tpu.memory_space<vmem>>, vector<2x32xf32>,
    %c0_317 = arith.constant 0 : index
    %c0_318 = arith.constant 0 : index
    %752 = vector.load %arg14[%c0_317, %c0_318] : memref<2x32xf32, #tpu.memory_space<vmem>>, vector<2x32xf32>
    tpu.vector_store %arg14[%c0_317, %c0_318], %748 {strides = array<i32>} : memref<2x32xf32, #tpu.memory_space<vmem>>, vector<2x32xf32>,
    %cst_319 = arith.constant dense<0.000000e+00> : vector<2x16xf32>
    %753 = tpu.matmul %750, %311, %cst_319 {dimension_numbers = #tpu.dot_dimension_numbers<[1], [0], [0], [1], [0, 0, 1, 1], [], []>} : vector<2x32xf32>, vector<32x16xf32>, vector<2x16xf32> -> vector<2x16xf32>
    %754 = vector.broadcast %312 : vector<1x16xf32> to vector<2x16xf32>
    %755 = arith.addf %753, %754 : vector<2x16xf32>
    %756 = arith.index_cast %c7_i32_304 : i32 to index
    %c0_320 = arith.constant 0 : index
    %c0_321 = arith.constant 0 : index
    %757 = vector.load %arg12[%756, %c0_320, %c0_321] : memref<8x2x16xf32, #tpu.memory_space<vmem>>, vector<1x2x16xf32>
    %758 = vector.shape_cast %757 : vector<1x2x16xf32> to vector<2x16xf32>
    %759 = vector.shape_cast %755 : vector<2x16xf32> to vector<1x2x16xf32>
    tpu.vector_store %arg12[%756, %c0_320, %c0_321], %759 {strides = array<i32>} : memref<8x2x16xf32, #tpu.memory_space<vmem>>, vector<1x2x16xf32>,
    %cst_322 = arith.constant dense<0xFF800000> : vector<2xf32>
    %760 = vector.multi_reduction <maximumf>, %755, %cst_322 [1] : vector<2x16xf32> to vector<2xf32>
    %761 = vector.shape_cast %760 : vector<2xf32> to vector<2x1xf32>
    %762 = vector.broadcast %761 : vector<2x1xf32> to vector<2x16xf32>
    %763 = arith.cmpf oeq, %755, %762 : vector<2x16xf32>
    %c16_i32_323 = arith.constant 16 : i32
    %764 = vector.broadcast %c16_i32_323 : i32 to vector<2x16xi32>
    %765 = arith.select %763, %313, %764 : vector<2x16xi1>, vector<2x16xi32>
    %cst_324 = arith.constant dense<2147483647> : vector<2xi32>
    %766 = vector.multi_reduction <minsi>, %765, %cst_324 [1] : vector<2x16xi32> to vector<2xi32>
    %767 = vector.shape_cast %766 : vector<2xi32> to vector<2x1xi32>
    %768 = vector.broadcast %767 : vector<2x1xi32> to vector<2x16xi32>
    %769 = arith.cmpi eq, %313, %768 : vector<2x16xi32>
    %770 = arith.extui %769 : vector<2x16xi1> to vector<2x16xi32>
    %771 = arith.sitofp %770 : vector<2x16xi32> to vector<2x16xf32>
    %772 = arith.index_cast %c7_i32_304 : i32 to index
    %c0_325 = arith.constant 0 : index
    %c0_326 = arith.constant 0 : index
    %773 = vector.load %arg2[%772, %c0_325, %c0_326] : memref<8x1x1xf32, #tpu.memory_space<vmem>>, vector<1x1x1xf32>
    %774 = vector.shape_cast %773 : vector<1x1x1xf32> to vector<1x1xf32>
    %775 = arith.index_cast %c7_i32_304 : i32 to index
    %c0_327 = arith.constant 0 : index
    %c0_328 = arith.constant 0 : index
    %776 = vector.load %arg1[%775, %c0_327, %c0_328] : memref<8x2x16xf32, #tpu.memory_space<vmem>>, vector<1x2x16xf32>
    %777 = vector.shape_cast %776 : vector<1x2x16xf32> to vector<2x16xf32>
    %778 = vector.broadcast %774 : vector<1x1xf32> to vector<2x16xf32>
    %779 = arith.mulf %778, %777 : vector<2x16xf32>
    %cst_329 = arith.constant 1.000000e+00 : f32
    %780 = vector.broadcast %cst_329 : f32 to vector<1x1xf32>
    %781 = arith.subf %780, %774 : vector<1x1xf32>
    %782 = vector.broadcast %781 : vector<1x1xf32> to vector<2x16xf32>
    %783 = arith.mulf %782, %771 : vector<2x16xf32>
    %784 = arith.addf %779, %783 : vector<2x16xf32>
    %c7_i32_330 = arith.constant 7 : i32
    return
  }
}

</mosaic_0001>

<llo_original>
// kernel: tpu_custom_call.1
$region0: #{tpu_custom_call.1}
  #allocation0 [shape = 'u32[]', space=smem, size = 0x4, offset = 0x4, fixed_abs, tag = 'smem constant byte address 0x4 - core index']
  #allocation1 [shape = 'u32[144,128]{1,0:T(1,128)}', space=vmem, size = 0x12000, scoped, tag = 'internal scratch']
  #allocation2 [shape = 'f32[2,32]{1,0:T(2,128)}', space=vmem, size = 0x400, scoped, tag = 'scratch operand']
  #allocation3 [shape = 'f32[2,32]{1,0:T(2,128)}', space=vmem, size = 0x400, scoped, tag = 'scratch operand']
  %s0 = inlined_call_operand.hbm [shape: f32[8,2,32], index: 0, kind: input, shape index: {}]
  %s1 = inlined_call_operand.hbm [shape: f32[8,2,16], index: 1, kind: input, shape index: {}]
  %s2 = inlined_call_operand.vmem [shape: f32[8,1,1], index: 2, kind: input, shape index: {}]
  %s3 = inlined_call_operand.vmem [shape: f32[32,128], index: 3, kind: input, shape index: {}]
  %s4 = inlined_call_operand.vmem [shape: f32[32,128], index: 4, kind: input, shape index: {}]
  %s5 = inlined_call_operand.vmem [shape: f32[1,128], index: 5, kind: input, shape index: {}]
  %s6 = inlined_call_operand.hbm [shape: f32[16,32], index: 6, kind: input, shape index: {}]
  %s7 = inlined_call_operand.hbm [shape: f32[32,128], index: 7, kind: input, shape index: {}]
  %s8 = inlined_call_operand.hbm [shape: f32[32,128], index: 8, kind: input, shape index: {}]
  %s9 = inlined_call_operand.vmem [shape: f32[1,128], index: 9, kind: input, shape index: {}]
  %s10 = inlined_call_operand.vmem [shape: f32[32,16], index: 10, kind: input, shape index: {}]
  %s11 = inlined_call_operand.vmem [shape: f32[1,16], index: 11, kind: input, shape index: {}]
  %s12 = inlined_call_operand.hbm [shape: f32[8,2,16], index: 12, kind: output, shape index: {}]
  %s13 = sld [smem:[#allocation0]]
  $region78: #{tpu_custom_call.1} parent=0
    _
  %s15 = ssub.s32 1, %s13
  %s16 = scalar_select 0, %s15, %s13
  $region1: #{tpu_custom_call.1} parent=0
    #allocation4 [shape = 'u8[8192]{0}', space=vmem, size = 0x2000, scoped, tag = 'input window, operand 0, single buffered']
    #allocation5 [shape = 's32[1]{0}', space=sflag, size = 0x4, scoped, tag = 'scoped memory for tpu_custom_call.1']
    #allocation6 [shape = 's32[1]{0}', space=sflag, size = 0x4, scoped, tag = 'scoped memory for tpu_custom_call.1']
    #allocation7 [shape = 'u8[8192]{0}', space=vmem, size = 0x2000, scoped, tag = 'input window, operand 1, single buffered']
    #allocation8 [shape = 's32[1]{0}', space=sflag, size = 0x4, scoped, tag = 'scoped memory for tpu_custom_call.1']
    #allocation9 [shape = 'u8[8192]{0}', space=vmem, size = 0x2000, scoped, tag = 'input window, operand 6, single buffered']
    #allocation10 [shape = 'u8[16384]{0}', space=vmem, size = 0x4000, scoped, tag = 'input window, operand 7, single buffered']
    #allocation11 [shape = 's32[1]{0}', space=sflag, size = 0x4, scoped, tag = 'scoped memory for tpu_custom_call.1']
    #allocation12 [shape = 'u8[16384]{0}', space=vmem, size = 0x4000, scoped, tag = 'input window, operand 8, single buffered']
    #allocation13 [shape = 'u8[8192]{0}', space=vmem, size = 0x2000, scoped, tag = 'output window, operand 0, single buffered']
    %17 = vsyncpa [#allocation5], 0
    %18 = vsyncpa [#allocation8], 0
    %19 = vsyncpa [#allocation11], 0
    %20 = vsyncpa [#allocation6], 0
    // Predicated region
    $region2: #{tpu_custom_call.1} parent=1 // pred_check
      _
    $region3: #{tpu_custom_call.1} parent=1 // pred_check_branch
      %22 = sbr.rel (0) target = $region5
    $region4: #{tpu_custom_call.1} parent=1 // pred_region
      %s24 = ssub.s32 256, 256
      %25 = vsyncadd [#allocation5], %s24
      %s26 = sshll.u32 [#allocation4], 4
      %s27 = int_to_ptr.vmem [resolvable:$true] %s26
      %32 = dma.hbm_to_vmem [thread:$0]  %s0, 256, %s27, [#allocation5], 32, 32, 2
    $region5: #{tpu_custom_call.1} parent=1 // pred_fallthru
      _
    // Predicated region
    $region6: #{tpu_custom_call.1} parent=1 // pred_check
      _
    $region7: #{tpu_custom_call.1} parent=1 // pred_check_branch
      %34 = sbr.rel (0) target = $region9
    $region8: #{tpu_custom_call.1} parent=1 // pred_region
      %s36 = ssub.s32 256, 256
      %37 = vsyncadd [#allocation8], %s36
      %s38 = sshll.u32 [#allocation7], 4
      %s39 = int_to_ptr.vmem [resolvable:$true] %s38
      %44 = dma.hbm_to_vmem [thread:$0]  %s1, 256, %s39, [#allocation8], 32, 32, 2
    $region9: #{tpu_custom_call.1} parent=1 // pred_fallthru
      _
    // Predicated region
    $region10: #{tpu_custom_call.1} parent=1 // pred_check
      _
    $region11: #{tpu_custom_call.1} parent=1 // pred_check_branch
      %46 = sbr.rel (0) target = $region13
    $region12: #{tpu_custom_call.1} parent=1 // pred_region
      _
    $region13: #{tpu_custom_call.1} parent=1 // pred_fallthru
      _
    // Predicated region
    $region14: #{tpu_custom_call.1} parent=1 // pred_check
      _
    $region15: #{tpu_custom_call.1} parent=1 // pred_check_branch
      %48 = sbr.rel (0) target = $region17
    $region16: #{tpu_custom_call.1} parent=1 // pred_region
      _
    $region17: #{tpu_custom_call.1} parent=1 // pred_fallthru
      _
    // Predicated region
    $region18: #{tpu_custom_call.1} parent=1 // pred_check
      _
    $region19: #{tpu_custom_call.1} parent=1 // pred_check_branch
      %50 = sbr.rel (0) target = $region21
    $region20: #{tpu_custom_call.1} parent=1 // pred_region
      _
    $region21: #{tpu_custom_call.1} parent=1 // pred_fallthru
      _
    // Predicated region
    $region22: #{tpu_custom_call.1} parent=1 // pred_check
      _
    $region23: #{tpu_custom_call.1} parent=1 // pred_check_branch
      %52 = sbr.rel (0) target = $region25
    $region24: #{tpu_custom_call.1} parent=1 // pred_region
      _
    $region25: #{tpu_custom_call.1} parent=1 // pred_fallthru
      _
    // Predicated region
    $region26: #{tpu_custom_call.1} parent=1 // pred_check
      _
    $region27: #{tpu_custom_call.1} parent=1 // pred_check_branch
      %54 = sbr.rel (0) target = $region29
    $region28: #{tpu_custom_call.1} parent=1 // pred_region
      %s56 = ssub.s32 256, 256
      %57 = vsyncadd [#allocation8], %s56
      %s58 = sshll.u32 [#allocation9], 4
      %s59 = int_to_ptr.vmem [resolvable:$true] %s58
      %64 = dma.hbm_to_vmem [thread:$0]  %s6, 256, %s59, [#allocation8], 128, 128, 8
    $region29: #{tpu_custom_call.1} parent=1 // pred_fallthru
      _
    // Predicated region
    $region30: #{tpu_custom_call.1} parent=1 // pred_check
      _
    $region31: #{tpu_custom_call.1} parent=1 // pred_check_branch
      %66 = sbr.rel (0) target = $region33
    $region32: #{tpu_custom_call.1} parent=1 // pred_region
      %s68 = ssub.s32 512, 512
      %69 = vsyncadd [#allocation11], %s68
      %s70 = sshll.u32 [#allocation10], 4
      %s71 = int_to_ptr.vmem [resolvable:$true] %s70
      %76 = dma.hbm_to_vmem [thread:$0]  %s7, 512, %s71, [#allocation11], 128, 128, 8
    $region33: #{tpu_custom_call.1} parent=1 // pred_fallthru
      _
    // Predicated region
    $region34: #{tpu_custom_call.1} parent=1 // pred_check
      _
    $region35: #{tpu_custom_call.1} parent=1 // pred_check_branch
      %78 = sbr.rel (0) target = $region37
    $region36: #{tpu_custom_call.1} parent=1 // pred_region
      %s80 = ssub.s32 512, 512
      %81 = vsyncadd [#allocation11], %s80
      %s82 = sshll.u32 [#allocation12], 4
      %s83 = int_to_ptr.vmem [resolvable:$true] %s82
      %88 = dma.hbm_to_vmem [thread:$0]  %s8, 512, %s83, [#allocation11], 128, 128, 8
    $region37: #{tpu_custom_call.1} parent=1 // pred_fallthru
      _
    // Predicated region
    $region38: #{tpu_custom_call.1} parent=1 // pred_check
      _
    $region39: #{tpu_custom_call.1} parent=1 // pred_check_branch
      %90 = sbr.rel (0) target = $region41
    $region40: #{tpu_custom_call.1} parent=1 // pred_region
      _
    $region41: #{tpu_custom_call.1} parent=1 // pred_fallthru
      _
    // Predicated region
    $region42: #{tpu_custom_call.1} parent=1 // pred_check
      _
    $region43: #{tpu_custom_call.1} parent=1 // pred_check_branch
      %92 = sbr.rel (0) target = $region45
    $region44: #{tpu_custom_call.1} parent=1 // pred_region
      _
    $region45: #{tpu_custom_call.1} parent=1 // pred_fallthru
      _
    // Predicated region
    $region46: #{tpu_custom_call.1} parent=1 // pred_check
      _
    $region47: #{tpu_custom_call.1} parent=1 // pred_check_branch
      %94 = sbr.rel (0) target = $region49
    $region48: #{tpu_custom_call.1} parent=1 // pred_region
      _
    $region49: #{tpu_custom_call.1} parent=1 // pred_fallthru
      _
    // Predicated region
    $region50: #{tpu_custom_call.1} parent=1 // pred_check
      _
    $region51: #{tpu_custom_call.1} parent=1 // pred_check_branch
      %96 = sbr.rel (0) target = $region53
    $region52: #{tpu_custom_call.1} parent=1 // pred_region
      %97 = dma.done [#allocation5], 256
    $region53: #{tpu_custom_call.1} parent=1 // pred_fallthru
      _
    // Predicated region
    $region54: #{tpu_custom_call.1} parent=1 // pred_check
      _
    $region55: #{tpu_custom_call.1} parent=1 // pred_check_branch
      %99 = sbr.rel (0) target = $region57
    $region56: #{tpu_custom_call.1} parent=1 // pred_region
      %100 = dma.done [#allocation8], 256
    $region57: #{tpu_custom_call.1} parent=1 // pred_fallthru
      _
    // Predicated region
    $region58: #{tpu_custom_call.1} parent=1 // pred_check
      _
    $region59: #{tpu_custom_call.1} parent=1 // pred_check_branch
      %102 = sbr.rel (0) target = $region61
    $region60: #{tpu_custom_call.1} parent=1 // pred_region
      %103 = dma.done [#allocation8], 256
    $region61: #{tpu_custom_call.1} parent=1 // pred_fallthru
      _
    // Predicated region
    $region62: #{tpu_custom_call.1} parent=1 // pred_check
      _
    $region63: #{tpu_custom_call.1} parent=1 // pred_check_branch
      %105 = sbr.rel (0) target = $region65
    $region64: #{tpu_custom_call.1} parent=1 // pred_region
      %106 = dma.done [#allocation11], 512
    $region65: #{tpu_custom_call.1} parent=1 // pred_fallthru
      _
    // Predicated region
    $region66: #{tpu_custom_call.1} parent=1 // pred_check
      _
    $region67: #{tpu_custom_call.1} parent=1 // pred_check_branch
      %108 = sbr.rel (0) target = $region69
    $region68: #{tpu_custom_call.1} parent=1 // pred_region
      %109 = dma.done [#allocation11], 512
    $region69: #{tpu_custom_call.1} parent=1 // pred_fallthru
      _
    %vm110 = vcmask 254976
    %111 = vst.msk [vmem:[#allocation2] sm:$0x3] %vm110, 0.0
    %112 = vst.msk [vmem:[#allocation3] sm:$0x3] %vm110, 0.0
    %v113 = vld [vmem:[%s3] sm:$0xff]
    %v114 = vld [vmem:[%s3 + $0x8] sm:$0xff]
    %v115 = vld [vmem:[%s3 + $0x10] sm:$0xff]
    %v116 = vld [vmem:[%s3 + $0x18] sm:$0xff]
    %v117 = vld [vmem:[%s4] sm:$0xff]
    %v118 = vld [vmem:[%s4 + $0x8] sm:$0xff]
    %v119 = vld [vmem:[%s4 + $0x10] sm:$0xff]
    %v120 = vld [vmem:[%s4 + $0x18] sm:$0xff]
    %v121 = vld [vmem:[%s5] sm:$0x1]
    %v122 = vld [vmem:[#allocation4] sm:$0x3]
    %v123 = vld [vmem:[#allocation2] sm:$0x3]
    %v124 = vld [vmem:[#allocation3] sm:$0x3]
    %vm125 = vcmask 261120
    %v127 = vsel %vm125, %v123, 0
    %129 = vmatprep.subr.mxu0 0.0
    %130 = vmatpush1.msra.mxu0 0.0
    %131 = vmatprep.subr.mxu0 0.0
    %132 = vmatpush1.msra.mxu0 0.0
    %133 = vmatprep.subr.mxu0 0.0
    %134 = vmatpush1.msra.mxu0 0.0
    %135 = vmatprep.subr.mxu0 0.0
    %136 = vmatpush1.msra.mxu0 0.0
    %137 = vmatprep.subr.mxu0 0.0
    %138 = vmatpush1.msra.mxu0 0.0
    %139 = vmatprep.subr.mxu0 0.0
    %140 = vmatpush1.msra.mxu0 0.0
    %141 = vmatprep.subr.mxu0 0.0
    %142 = vmatpush1.msra.mxu0 0.0
    %143 = vmatprep.subr.mxu0 0.0
    %144 = vmatpush1.msra.mxu0 0.0
    %145 = vmatprep.subr.mxu0 0.0
    %146 = vmatpush1.msra.mxu0 0.0
    %147 = vmatprep.subr.mxu0 0.0
    %148 = vmatpush1.msra.mxu0 0.0
    %149 = vmatprep.subr.mxu0 0.0
    %150 = vmatpush1.msra.mxu0 0.0
    %151 = vmatprep.subr.mxu0 0.0
    %152 = vmatpush1.msra.mxu0 0.0
    %153 = vmatprep.subr.mxu0 0.0
    %154 = vmatpush1.msra.mxu0 %v120
    %155 = vmatprep.subr.mxu0 0.0
    %156 = vmatpush1.msra.mxu0 %v119
    %157 = vmatprep.subr.mxu0 0.0
    %158 = vmatpush1.msra.mxu0 %v118
    %159 = vmatprep.subr.mxu0 0.0
    %160 = vmatpush1.msra.mxu0 %v117
    %161 = vmatprep.subr.mxu0 0.0
    %162 = vmatpush2.msra.mxu0 0.0
    %163 = vmatprep.subr.mxu0 0.0
    %164 = vmatpush2.msra.mxu0 0.0
    %165 = vmatprep.subr.mxu0 0.0
    %166 = vmatpush2.msra.mxu0 0.0
    %167 = vmatprep.subr.mxu0 0.0
    %168 = vmatpush2.msra.mxu0 0.0
    %169 = vmatprep.subr.mxu0 0.0
    %170 = vmatpush2.msra.mxu0 0.0
    %171 = vmatprep.subr.mxu0 0.0
    %172 = vmatpush2.msra.mxu0 0.0
    %173 = vmatprep.subr.mxu0 0.0
    %174 = vmatpush2.msra.mxu0 0.0
    %175 = vmatprep.subr.mxu0 0.0
    %176 = vmatpush2.msra.mxu0 0.0
    %177 = vmatprep.subr.mxu0 0.0
    %178 = vmatpush2.msra.mxu0 0.0
    %179 = vmatprep.subr.mxu0 0.0
    %180 = vmatpush2.msra.mxu0 0.0
    %181 = vmatprep.subr.mxu0 0.0
    %182 = vmatpush2.msra.mxu0 0.0
    %183 = vmatprep.subr.mxu0 0.0
    %184 = vmatpush2.msra.mxu0 0.0
    %185 = vmatprep.subr.mxu0 0.0
    %186 = vmatpush2.msra.mxu0 0.0
    %187 = vmatprep.subr.mxu0 0.0
    %188 = vmatpush2.msra.mxu0 0.0
    %189 = vmatprep.subr.mxu0 0.0
    %190 = vmatpush2.msra.mxu0 0.0
    %191 = vmatprep.subr.mxu0 0.0
    %192 = vmatpush2.msra.mxu0 0.0
    %193 = vmatprep.mubr.f32.mxu0 0.0
    %194 = vmatmul.mubr.f32.gmra.mxu0 %v127
    %v195 = vpop.f32.mrf.mxu0
    %v196 = vadd.f32 0.0, %v195
    %v197 = vpop.f32.mrf.mxu0
    %198 = vdwg.mxu0
    %v200 = vsel %vm125, %v122, 0
    %202 = vmatprep.subr.mxu0 0.0
    %203 = vmatpush1.msra.mxu0 0.0
    %204 = vmatprep.subr.mxu0 0.0
    %205 = vmatpush1.msra.mxu0 0.0
    %206 = vmatprep.subr.mxu0 0.0
    %207 = vmatpush1.msra.mxu0 0.0
    %208 = vmatprep.subr.mxu0 0.0
    %209 = vmatpush1.msra.mxu0 0.0
    %210 = vmatprep.subr.mxu0 0.0
    %211 = vmatpush1.msra.mxu0 0.0
    %212 = vmatprep.subr.mxu0 0.0
    %213 = vmatpush1.msra.mxu0 0.0
    %214 = vmatprep.subr.mxu0 0.0
    %215 = vmatpush1.msra.mxu0 0.0
    %216 = vmatprep.subr.mxu0 0.0
    %217 = vmatpush1.msra.mxu0 0.0
    %218 = vmatprep.subr.mxu0 0.0
    %219 = vmatpush1.msra.mxu0 0.0
    %220 = vmatprep.subr.mxu0 0.0
    %221 = vmatpush1.msra.mxu0 0.0
    %222 = vmatprep.subr.mxu0 0.0
    %223 = vmatpush1.msra.mxu0 0.0
    %224 = vmatprep.subr.mxu0 0.0
    %225 = vmatpush1.msra.mxu0 0.0
    %226 = vmatprep.subr.mxu0 0.0
    %227 = vmatpush1.msra.mxu0 %v116
    %228 = vmatprep.subr.mxu0 0.0
    %229 = vmatpush1.msra.mxu0 %v115
    %230 = vmatprep.subr.mxu0 0.0
    %231 = vmatpush1.msra.mxu0 %v114
    %232 = vmatprep.subr.mxu0 0.0
    %233 = vmatpush1.msra.mxu0 %v113
    %234 = vmatprep.subr.mxu0 0.0
    %235 = vmatpush2.msra.mxu0 0.0
    %236 = vmatprep.subr.mxu0 0.0
    %237 = vmatpush2.msra.mxu0 0.0
    %238 = vmatprep.subr.mxu0 0.0
    %239 = vmatpush2.msra.mxu0 0.0
    %240 = vmatprep.subr.mxu0 0.0
    %241 = vmatpush2.msra.mxu0 0.0
    %242 = vmatprep.subr.mxu0 0.0
    %243 = vmatpush2.msra.mxu0 0.0
    %244 = vmatprep.subr.mxu0 0.0
    %245 = vmatpush2.msra.mxu0 0.0
    %246 = vmatprep.subr.mxu0 0.0
    %247 = vmatpush2.msra.mxu0 0.0
    %248 = vmatprep.subr.mxu0 0.0
    %249 = vmatpush2.msra.mxu0 0.0
    %250 = vmatprep.subr.mxu0 0.0
    %251 = vmatpush2.msra.mxu0 0.0
    %252 = vmatprep.subr.mxu0 0.0
    %253 = vmatpush2.msra.mxu0 0.0
    %254 = vmatprep.subr.mxu0 0.0
    %255 = vmatpush2.msra.mxu0 0.0
    %256 = vmatprep.subr.mxu0 0.0
    %257 = vmatpush2.msra.mxu0 0.0
    %258 = vmatprep.subr.mxu0 0.0
    %259 = vmatpush2.msra.mxu0 0.0
    %260 = vmatprep.subr.mxu0 0.0
    %261 = vmatpush2.msra.mxu0 0.0
    %262 = vmatprep.subr.mxu0 0.0
    %263 = vmatpush2.msra.mxu0 0.0
    %264 = vmatprep.subr.mxu0 0.0
    %265 = vmatpush2.msra.mxu0 0.0
    %266 = vmatprep.mubr.f32.mxu0 0.0
    %267 = vmatmul.mubr.f32.gmra.mxu0 %v200
    %v268 = vpop.f32.mrf.mxu0
    %v269 = vadd.f32 %v196, %v268
    %v270 = vpop.f32.mrf.mxu0
    %271 = vdwg.mxu0
    %v273 = vlaneseq
    %v274 = vshrl.u32 %v273, 7
    %v275 = vsub.s32 0, %v274
    %v276 = vrot.slane %v121, %v275
    %v278 = vadd.f32 %v269, %v276
    %v279 = vxor.u32 %v278, 2147483648
    %v280 = vmul.f32 %v279, 1.442695
    %v281 = vpow.pop %v280
    %v282 = vadd.f32 %v281, 1.0
    %v283 = vrcp.pop %v282
    %v284 = vmul.f32 1.0, %v283
    %v285 = vtanh.pop %v278
    %287 = vrot.lane.b32.xlu0 %v124, 32
    %v288 = vpop.permute.xlu0 %287
    %v290 = vmul.f32 %v284, %v288
    %292 = vrot.lane.b32.xlu0 %v285, 64
    %v293 = vpop.permute.xlu0 %292
    %v295 = vmul.f32 %v284, %v293
    %297 = vrot.lane.b32.xlu0 %v295, 32
    %v298 = vpop.permute.xlu0 %297
    %v300 = vadd.f32 %v290, %v298
    %v301 = vtanh.pop %v300
    %303 = vrot.lane.b32.xlu0 %v301, 64
    %v304 = vpop.permute.xlu0 %303
    %v306 = vmul.f32 %v284, %v304
    %308 = vrot.lane.b32.xlu0 %v306, 32
    %v309 = vpop.permute.xlu0 %308
    %311 = vst.msk [vmem:[#allocation2] sm:$0x3] %vm110, %v309
    %313 = vrot.lane.b32.xlu0 %v300, 96
    %v314 = vpop.permute.xlu0 %313
    %316 = vst.msk [vmem:[#allocation3] sm:$0x3] %vm110, %v314
    %s317 = scalar_lea.vmem [#allocation4], 2
    %v318 = vld [vmem:[%s317] sm:$0x3]
    %v319 = vld [vmem:[#allocation2] sm:$0x3]
    %v320 = vld [vmem:[#allocation3] sm:$0x3]
    %v322 = vsel %vm125, %v319, 0
    %324 = vmatprep.subr.mxu0 0.0
    %325 = vmatpush1.msra.mxu0 0.0
    %326 = vmatprep.subr.mxu0 0.0
    %327 = vmatpush1.msra.mxu0 0.0
    %328 = vmatprep.subr.mxu0 0.0
    %329 = vmatpush1.msra.mxu0 0.0
    %330 = vmatprep.subr.mxu0 0.0
    %331 = vmatpush1.msra.mxu0 0.0
    %332 = vmatprep.subr.mxu0 0.0
    %333 = vmatpush1.msra.mxu0 0.0
    %334 = vmatprep.subr.mxu0 0.0
    %335 = vmatpush1.msra.mxu0 0.0
    %336 = vmatprep.subr.mxu0 0.0
    %337 = vmatpush1.msra.mxu0 0.0
    %338 = vmatprep.subr.mxu0 0.0
    %339 = vmatpush1.msra.mxu0 0.0
    %340 = vmatprep.subr.mxu0 0.0
    %341 = vmatpush1.msra.mxu0 0.0
    %342 = vmatprep.subr.mxu0 0.0
    %343 = vmatpush1.msra.mxu0 0.0
    %344 = vmatprep.subr.mxu0 0.0
    %345 = vmatpush1.msra.mxu0 0.0
    %346 = vmatprep.subr.mxu0 0.0
    %347 = vmatpush1.msra.mxu0 0.0
    %348 = vmatprep.subr.mxu0 0.0
    %349 = vmatpush1.msra.mxu0 %v120
    %350 = vmatprep.subr.mxu0 0.0
    %351 = vmatpush1.msra.mxu0 %v119
    %352 = vmatprep.subr.mxu0 0.0
    %353 = vmatpush1.msra.mxu0 %v118
    %354 = vmatprep.subr.mxu0 0.0
    %355 = vmatpush1.msra.mxu0 %v117
    %356 = vmatprep.subr.mxu0 0.0
    %357 = vmatpush2.msra.mxu0 0.0
    %358 = vmatprep.subr.mxu0 0.0
    %359 = vmatpush2.msra.mxu0 0.0
    %360 = vmatprep.subr.mxu0 0.0
    %361 = vmatpush2.msra.mxu0 0.0
    %362 = vmatprep.subr.mxu0 0.0
    %363 = vmatpush2.msra.mxu0 0.0
    %364 = vmatprep.subr.mxu0 0.0
    %365 = vmatpush2.msra.mxu0 0.0
    %366 = vmatprep.subr.mxu0 0.0
    %367 = vmatpush2.msra.mxu0 0.0
    %368 = vmatprep.subr.mxu0 0.0
    %369 = vmatpush2.msra.mxu0 0.0
    %370 = vmatprep.subr.mxu0 0.0
    %371 = vmatpush2.msra.mxu0 0.0
    %372 = vmatprep.subr.mxu0 0.0
    %373 = vmatpush2.msra.mxu0 0.0
    %374 = vmatprep.subr.mxu0 0.0
    %375 = vmatpush2.msra.mxu0 0.0
    %376 = vmatprep.subr.mxu0 0.0
    %377 = vmatpush2.msra.mxu0 0.0
    %378 = vmatprep.subr.mxu0 0.0
    %379 = vmatpush2.msra.mxu0 0.0
    %380 = vmatprep.subr.mxu0 0.0
    %381 = vmatpush2.msra.mxu0 0.0
    %382 = vmatprep.subr.mxu0 0.0
    %383 = vmatpush2.msra.mxu0 0.0
    %384 = vmatprep.subr.mxu0 0.0
    %385 = vmatpush2.msra.mxu0 0.0
    %386 = vmatprep.subr.mxu0 0.0
    %387 = vmatpush2.msra.mxu0 0.0
    %388 = vmatprep.mubr.f32.mxu0 0.0
    %389 = vmatmul.mubr.f32.gmra.mxu0 %v322
    %v390 = vpop.f32.mrf.mxu0
    %v391 = vadd.f32 0.0, %v390
    %v392 = vpop.f32.mrf.mxu0
    %393 = vdwg.mxu0
    %v395 = vsel %vm125, %v318, 0
    %397 = vmatprep.subr.mxu0 0.0
    %398 = vmatpush1.msra.mxu0 0.0
    %399 = vmatprep.subr.mxu0 0.0
    %400 = vmatpush1.msra.mxu0 0.0
    %401 = vmatprep.subr.mxu0 0.0
    %402 = vmatpush1.msra.mxu0 0.0
    %403 = vmatprep.subr.mxu0 0.0
    %404 = vmatpush1.msra.mxu0 0.0
    %405 = vmatprep.subr.mxu0 0.0
    %406 = vmatpush1.msra.mxu0 0.0
    %407 = vmatprep.subr.mxu0 0.0
    %408 = vmatpush1.msra.mxu0 0.0
    %409 = vmatprep.subr.mxu0 0.0
    %410 = vmatpush1.msra.mxu0 0.0
    %411 = vmatprep.subr.mxu0 0.0
    %412 = vmatpush1.msra.mxu0 0.0
    %413 = vmatprep.subr.mxu0 0.0
    %414 = vmatpush1.msra.mxu0 0.0
    %415 = vmatprep.subr.mxu0 0.0
    %416 = vmatpush1.msra.mxu0 0.0
    %417 = vmatprep.subr.mxu0 0.0
    %418 = vmatpush1.msra.mxu0 0.0
    %419 = vmatprep.subr.mxu0 0.0
    %420 = vmatpush1.msra.mxu0 0.0
    %421 = vmatprep.subr.mxu0 0.0
    %422 = vmatpush1.msra.mxu0 %v116
    %423 = vmatprep.subr.mxu0 0.0
    %424 = vmatpush1.msra.mxu0 %v115
    %425 = vmatprep.subr.mxu0 0.0
    %426 = vmatpush1.msra.mxu0 %v114
    %427 = vmatprep.subr.mxu0 0.0
    %428 = vmatpush1.msra.mxu0 %v113
    %429 = vmatprep.subr.mxu0 0.0
    %430 = vmatpush2.msra.mxu0 0.0
    %431 = vmatprep.subr.mxu0 0.0
    %432 = vmatpush2.msra.mxu0 0.0
    %433 = vmatprep.subr.mxu0 0.0
    %434 = vmatpush2.msra.mxu0 0.0
    %435 = vmatprep.subr.mxu0 0.0
    %436 = vmatpush2.msra.mxu0 0.0
    %437 = vmatprep.subr.mxu0 0.0
    %438 = vmatpush2.msra.mxu0 0.0
    %439 = vmatprep.subr.mxu0 0.0
    %440 = vmatpush2.msra.mxu0 0.0
    %441 = vmatprep.subr.mxu0 0.0
    %442 = vmatpush2.msra.mxu0 0.0
    %443 = vmatprep.subr.mxu0 0.0
    %444 = vmatpush2.msra.mxu0 0.0
    %445 = vmatprep.subr.mxu0 0.0
    %446 = vmatpush2.msra.mxu0 0.0
    %447 = vmatprep.subr.mxu0 0.0
    %448 = vmatpush2.msra.mxu0 0.0
    %449 = vmatprep.subr.mxu0 0.0
    %450 = vmatpush2.msra.mxu0 0.0
    %451 = vmatprep.subr.mxu0 0.0
    %452 = vmatpush2.msra.mxu0 0.0
    %453 = vmatprep.subr.mxu0 0.0
    %454 = vmatpush2.msra.mxu0 0.0
    %455 = vmatprep.subr.mxu0 0.0
    %456 = vmatpush2.msra.mxu0 0.0
    %457 = vmatprep.subr.mxu0 0.0
    %458 = vmatpush2.msra.mxu0 0.0
    %459 = vmatprep.subr.mxu0 0.0
    %460 = vmatpush2.msra.mxu0 0.0
    %461 = vmatprep.mubr.f32.mxu0 0.0
    %462 = vmatmul.mubr.f32.gmra.mxu0 %v395
    %v463 = vpop.f32.mrf.mxu0
    %v464 = vadd.f32 %v391, %v463
    %v465 = vpop.f32.mrf.mxu0
    %466 = vdwg.mxu0
    %v467 = vadd.f32 %v464, %v276
    %v468 = vxor.u32 %v467, 2147483648
    %v469 = vmul.f32 %v468, 1.442695
    %v470 = vpow.pop %v469
    %v471 = vadd.f32 %v470, 1.0
    %v472 = vrcp.pop %v471
    %v473 = vmul.f32 1.0, %v472
    %v474 = vtanh.pop %v467
    %476 = vrot.lane.b32.xlu0 %v320, 32
    %v477 = vpop.permute.xlu0 %476
    %v479 = vmul.f32 %v473, %v477
    %481 = vrot.lane.b32.xlu0 %v474, 64
    %v482 = vpop.permute.xlu0 %481
    %v484 = vmul.f32 %v473, %v482
    %486 = vrot.lane.b32.xlu0 %v484, 32
    %v487 = vpop.permute.xlu0 %486
    %v489 = vadd.f32 %v479, %v487
    %v490 = vtanh.pop %v489
    %492 = vrot.lane.b32.xlu0 %v490, 64
    %v493 = vpop.permute.xlu0 %492
    %v495 = vmul.f32 %v473, %v493
    %497 = vrot.lane.b32.xlu0 %v495, 32
    %v498 = vpop.permute.xlu0 %497
    %500 = vst.msk [vmem:[#allocation2] sm:$0x3] %vm110, %v498
    %502 = vrot.lane.b32.xlu0 %v489, 96
    %v503 = vpop.permute.xlu0 %502
    %505 = vst.msk [vmem:[#allocation3] sm:$0x3] %vm110, %v503
    %s506 = scalar_lea.vmem [#allocation4], 4
    %v507 = vld [vmem:[%s506] sm:$0x3]
    %v508 = vld [vmem:[#allocation2] sm:$0x3]
    %v509 = vld [vmem:[#allocation3] sm:$0x3]
    %v511 = vsel %vm125, %v508, 0
    %513 = vmatprep.subr.mxu0 0.0
    %514 = vmatpush1.msra.mxu0 0.0
    %515 = vmatprep.subr.mxu0 0.0
    %516 = vmatpush1.msra.mxu0 0.0
    %517 = vmatprep.subr.mxu0 0.0
    %518 = vmatpush1.msra.mxu0 0.0
    %519 = vmatprep.subr.mxu0 0.0
    %520 = vmatpush1.msra.mxu0 0.0
    %521 = vmatprep.subr.mxu0 0.0
    %522 = vmatpush1.msra.mxu0 0.0
    %523 = vmatprep.subr.mxu0 0.0
    %524 = vmatpush1.msra.mxu0 0.0
    %525 = vmatprep.subr.mxu0 0.0
    %526 = vmatpush1.msra.mxu0 0.0
    %527 = vmatprep.subr.mxu0 0.0
    %528 = vmatpush1.msra.mxu0 0.0
    %529 = vmatprep.subr.mxu0 0.0
    %530 = vmatpush1.msra.mxu0 0.0
    %531 = vmatprep.subr.mxu0 0.0
    %532 = vmatpush1.msra.mxu0 0.0
    %533 = vmatprep.subr.mxu0 0.0
    %534 = vmatpush1.msra.mxu0 0.0
    %535 = vmatprep.subr.mxu0 0.0
    %536 = vmatpush1.msra.mxu0 0.0
    %537 = vmatprep.subr.mxu0 0.0
    %538 = vmatpush1.msra.mxu0 %v120
    %539 = vmatprep.subr.mxu0 0.0
    %540 = vmatpush1.msra.mxu0 %v119
    %541 = vmatprep.subr.mxu0 0.0
    %542 = vmatpush1.msra.mxu0 %v118
    %543 = vmatprep.subr.mxu0 0.0
    %544 = vmatpush1.msra.mxu0 %v117
    %545 = vmatprep.subr.mxu0 0.0
    %546 = vmatpush2.msra.mxu0 0.0
    %547 = vmatprep.subr.mxu0 0.0
    %548 = vmatpush2.msra.mxu0 0.0
    %549 = vmatprep.subr.mxu0 0.0
    %550 = vmatpush2.msra.mxu0 0.0
    %551 = vmatprep.subr.mxu0 0.0
    %552 = vmatpush2.msra.mxu0 0.0
    %553 = vmatprep.subr.mxu0 0.0
    %554 = vmatpush2.msra.mxu0 0.0
    %555 = vmatprep.subr.mxu0 0.0
    %556 = vmatpush2.msra.mxu0 0.0
    %557 = vmatprep.subr.mxu0 0.0
    %558 = vmatpush2.msra.mxu0 0.0
    %559 = vmatprep.subr.mxu0 0.0
    %560 = vmatpush2.msra.mxu0 0.0
    %561 = vmatprep.subr.mxu0 0.0
    %562 = vmatpush2.msra.mxu0 0.0
    %563 = vmatprep.subr.mxu0 0.0
    %564 = vmatpush2.msra.mxu0 0.0
    %565 = vmatprep.subr.mxu0 0.0
    %566 = vmatpush2.msra.mxu0 0.0
    %567 = vmatprep.subr.mxu0 0.0
    %568 = vmatpush2.msra.mxu0 0.0
    %569 = vmatprep.subr.mxu0 0.0
    %570 = vmatpush2.msra.mxu0 0.0
    %571 = vmatprep.subr.mxu0 0.0
    %572 = vmatpush2.msra.mxu0 0.0
    %573 = vmatprep.subr.mxu0 0.0
    %574 = vmatpush2.msra.mxu0 0.0
    %575 = vmatprep.subr.mxu0 0.0
    %576 = vmatpush2.msra.mxu0 0.0
    %577 = vmatprep.mubr.f32.mxu0 0.0
    %578 = vmatmul.mubr.f32.gmra.mxu0 %v511
    %v579 = vpop.f32.mrf.mxu0
    %v580 = vadd.f32 0.0, %v579
    %v581 = vpop.f32.mrf.mxu0
    %582 = vdwg.mxu0
    %v584 = vsel %vm125, %v507, 0
    %586 = vmatprep.subr.mxu0 0.0
    %587 = vmatpush1.msra.mxu0 0.0
    %588 = vmatprep.subr.mxu0 0.0
    %589 = vmatpush1.msra.mxu0 0.0
    %590 = vmatprep.subr.mxu0 0.0
    %591 = vmatpush1.msra.mxu0 0.0
    %592 = vmatprep.subr.mxu0 0.0
    %593 = vmatpush1.msra.mxu0 0.0
    %594 = vmatprep.subr.mxu0 0.0
    %595 = vmatpush1.msra.mxu0 0.0
    %596 = vmatprep.subr.mxu0 0.0
    %597 = vmatpush1.msra.mxu0 0.0
    %598 = vmatprep.subr.mxu0 0.0
    %599 = vmatpush1.msra.mxu0 0.0
    %600 = vmatprep.subr.mxu0 0.0
    %601 = vmatpush1.msra.mxu0 0.0
    %602 = vmatprep.subr.mxu0 0.0
    %603 = vmatpush1.msra.mxu0 0.0
    %604 = vmatprep.subr.mxu0 0.0
    %605 = vmatpush1.msra.mxu0 0.0
    %606 = vmatprep.subr.mxu0 0.0
    %607 = vmatpush1.msra.mxu0 0.0
    %608 = vmatprep.subr.mxu0 0.0
    %609 = vmatpush1.msra.mxu0 0.0
    %610 = vmatprep.subr.mxu0 0.0
    %611 = vmatpush1.msra.mxu0 %v116
    %612 = vmatprep.subr.mxu0 0.0
    %613 = vmatpush1.msra.mxu0 %v115
    %614 = vmatprep.subr.mxu0 0.0
    %615 = vmatpush1.msra.mxu0 %v114
    %616 = vmatprep.subr.mxu0 0.0
    %617 = vmatpush1.msra.mxu0 %v113
    %618 = vmatprep.subr.mxu0 0.0
    %619 = vmatpush2.msra.mxu0 0.0
    %620 = vmatprep.subr.mxu0 0.0
    %621 = vmatpush2.msra.mxu0 0.0
    %622 = vmatprep.subr.mxu0 0.0
    %623 = vmatpush2.msra.mxu0 0.0
    %624 = vmatprep.subr.mxu0 0.0
    %625 = vmatpush2.msra.mxu0 0.0
    %626 = vmatprep.subr.mxu0 0.0
    %627 = vmatpush2.msra.mxu0 0.0
    %628 = vmatprep.subr.mxu0 0.0
    %629 = vmatpush2.msra.mxu0 0.0
    %630 = vmatprep.subr.mxu0 0.0
    %631 = vmatpush2.msra.mxu0 0.0
    %632 = vmatprep.subr.mxu0 0.0
    %633 = vmatpush2.msra.mxu0 0.0
    %634 = vmatprep.subr.mxu0 0.0
    %635 = vmatpush2.msra.mxu0 0.0
    %636 = vmatprep.subr.mxu0 0.0
    %637 = vmatpush2.msra.mxu0 0.0
    %638 = vmatprep.subr.mxu0 0.0
    %639 = vmatpush2.msra.mxu0 0.0
    %640 = vmatprep.subr.mxu0 0.0
    %641 = vmatpush2.msra.mxu0 0.0
    %642 = vmatprep.subr.mxu0 0.0
    %643 = vmatpush2.msra.mxu0 0.0
    %644 = vmatprep.subr.mxu0 0.0
    %645 = vmatpush2.msra.mxu0 0.0
    %646 = vmatprep.subr.mxu0 0.0
    %647 = vmatpush2.msra.mxu0 0.0
    %648 = vmatprep.subr.mxu0 0.0
    %649 = vmatpush2.msra.mxu0 0.0
    %650 = vmatprep.mubr.f32.mxu0 0.0
    %651 = vmatmul.mubr.f32.gmra.mxu0 %v584
    %v652 = vpop.f32.mrf.mxu0
    %v653 = vadd.f32 %v580, %v652
    %v654 = vpop.f32.mrf.mxu0
    %655 = vdwg.mxu0
    %v656 = vadd.f32 %v653, %v276
    %v657 = vxor.u32 %v656, 2147483648
    %v658 = vmul.f32 %v657, 1.442695
    %v659 = vpow.pop %v658
    %v660 = vadd.f32 %v659, 1.0
    %v661 = vrcp.pop %v660
    %v662 = vmul.f32 1.0, %v661
    %v663 = vtanh.pop %v656
    %665 = vrot.lane.b32.xlu0 %v509, 32
    %v666 = vpop.permute.xlu0 %665
    %v668 = vmul.f32 %v662, %v666
    %670 = vrot.lane.b32.xlu0 %v663, 64
    %v671 = vpop.permute.xlu0 %670
    %v673 = vmul.f32 %v662, %v671
    %675 = vrot.lane.b32.xlu0 %v673, 32
    %v676 = vpop.permute.xlu0 %675
    %v678 = vadd.f32 %v668, %v676
    %v679 = vtanh.pop %v678
    %681 = vrot.lane.b32.xlu0 %v679, 64
    %v682 = vpop.permute.xlu0 %681
    %v684 = vmul.f32 %v662, %v682
    %686 = vrot.lane.b32.xlu0 %v684, 32
    %v687 = vpop.permute.xlu0 %686
    %689 = vst.msk [vmem:[#allocation2] sm:$0x3] %vm110, %v687
    %691 = vrot.lane.b32.xlu0 %v678, 96
    %v692 = vpop.permute.xlu0 %691
    %694 = vst.msk [vmem:[#allocation3] sm:$0x3] %vm110, %v692
    %s695 = scalar_lea.vmem [#allocation4], 6
    %v696 = vld [vmem:[%s695] sm:$0x3]
    %v697 = vld [vmem:[#allocation2] sm:$0x3]
    %v698 = vld [vmem:[#allocation3] sm:$0x3]
    %v700 = vsel %vm125, %v697, 0
    %702 = vmatprep.subr.mxu0 0.0
    %703 = vmatpush1.msra.mxu0 0.0
    %704 = vmatprep.subr.mxu0 0.0
    %705 = vmatpush1.msra.mxu0 0.0
    %706 = vmatprep.subr.mxu0 0.0
    %707 = vmatpush1.msra.mxu0 0.0
    %708 = vmatprep.subr.mxu0 0.0
    %709 = vmatpush1.msra.mxu0 0.0
    %710 = vmatprep.subr.mxu0 0.0
    %711 = vmatpush1.msra.mxu0 0.0
    %712 = vmatprep.subr.mxu0 0.0
    %713 = vmatpush1.msra.mxu0 0.0
    %714 = vmatprep.subr.mxu0 0.0
    %715 = vmatpush1.msra.mxu0 0.0
    %716 = vmatprep.subr.mxu0 0.0
    %717 = vmatpush1.msra.mxu0 0.0
    %718 = vmatprep.subr.mxu0 0.0
    %719 = vmatpush1.msra.mxu0 0.0
    %720 = vmatprep.subr.mxu0 0.0
    %721 = vmatpush1.msra.mxu0 0.0
    %722 = vmatprep.subr.mxu0 0.0
    %723 = vmatpush1.msra.mxu0 0.0
    %724 = vmatprep.subr.mxu0 0.0
    %725 = vmatpush1.msra.mxu0 0.0
    %726 = vmatprep.subr.mxu0 0.0
    %727 = vmatpush1.msra.mxu0 %v120
    %728 = vmatprep.subr.mxu0 0.0
    %729 = vmatpush1.msra.mxu0 %v119
    %730 = vmatprep.subr.mxu0 0.0
    %731 = vmatpush1.msra.mxu0 %v118
    %732 = vmatprep.subr.mxu0 0.0
    %733 = vmatpush1.msra.mxu0 %v117
    %734 = vmatprep.subr.mxu0 0.0
    %735 = vmatpush2.msra.mxu0 0.0
    %736 = vmatprep.subr.mxu0 0.0
    %737 = vmatpush2.msra.mxu0 0.0
    %738 = vmatprep.subr.mxu0 0.0
    %739 = vmatpush2.msra.mxu0 0.0
    %740 = vmatprep.subr.mxu0 0.0
    %741 = vmatpush2.msra.mxu0 0.0
    %742 = vmatprep.subr.mxu0 0.0
    %743 = vmatpush2.msra.mxu0 0.0
    %744 = vmatprep.subr.mxu0 0.0
    %745 = vmatpush2.msra.mxu0 0.0
    %746 = vmatprep.subr.mxu0 0.0
    %747 = vmatpush2.msra.mxu0 0.0
    %748 = vmatprep.subr.mxu0 0.0
    %749 = vmatpush2.msra.mxu0 0.0
    %750 = vmatprep.subr.mxu0 0.0
    %751 = vmatpush2.msra.mxu0 0.0
    %752 = vmatprep.subr.mxu0 0.0
    %753 = vmatpush2.msra.mxu0 0.0
    %754 = vmatprep.subr.mxu0 0.0
    %755 = vmatpush2.msra.mxu0 0.0
    %756 = vmatprep.subr.mxu0 0.0
    %757 = vmatpush2.msra.mxu0 0.0
    %758 = vmatprep.subr.mxu0 0.0
    %759 = vmatpush2.msra.mxu0 0.0
    %760 = vmatprep.subr.mxu0 0.0
    %761 = vmatpush2.msra.mxu0 0.0
    %762 = vmatprep.subr.mxu0 0.0
    %763 = vmatpush2.msra.mxu0 0.0
    %764 = vmatprep.subr.mxu0 0.0
    %765 = vmatpush2.msra.mxu0 0.0
    %766 = vmatprep.mubr.f32.mxu0 0.0
    %767 = vmatmul.mubr.f32.gmra.mxu0 %v700
    %v768 = vpop.f32.mrf.mxu0
    %v769 = vadd.f32 0.0, %v768
    %v770 = vpop.f32.mrf.mxu0
    %771 = vdwg.mxu0
    %v773 = vsel %vm125, %v696, 0
    %775 = vmatprep.subr.mxu0 0.0
    %776 = vmatpush1.msra.mxu0 0.0
    %777 = vmatprep.subr.mxu0 0.0
    %778 = vmatpush1.msra.mxu0 0.0
    %779 = vmatprep.subr.mxu0 0.0
    %780 = vmatpush1.msra.mxu0 0.0
    %781 = vmatprep.subr.mxu0 0.0
    %782 = vmatpush1.msra.mxu0 0.0
    %783 = vmatprep.subr.mxu0 0.0
    %784 = vmatpush1.msra.mxu0 0.0
    %785 = vmatprep.subr.mxu0 0.0
    %786 = vmatpush1.msra.mxu0 0.0
    %787 = vmatprep.subr.mxu0 0.0
    %788 = vmatpush1.msra.mxu0 0.0
    %789 = vmatprep.subr.mxu0 0.0
    %790 = vmatpush1.msra.mxu0 0.0
    %791 = vmatprep.subr.mxu0 0.0
    %792 = vmatpush1.msra.mxu0 0.0
    %793 = vmatprep.subr.mxu0 0.0
    %794 = vmatpush1.msra.mxu0 0.0
    %795 = vmatprep.subr.mxu0 0.0
    %796 = vmatpush1.msra.mxu0 0.0
    %797 = vmatprep.subr.mxu0 0.0
    %798 = vmatpush1.msra.mxu0 0.0
    %799 = vmatprep.subr.mxu0 0.0
    %800 = vmatpush1.msra.mxu0 %v116
    %801 = vmatprep.subr.mxu0 0.0
    %802 = vmatpush1.msra.mxu0 %v115
    %803 = vmatprep.subr.mxu0 0.0
    %804 = vmatpush1.msra.mxu0 %v114
    %805 = vmatprep.subr.mxu0 0.0
    %806 = vmatpush1.msra.mxu0 %v113
    %807 = vmatprep.subr.mxu0 0.0
    %808 = vmatpush2.msra.mxu0 0.0
    %809 = vmatprep.subr.mxu0 0.0
    %810 = vmatpush2.msra.mxu0 0.0
    %811 = vmatprep.subr.mxu0 0.0
    %812 = vmatpush2.msra.mxu0 0.0
    %813 = vmatprep.subr.mxu0 0.0
    %814 = vmatpush2.msra.mxu0 0.0
    %815 = vmatprep.subr.mxu0 0.0
    %816 = vmatpush2.msra.mxu0 0.0
    %817 = vmatprep.subr.mxu0 0.0
    %818 = vmatpush2.msra.mxu0 0.0
    %819 = vmatprep.subr.mxu0 0.0
    %820 = vmatpush2.msra.mxu0 0.0
    %821 = vmatprep.subr.mxu0 0.0
    %822 = vmatpush2.msra.mxu0 0.0
    %823 = vmatprep.subr.mxu0 0.0
    %824 = vmatpush2.msra.mxu0 0.0
    %825 = vmatprep.subr.mxu0 0.0
    %826 = vmatpush2.msra.mxu0 0.0
    %827 = vmatprep.subr.mxu0 0.0
    %828 = vmatpush2.msra.mxu0 0.0
    %829 = vmatprep.subr.mxu0 0.0
    %830 = vmatpush2.msra.mxu0 0.0
    %831 = vmatprep.subr.mxu0 0.0
    %832 = vmatpush2.msra.mxu0 0.0
    %833 = vmatprep.subr.mxu0 0.0
    %834 = vmatpush2.msra.mxu0 0.0
    %835 = vmatprep.subr.mxu0 0.0
    %836 = vmatpush2.msra.mxu0 0.0
    %837 = vmatprep.subr.mxu0 0.0
    %838 = vmatpush2.msra.mxu0 0.0
    %839 = vmatprep.mubr.f32.mxu0 0.0
    %840 = vmatmul.mubr.f32.gmra.mxu0 %v773
    %v841 = vpop.f32.mrf.mxu0
    %v842 = vadd.f32 %v769, %v841
    %v843 = vpop.f32.mrf.mxu0
    %844 = vdwg.mxu0
    %v845 = vadd.f32 %v842, %v276
    %v846 = vxor.u32 %v845, 2147483648
    %v847 = vmul.f32 %v846, 1.442695
    %v848 = vpow.pop %v847
    %v849 = vadd.f32 %v848, 1.0
    %v850 = vrcp.pop %v849
    %v851 = vmul.f32 1.0, %v850
    %v852 = vtanh.pop %v845
    %854 = vrot.lane.b32.xlu0 %v698, 32
    %v855 = vpop.permute.xlu0 %854
    %v857 = vmul.f32 %v851, %v855
    %859 = vrot.lane.b32.xlu0 %v852, 64
    %v860 = vpop.permute.xlu0 %859
    %v862 = vmul.f32 %v851, %v860
    %864 = vrot.lane.b32.xlu0 %v862, 32
    %v865 = vpop.permute.xlu0 %864
    %v867 = vadd.f32 %v857, %v865
    %v868 = vtanh.pop %v867
    %870 = vrot.lane.b32.xlu0 %v868, 64
    %v871 = vpop.permute.xlu0 %870
    %v873 = vmul.f32 %v851, %v871
    %875 = vrot.lane.b32.xlu0 %v873, 32
    %v876 = vpop.permute.xlu0 %875
    %878 = vst.msk [vmem:[#allocation2] sm:$0x3] %vm110, %v876
    %880 = vrot.lane.b32.xlu0 %v867, 96
    %v881 = vpop.permute.xlu0 %880
    %883 = vst.msk [vmem:[#allocation3] sm:$0x3] %vm110, %v881
    %s884 = scalar_lea.vmem [#allocation4], 8
    %v885 = vld [vmem:[%s884] sm:$0x3]
    %v886 = vld [vmem:[#allocation2] sm:$0x3]
    %v887 = vld [vmem:[#allocation3] sm:$0x3]
    %v889 = vsel %vm125, %v886, 0
    %891 = vmatprep.subr.mxu0 0.0
    %892 = vmatpush1.msra.mxu0 0.0
    %893 = vmatprep.subr.mxu0 0.0
    %894 = vmatpush1.msra.mxu0 0.0
    %895 = vmatprep.subr.mxu0 0.0
    %896 = vmatpush1.msra.mxu0 0.0
    %897 = vmatprep.subr.mxu0 0.0
    %898 = vmatpush1.msra.mxu0 0.0
    %899 = vmatprep.subr.mxu0 0.0
    %900 = vmatpush1.msra.mxu0 0.0
    %901 = vmatprep.subr.mxu0 0.0
    %902 = vmatpush1.msra.mxu0 0.0
    %903 = vmatprep.subr.mxu0 0.0
    %904 = vmatpush1.msra.mxu0 0.0
    %905 = vmatprep.subr.mxu0 0.0
    %906 = vmatpush1.msra.mxu0 0.0
    %907 = vmatprep.subr.mxu0 0.0
    %908 = vmatpush1.msra.mxu0 0.0
    %909 = vmatprep.subr.mxu0 0.0
    %910 = vmatpush1.msra.mxu0 0.0
    %911 = vmatprep.subr.mxu0 0.0
    %912 = vmatpush1.msra.mxu0 0.0
    %913 = vmatprep.subr.mxu0 0.0
    %914 = vmatpush1.msra.mxu0 0.0
    %915 = vmatprep.subr.mxu0 0.0
    %916 = vmatpush1.msra.mxu0 %v120
    %917 = vmatprep.subr.mxu0 0.0
    %918 = vmatpush1.msra.mxu0 %v119
    %919 = vmatprep.subr.mxu0 0.0
    %920 = vmatpush1.msra.mxu0 %v118
    %921 = vmatprep.subr.mxu0 0.0
    %922 = vmatpush1.msra.mxu0 %v117
    %923 = vmatprep.subr.mxu0 0.0
    %924 = vmatpush2.msra.mxu0 0.0
    %925 = vmatprep.subr.mxu0 0.0
    %926 = vmatpush2.msra.mxu0 0.0
    %927 = vmatprep.subr.mxu0 0.0
    %928 = vmatpush2.msra.mxu0 0.0
    %929 = vmatprep.subr.mxu0 0.0
    %930 = vmatpush2.msra.mxu0 0.0
    %931 = vmatprep.subr.mxu0 0.0
    %932 = vmatpush2.msra.mxu0 0.0
    %933 = vmatprep.subr.mxu0 0.0
    %934 = vmatpush2.msra.mxu0 0.0
    %935 = vmatprep.subr.mxu0 0.0
    %936 = vmatpush2.msra.mxu0 0.0
    %937 = vmatprep.subr.mxu0 0.0
    %938 = vmatpush2.msra.mxu0 0.0
    %939 = vmatprep.subr.mxu0 0.0
    %940 = vmatpush2.msra.mxu0 0.0
    %941 = vmatprep.subr.mxu0 0.0
    %942 = vmatpush2.msra.mxu0 0.0
    %943 = vmatprep.subr.mxu0 0.0
    %944 = vmatpush2.msra.mxu0 0.0
    %945 = vmatprep.subr.mxu0 0.0
    %946 = vmatpush2.msra.mxu0 0.0
    %947 = vmatprep.subr.mxu0 0.0
    %948 = vmatpush2.msra.mxu0 0.0
    %949 = vmatprep.subr.mxu0 0.0
    %950 = vmatpush2.msra.mxu0 0.0
    %951 = vmatprep.subr.mxu0 0.0
    %952 = vmatpush2.msra.mxu0 0.0
    %953 = vmatprep.subr.mxu0 0.0
    %954 = vmatpush2.msra.mxu0 0.0
    %955 = vmatprep.mubr.f32.mxu0 0.0
    %956 = vmatmul.mubr.f32.gmra.mxu0 %v889
    %v957 = vpop.f32.mrf.mxu0
    %v958 = vadd.f32 0.0, %v957
    %v959 = vpop.f32.mrf.mxu0
    %960 = vdwg.mxu0
    %v962 = vsel %vm125, %v885, 0
    %964 = vmatprep.subr.mxu0 0.0
    %965 = vmatpush1.msra.mxu0 0.0
    %966 = vmatprep.subr.mxu0 0.0
    %967 = vmatpush1.msra.mxu0 0.0
    %968 = vmatprep.subr.mxu0 0.0
    %969 = vmatpush1.msra.mxu0 0.0
    %970 = vmatprep.subr.mxu0 0.0
    %971 = vmatpush1.msra.mxu0 0.0
    %972 = vmatprep.subr.mxu0 0.0
    %973 = vmatpush1.msra.mxu0 0.0
    %974 = vmatprep.subr.mxu0 0.0
    %975 = vmatpush1.msra.mxu0 0.0
    %976 = vmatprep.subr.mxu0 0.0
    %977 = vmatpush1.msra.mxu0 0.0
    %978 = vmatprep.subr.mxu0 0.0
    %979 = vmatpush1.msra.mxu0 0.0
    %980 = vmatprep.subr.mxu0 0.0
    %981 = vmatpush1.msra.mxu0 0.0
    %982 = vmatprep.subr.mxu0 0.0
    %983 = vmatpush1.msra.mxu0 0.0
    %984 = vmatprep.subr.mxu0 0.0
    %985 = vmatpush1.msra.mxu0 0.0
    %986 = vmatprep.subr.mxu0 0.0
    %987 = vmatpush1.msra.mxu0 0.0
    %988 = vmatprep.subr.mxu0 0.0
    %989 = vmatpush1.msra.mxu0 %v116
    %990 = vmatprep.subr.mxu0 0.0
    %991 = vmatpush1.msra.mxu0 %v115
    %992 = vmatprep.subr.mxu0 0.0
    %993 = vmatpush1.msra.mxu0 %v114
    %994 = vmatprep.subr.mxu0 0.0
    %995 = vmatpush1.msra.mxu0 %v113
    %996 = vmatprep.subr.mxu0 0.0
    %997 = vmatpush2.msra.mxu0 0.0
    %998 = vmatprep.subr.mxu0 0.0
    %999 = vmatpush2.msra.mxu0 0.0
    %1000 = vmatprep.subr.mxu0 0.0
    %1001 = vmatpush2.msra.mxu0 0.0
    %1002 = vmatprep.subr.mxu0 0.0
    %1003 = vmatpush2.msra.mxu0 0.0
    %1004 = vmatprep.subr.mxu0 0.0
    %1005 = vmatpush2.msra.mxu0 0.0
    %1006 = vmatprep.subr.mxu0 0.0
    %1007 = vmatpush2.msra.mxu0 0.0
    %1008 = vmatprep.subr.mxu0 0.0
    %1009 = vmatpush2.msra.mxu0 0.0
    %1010 = vmatprep.subr.mxu0 0.0
    %1011 = vmatpush2.msra.mxu0 0.0
    %1012 = vmatprep.subr.mxu0 0.0
    %1013 = vmatpush2.msra.mxu0 0.0
    %1014 = vmatprep.subr.mxu0 0.0
    %1015 = vmatpush2.msra.mxu0 0.0
    %1016 = vmatprep.subr.mxu0 0.0
    %1017 = vmatpush2.msra.mxu0 0.0
    %1018 = vmatprep.subr.mxu0 0.0
    %1019 = vmatpush2.msra.mxu0 0.0
    %1020 = vmatprep.subr.mxu0 0.0
    %1021 = vmatpush2.msra.mxu0 0.0
    %1022 = vmatprep.subr.mxu0 0.0
    %1023 = vmatpush2.msra.mxu0 0.0
    %1024 = vmatprep.subr.mxu0 0.0
    %1025 = vmatpush2.msra.mxu0 0.0
    %1026 = vmatprep.subr.mxu0 0.0
    %1027 = vmatpush2.msra.mxu0 0.0
    %1028 = vmatprep.mubr.f32.mxu0 0.0
    %1029 = vmatmul.mubr.f32.gmra.mxu0 %v962
    %v1030 = vpop.f32.mrf.mxu0
    %v1031 = vadd.f32 %v958, %v1030
    %v1032 = vpop.f32.mrf.mxu0
    %1033 = vdwg.mxu0
    %v1034 = vadd.f32 %v1031, %v276
    %v1035 = vxor.u32 %v1034, 2147483648
    %v1036 = vmul.f32 %v1035, 1.442695
    %v1037 = vpow.pop %v1036
    %v1038 = vadd.f32 %v1037, 1.0
    %v1039 = vrcp.pop %v1038
    %v1040 = vmul.f32 1.0, %v1039
    %v1041 = vtanh.pop %v1034
    %1043 = vrot.lane.b32.xlu0 %v887, 32
    %v1044 = vpop.permute.xlu0 %1043
    %v1046 = vmul.f32 %v1040, %v1044
    %1048 = vrot.lane.b32.xlu0 %v1041, 64
    %v1049 = vpop.permute.xlu0 %1048
    %v1051 = vmul.f32 %v1040, %v1049
    %1053 = vrot.lane.b32.xlu0 %v1051, 32
    %v1054 = vpop.permute.xlu0 %1053
    %v1056 = vadd.f32 %v1046, %v1054
    %v1057 = vtanh.pop %v1056
    %1059 = vrot.lane.b32.xlu0 %v1057, 64
    %v1060 = vpop.permute.xlu0 %1059
    %v1062 = vmul.f32 %v1040, %v1060
    %1064 = vrot.lane.b32.xlu0 %v1062, 32
    %v1065 = vpop.permute.xlu0 %1064
    %1067 = vst.msk [vmem:[#allocation2] sm:$0x3] %vm110, %v1065
    %1069 = vrot.lane.b32.xlu0 %v1056, 96
    %v1070 = vpop.permute.xlu0 %1069
    %1072 = vst.msk [vmem:[#allocation3] sm:$0x3] %vm110, %v1070
    %s1073 = scalar_lea.vmem [#allocation4], 10
    %v1074 = vld [vmem:[%s1073] sm:$0x3]
    %v1075 = vld [vmem:[#allocation2] sm:$0x3]
    %v1076 = vld [vmem:[#allocation3] sm:$0x3]
    %v1078 = vsel %vm125, %v1075, 0
    %1080 = vmatprep.subr.mxu0 0.0
    %1081 = vmatpush1.msra.mxu0 0.0
    %1082 = vmatprep.subr.mxu0 0.0
    %1083 = vmatpush1.msra.mxu0 0.0
    %1084 = vmatprep.subr.mxu0 0.0
    %1085 = vmatpush1.msra.mxu0 0.0
    %1086 = vmatprep.subr.mxu0 0.0
    %1087 = vmatpush1.msra.mxu0 0.0
    %1088 = vmatprep.subr.mxu0 0.0
    %1089 = vmatpush1.msra.mxu0 0.0
    %1090 = vmatprep.subr.mxu0 0.0
    %1091 = vmatpush1.msra.mxu0 0.0
    %1092 = vmatprep.subr.mxu0 0.0
    %1093 = vmatpush1.msra.mxu0 0.0
    %1094 = vmatprep.subr.mxu0 0.0
    %1095 = vmatpush1.msra.mxu0 0.0
    %1096 = vmatprep.subr.mxu0 0.0
    %1097 = vmatpush1.msra.mxu0 0.0
    %1098 = vmatprep.subr.mxu0 0.0
    %1099 = vmatpush1.msra.mxu0 0.0
    %1100 = vmatprep.subr.mxu0 0.0
    %1101 = vmatpush1.msra.mxu0 0.0
    %1102 = vmatprep.subr.mxu0 0.0
    %1103 = vmatpush1.msra.mxu0 0.0
    %1104 = vmatprep.subr.mxu0 0.0
    %1105 = vmatpush1.msra.mxu0 %v120
    %1106 = vmatprep.subr.mxu0 0.0
    %1107 = vmatpush1.msra.mxu0 %v119
    %1108 = vmatprep.subr.mxu0 0.0
    %1109 = vmatpush1.msra.mxu0 %v118
    %1110 = vmatprep.subr.mxu0 0.0
    %1111 = vmatpush1.msra.mxu0 %v117
    %1112 = vmatprep.subr.mxu0 0.0
    %1113 = vmatpush2.msra.mxu0 0.0
    %1114 = vmatprep.subr.mxu0 0.0
    %1115 = vmatpush2.msra.mxu0 0.0
    %1116 = vmatprep.subr.mxu0 0.0
    %1117 = vmatpush2.msra.mxu0 0.0
    %1118 = vmatprep.subr.mxu0 0.0
    %1119 = vmatpush2.msra.mxu0 0.0
    %1120 = vmatprep.subr.mxu0 0.0
    %1121 = vmatpush2.msra.mxu0 0.0
    %1122 = vmatprep.subr.mxu0 0.0
    %1123 = vmatpush2.msra.mxu0 0.0
    %1124 = vmatprep.subr.mxu0 0.0
    %1125 = vmatpush2.msra.mxu0 0.0
    %1126 = vmatprep.subr.mxu0 0.0
    %1127 = vmatpush2.msra.mxu0 0.0
    %1128 = vmatprep.subr.mxu0 0.0
    %1129 = vmatpush2.msra.mxu0 0.0
    %1130 = vmatprep.subr.mxu0 0.0
    %1131 = vmatpush2.msra.mxu0 0.0
    %1132 = vmatprep.subr.mxu0 0.0
    %1133 = vmatpush2.msra.mxu0 0.0
    %1134 = vmatprep.subr.mxu0 0.0
    %1135 = vmatpush2.msra.mxu0 0.0
    %1136 = vmatprep.subr.mxu0 0.0
    %1137 = vmatpush2.msra.mxu0 0.0
    %1138 = vmatprep.subr.mxu0 0.0
    %1139 = vmatpush2.msra.mxu0 0.0
    %1140 = vmatprep.subr.mxu0 0.0
    %1141 = vmatpush2.msra.mxu0 0.0
    %1142 = vmatprep.subr.mxu0 0.0
    %1143 = vmatpush2.msra.mxu0 0.0
    %1144 = vmatprep.mubr.f32.mxu0 0.0
    %1145 = vmatmul.mubr.f32.gmra.mxu0 %v1078
    %v1146 = vpop.f32.mrf.mxu0
    %v1147 = vadd.f32 0.0, %v1146
    %v1148 = vpop.f32.mrf.mxu0
    %1149 = vdwg.mxu0
    %v1151 = vsel %vm125, %v1074, 0
    %1153 = vmatprep.subr.mxu0 0.0
    %1154 = vmatpush1.msra.mxu0 0.0
    %1155 = vmatprep.subr.mxu0 0.0
    %1156 = vmatpush1.msra.mxu0 0.0
    %1157 = vmatprep.subr.mxu0 0.0
    %1158 = vmatpush1.msra.mxu0 0.0
    %1159 = vmatprep.subr.mxu0 0.0
    %1160 = vmatpush1.msra.mxu0 0.0
    %1161 = vmatprep.subr.mxu0 0.0
    %1162 = vmatpush1.msra.mxu0 0.0
    %1163 = vmatprep.subr.mxu0 0.0
    %1164 = vmatpush1.msra.mxu0 0.0
    %1165 = vmatprep.subr.mxu0 0.0
    %1166 = vmatpush1.msra.mxu0 0.0
    %1167 = vmatprep.subr.mxu0 0.0
    %1168 = vmatpush1.msra.mxu0 0.0
    %1169 = vmatprep.subr.mxu0 0.0
    %1170 = vmatpush1.msra.mxu0 0.0
    %1171 = vmatprep.subr.mxu0 0.0
    %1172 = vmatpush1.msra.mxu0 0.0
    %1173 = vmatprep.subr.mxu0 0.0
    %1174 = vmatpush1.msra.mxu0 0.0
    %1175 = vmatprep.subr.mxu0 0.0
    %1176 = vmatpush1.msra.mxu0 0.0
    %1177 = vmatprep.subr.mxu0 0.0
    %1178 = vmatpush1.msra.mxu0 %v116
    %1179 = vmatprep.subr.mxu0 0.0
    %1180 = vmatpush1.msra.mxu0 %v115
    %1181 = vmatprep.subr.mxu0 0.0
    %1182 = vmatpush1.msra.mxu0 %v114
    %1183 = vmatprep.subr.mxu0 0.0
    %1184 = vmatpush1.msra.mxu0 %v113
    %1185 = vmatprep.subr.mxu0 0.0
    %1186 = vmatpush2.msra.mxu0 0.0
    %1187 = vmatprep.subr.mxu0 0.0
    %1188 = vmatpush2.msra.mxu0 0.0
    %1189 = vmatprep.subr.mxu0 0.0
    %1190 = vmatpush2.msra.mxu0 0.0
    %1191 = vmatprep.subr.mxu0 0.0
    %1192 = vmatpush2.msra.mxu0 0.0
    %1193 = vmatprep.subr.mxu0 0.0
    %1194 = vmatpush2.msra.mxu0 0.0
    %1195 = vmatprep.subr.mxu0 0.0
    %1196 = vmatpush2.msra.mxu0 0.0
    %1197 = vmatprep.subr.mxu0 0.0
    %1198 = vmatpush2.msra.mxu0 0.0
    %1199 = vmatprep.subr.mxu0 0.0
    %1200 = vmatpush2.msra.mxu0 0.0
    %1201 = vmatprep.subr.mxu0 0.0
    %1202 = vmatpush2.msra.mxu0 0.0
    %1203 = vmatprep.subr.mxu0 0.0
    %1204 = vmatpush2.msra.mxu0 0.0
    %1205 = vmatprep.subr.mxu0 0.0
    %1206 = vmatpush2.msra.mxu0 0.0
    %1207 = vmatprep.subr.mxu0 0.0
    %1208 = vmatpush2.msra.mxu0 0.0
    %1209 = vmatprep.subr.mxu0 0.0
    %1210 = vmatpush2.msra.mxu0 0.0
    %1211 = vmatprep.subr.mxu0 0.0
    %1212 = vmatpush2.msra.mxu0 0.0
    %1213 = vmatprep.subr.mxu0 0.0
    %1214 = vmatpush2.msra.mxu0 0.0
    %1215 = vmatprep.subr.mxu0 0.0
    %1216 = vmatpush2.msra.mxu0 0.0
    %1217 = vmatprep.mubr.f32.mxu0 0.0
    %1218 = vmatmul.mubr.f32.gmra.mxu0 %v1151
    %v1219 = vpop.f32.mrf.mxu0
    %v1220 = vadd.f32 %v1147, %v1219
    %v1221 = vpop.f32.mrf.mxu0
    %1222 = vdwg.mxu0
    %v1223 = vadd.f32 %v1220, %v276
    %v1224 = vxor.u32 %v1223, 2147483648
    %v1225 = vmul.f32 %v1224, 1.442695
    %v1226 = vpow.pop %v1225
    %v1227 = vadd.f32 %v1226, 1.0
    %v1228 = vrcp.pop %v1227
    %v1229 = vmul.f32 1.0, %v1228
    %v1230 = vtanh.pop %v1223
    %1232 = vrot.lane.b32.xlu0 %v1076, 32
    %v1233 = vpop.permute.xlu0 %1232
    %v1235 = vmul.f32 %v1229, %v1233
    %1237 = vrot.lane.b32.xlu0 %v1230, 64
    %v1238 = vpop.permute.xlu0 %1237
    %v1240 = vmul.f32 %v1229, %v1238
    %1242 = vrot.lane.b32.xlu0 %v1240, 32
    %v1243 = vpop.permute.xlu0 %1242
    %v1245 = vadd.f32 %v1235, %v1243
    %v1246 = vtanh.pop %v1245
    %1248 = vrot.lane.b32.xlu0 %v1246, 64
    %v1249 = vpop.permute.xlu0 %1248
    %v1251 = vmul.f32 %v1229, %v1249
    %1253 = vrot.lane.b32.xlu0 %v1251, 32
    %v1254 = vpop.permute.xlu0 %1253
    %1256 = vst.msk [vmem:[#allocation2] sm:$0x3] %vm110, %v1254
    %1258 = vrot.lane.b32.xlu0 %v1245, 96
    %v1259 = vpop.permute.xlu0 %1258
    %1261 = vst.msk [vmem:[#allocation3] sm:$0x3] %vm110, %v1259
    %s1262 = scalar_lea.vmem [#allocation4], 12
    %v1263 = vld [vmem:[%s1262] sm:$0x3]
    %v1264 = vld [vmem:[#allocation2] sm:$0x3]
    %v1265 = vld [vmem:[#allocation3] sm:$0x3]
    %v1267 = vsel %vm125, %v1264, 0
    %1269 = vmatprep.subr.mxu0 0.0
    %1270 = vmatpush1.msra.mxu0 0.0
    %1271 = vmatprep.subr.mxu0 0.0
    %1272 = vmatpush1.msra.mxu0 0.0
    %1273 = vmatprep.subr.mxu0 0.0
    %1274 = vmatpush1.msra.mxu0 0.0
    %1275 = vmatprep.subr.mxu0 0.0
    %1276 = vmatpush1.msra.mxu0 0.0
    %1277 = vmatprep.subr.mxu0 0.0
    %1278 = vmatpush1.msra.mxu0 0.0
    %1279 = vmatprep.subr.mxu0 0.0
    %1280 = vmatpush1.msra.mxu0 0.0
    %1281 = vmatprep.subr.mxu0 0.0
    %1282 = vmatpush1.msra.mxu0 0.0
    %1283 = vmatprep.subr.mxu0 0.0
    %1284 = vmatpush1.msra.mxu0 0.0
    %1285 = vmatprep.subr.mxu0 0.0
    %1286 = vmatpush1.msra.mxu0 0.0
    %1287 = vmatprep.subr.mxu0 0.0
    %1288 = vmatpush1.msra.mxu0 0.0
    %1289 = vmatprep.subr.mxu0 0.0
    %1290 = vmatpush1.msra.mxu0 0.0
    %1291 = vmatprep.subr.mxu0 0.0
    %1292 = vmatpush1.msra.mxu0 0.0
    %1293 = vmatprep.subr.mxu0 0.0
    %1294 = vmatpush1.msra.mxu0 %v120
    %1295 = vmatprep.subr.mxu0 0.0
    %1296 = vmatpush1.msra.mxu0 %v119
    %1297 = vmatprep.subr.mxu0 0.0
    %1298 = vmatpush1.msra.mxu0 %v118
    %1299 = vmatprep.subr.mxu0 0.0
    %1300 = vmatpush1.msra.mxu0 %v117
    %1301 = vmatprep.subr.mxu0 0.0
    %1302 = vmatpush2.msra.mxu0 0.0
    %1303 = vmatprep.subr.mxu0 0.0
    %1304 = vmatpush2.msra.mxu0 0.0
    %1305 = vmatprep.subr.mxu0 0.0
    %1306 = vmatpush2.msra.mxu0 0.0
    %1307 = vmatprep.subr.mxu0 0.0
    %1308 = vmatpush2.msra.mxu0 0.0
    %1309 = vmatprep.subr.mxu0 0.0
    %1310 = vmatpush2.msra.mxu0 0.0
    %1311 = vmatprep.subr.mxu0 0.0
    %1312 = vmatpush2.msra.mxu0 0.0
    %1313 = vmatprep.subr.mxu0 0.0
    %1314 = vmatpush2.msra.mxu0 0.0
    %1315 = vmatprep.subr.mxu0 0.0
    %1316 = vmatpush2.msra.mxu0 0.0
    %1317 = vmatprep.subr.mxu0 0.0
    %1318 = vmatpush2.msra.mxu0 0.0
    %1319 = vmatprep.subr.mxu0 0.0
    %1320 = vmatpush2.msra.mxu0 0.0
    %1321 = vmatprep.subr.mxu0 0.0
    %1322 = vmatpush2.msra.mxu0 0.0
    %1323 = vmatprep.subr.mxu0 0.0
    %1324 = vmatpush2.msra.mxu0 0.0
    %1325 = vmatprep.subr.mxu0 0.0
    %1326 = vmatpush2.msra.mxu0 0.0
    %1327 = vmatprep.subr.mxu0 0.0
    %1328 = vmatpush2.msra.mxu0 0.0
    %1329 = vmatprep.subr.mxu0 0.0
    %1330 = vmatpush2.msra.mxu0 0.0
    %1331 = vmatprep.subr.mxu0 0.0
    %1332 = vmatpush2.msra.mxu0 0.0
    %1333 = vmatprep.mubr.f32.mxu0 0.0
    %1334 = vmatmul.mubr.f32.gmra.mxu0 %v1267
    %v1335 = vpop.f32.mrf.mxu0
    %v1336 = vadd.f32 0.0, %v1335
    %v1337 = vpop.f32.mrf.mxu0
    %1338 = vdwg.mxu0
    %v1340 = vsel %vm125, %v1263, 0
    %1342 = vmatprep.subr.mxu0 0.0
    %1343 = vmatpush1.msra.mxu0 0.0
    %1344 = vmatprep.subr.mxu0 0.0
    %1345 = vmatpush1.msra.mxu0 0.0
    %1346 = vmatprep.subr.mxu0 0.0
    %1347 = vmatpush1.msra.mxu0 0.0
    %1348 = vmatprep.subr.mxu0 0.0
    %1349 = vmatpush1.msra.mxu0 0.0
    %1350 = vmatprep.subr.mxu0 0.0
    %1351 = vmatpush1.msra.mxu0 0.0
    %1352 = vmatprep.subr.mxu0 0.0
    %1353 = vmatpush1.msra.mxu0 0.0
    %1354 = vmatprep.subr.mxu0 0.0
    %1355 = vmatpush1.msra.mxu0 0.0
    %1356 = vmatprep.subr.mxu0 0.0
    %1357 = vmatpush1.msra.mxu0 0.0
    %1358 = vmatprep.subr.mxu0 0.0
    %1359 = vmatpush1.msra.mxu0 0.0
    %1360 = vmatprep.subr.mxu0 0.0
    %1361 = vmatpush1.msra.mxu0 0.0
    %1362 = vmatprep.subr.mxu0 0.0
    %1363 = vmatpush1.msra.mxu0 0.0
    %1364 = vmatprep.subr.mxu0 0.0
    %1365 = vmatpush1.msra.mxu0 0.0
    %1366 = vmatprep.subr.mxu0 0.0
    %1367 = vmatpush1.msra.mxu0 %v116
    %1368 = vmatprep.subr.mxu0 0.0
    %1369 = vmatpush1.msra.mxu0 %v115
    %1370 = vmatprep.subr.mxu0 0.0
    %1371 = vmatpush1.msra.mxu0 %v114
    %1372 = vmatprep.subr.mxu0 0.0
    %1373 = vmatpush1.msra.mxu0 %v113
    %1374 = vmatprep.subr.mxu0 0.0
    %1375 = vmatpush2.msra.mxu0 0.0
    %1376 = vmatprep.subr.mxu0 0.0
    %1377 = vmatpush2.msra.mxu0 0.0
    %1378 = vmatprep.subr.mxu0 0.0
    %1379 = vmatpush2.msra.mxu0 0.0
    %1380 = vmatprep.subr.mxu0 0.0
    %1381 = vmatpush2.msra.mxu0 0.0
    %1382 = vmatprep.subr.mxu0 0.0
    %1383 = vmatpush2.msra.mxu0 0.0
    %1384 = vmatprep.subr.mxu0 0.0
    %1385 = vmatpush2.msra.mxu0 0.0
    %1386 = vmatprep.subr.mxu0 0.0
    %1387 = vmatpush2.msra.mxu0 0.0
    %1388 = vmatprep.subr.mxu0 0.0
    %1389 = vmatpush2.msra.mxu0 0.0
    %1390 = vmatprep.subr.mxu0 0.0
    %1391 = vmatpush2.msra.mxu0 0.0
    %1392 = vmatprep.subr.mxu0 0.0
    %1393 = vmatpush2.msra.mxu0 0.0
    %1394 = vmatprep.subr.mxu0 0.0
    %1395 = vmatpush2.msra.mxu0 0.0
    %1396 = vmatprep.subr.mxu0 0.0
    %1397 = vmatpush2.msra.mxu0 0.0
    %1398 = vmatprep.subr.mxu0 0.0
    %1399 = vmatpush2.msra.mxu0 0.0
    %1400 = vmatprep.subr.mxu0 0.0
    %1401 = vmatpush2.msra.mxu0 0.0
    %1402 = vmatprep.subr.mxu0 0.0
    %1403 = vmatpush2.msra.mxu0 0.0
    %1404 = vmatprep.subr.mxu0 0.0
    %1405 = vmatpush2.msra.mxu0 0.0
    %1406 = vmatprep.mubr.f32.mxu0 0.0
    %1407 = vmatmul.mubr.f32.gmra.mxu0 %v1340
    %v1408 = vpop.f32.mrf.mxu0
    %v1409 = vadd.f32 %v1336, %v1408
    %v1410 = vpop.f32.mrf.mxu0
    %1411 = vdwg.mxu0
    %v1412 = vadd.f32 %v1409, %v276
    %v1413 = vxor.u32 %v1412, 2147483648
    %v1414 = vmul.f32 %v1413, 1.442695
    %v1415 = vpow.pop %v1414
    %v1416 = vadd.f32 %v1415, 1.0
    %v1417 = vrcp.pop %v1416
    %v1418 = vmul.f32 1.0, %v1417
    %v1419 = vtanh.pop %v1412
    %1421 = vrot.lane.b32.xlu0 %v1265, 32
    %v1422 = vpop.permute.xlu0 %1421
    %v1424 = vmul.f32 %v1418, %v1422
    %1426 = vrot.lane.b32.xlu0 %v1419, 64
    %v1427 = vpop.permute.xlu0 %1426
    %v1429 = vmul.f32 %v1418, %v1427
    %1431 = vrot.lane.b32.xlu0 %v1429, 32
    %v1432 = vpop.permute.xlu0 %1431
    %v1434 = vadd.f32 %v1424, %v1432
    %v1435 = vtanh.pop %v1434
    %1437 = vrot.lane.b32.xlu0 %v1435, 64
    %v1438 = vpop.permute.xlu0 %1437
    %v1440 = vmul.f32 %v1418, %v1438
    %1442 = vrot.lane.b32.xlu0 %v1440, 32
    %v1443 = vpop.permute.xlu0 %1442
    %1445 = vst.msk [vmem:[#allocation2] sm:$0x3] %vm110, %v1443
    %1447 = vrot.lane.b32.xlu0 %v1434, 96
    %v1448 = vpop.permute.xlu0 %1447
    %1450 = vst.msk [vmem:[#allocation3] sm:$0x3] %vm110, %v1448
    %s1451 = scalar_lea.vmem [#allocation4], 14
    %v1452 = vld [vmem:[%s1451] sm:$0x3]
    %v1453 = vld [vmem:[#allocation2] sm:$0x3]
    %v1454 = vld [vmem:[#allocation3] sm:$0x3]
    %v1456 = vsel %vm125, %v1453, 0
    %1458 = vmatprep.subr.mxu0 0.0
    %1459 = vmatpush1.msra.mxu0 0.0
    %1460 = vmatprep.subr.mxu0 0.0
    %1461 = vmatpush1.msra.mxu0 0.0
    %1462 = vmatprep.subr.mxu0 0.0
    %1463 = vmatpush1.msra.mxu0 0.0
    %1464 = vmatprep.subr.mxu0 0.0
    %1465 = vmatpush1.msra.mxu0 0.0
    %1466 = vmatprep.subr.mxu0 0.0
    %1467 = vmatpush1.msra.mxu0 0.0
    %1468 = vmatprep.subr.mxu0 0.0
    %1469 = vmatpush1.msra.mxu0 0.0
    %1470 = vmatprep.subr.mxu0 0.0
    %1471 = vmatpush1.msra.mxu0 0.0
    %1472 = vmatprep.subr.mxu0 0.0
    %1473 = vmatpush1.msra.mxu0 0.0
    %1474 = vmatprep.subr.mxu0 0.0
    %1475 = vmatpush1.msra.mxu0 0.0
    %1476 = vmatprep.subr.mxu0 0.0
    %1477 = vmatpush1.msra.mxu0 0.0
    %1478 = vmatprep.subr.mxu0 0.0
    %1479 = vmatpush1.msra.mxu0 0.0
    %1480 = vmatprep.subr.mxu0 0.0
    %1481 = vmatpush1.msra.mxu0 0.0
    %1482 = vmatprep.subr.mxu0 0.0
    %1483 = vmatpush1.msra.mxu0 %v120
    %1484 = vmatprep.subr.mxu0 0.0
    %1485 = vmatpush1.msra.mxu0 %v119
    %1486 = vmatprep.subr.mxu0 0.0
    %1487 = vmatpush1.msra.mxu0 %v118
    %1488 = vmatprep.subr.mxu0 0.0
    %1489 = vmatpush1.msra.mxu0 %v117
    %1490 = vmatprep.subr.mxu0 0.0
    %1491 = vmatpush2.msra.mxu0 0.0
    %1492 = vmatprep.subr.mxu0 0.0
    %1493 = vmatpush2.msra.mxu0 0.0
    %1494 = vmatprep.subr.mxu0 0.0
    %1495 = vmatpush2.msra.mxu0 0.0
    %1496 = vmatprep.subr.mxu0 0.0
    %1497 = vmatpush2.msra.mxu0 0.0
    %1498 = vmatprep.subr.mxu0 0.0
    %1499 = vmatpush2.msra.mxu0 0.0
    %1500 = vmatprep.subr.mxu0 0.0
    %1501 = vmatpush2.msra.mxu0 0.0
    %1502 = vmatprep.subr.mxu0 0.0
    %1503 = vmatpush2.msra.mxu0 0.0
    %1504 = vmatprep.subr.mxu0 0.0
    %1505 = vmatpush2.msra.mxu0 0.0
    %1506 = vmatprep.subr.mxu0 0.0
    %1507 = vmatpush2.msra.mxu0 0.0
    %1508 = vmatprep.subr.mxu0 0.0
    %1509 = vmatpush2.msra.mxu0 0.0
    %1510 = vmatprep.subr.mxu0 0.0
    %1511 = vmatpush2.msra.mxu0 0.0
    %1512 = vmatprep.subr.mxu0 0.0
    %1513 = vmatpush2.msra.mxu0 0.0
    %1514 = vmatprep.subr.mxu0 0.0
    %1515 = vmatpush2.msra.mxu0 0.0
    %1516 = vmatprep.subr.mxu0 0.0
    %1517 = vmatpush2.msra.mxu0 0.0
    %1518 = vmatprep.subr.mxu0 0.0
    %1519 = vmatpush2.msra.mxu0 0.0
    %1520 = vmatprep.subr.mxu0 0.0
    %1521 = vmatpush2.msra.mxu0 0.0
    %1522 = vmatprep.mubr.f32.mxu0 0.0
    %1523 = vmatmul.mubr.f32.gmra.mxu0 %v1456
    %v1524 = vpop.f32.mrf.mxu0
    %v1525 = vadd.f32 0.0, %v1524
    %v1526 = vpop.f32.mrf.mxu0
    %1527 = vdwg.mxu0
    %v1529 = vsel %vm125, %v1452, 0
    %1531 = vmatprep.subr.mxu0 0.0
    %1532 = vmatpush1.msra.mxu0 0.0
    %1533 = vmatprep.subr.mxu0 0.0
    %1534 = vmatpush1.msra.mxu0 0.0
    %1535 = vmatprep.subr.mxu0 0.0
    %1536 = vmatpush1.msra.mxu0 0.0
    %1537 = vmatprep.subr.mxu0 0.0
    %1538 = vmatpush1.msra.mxu0 0.0
    %1539 = vmatprep.subr.mxu0 0.0
    %1540 = vmatpush1.msra.mxu0 0.0
    %1541 = vmatprep.subr.mxu0 0.0
    %1542 = vmatpush1.msra.mxu0 0.0
    %1543 = vmatprep.subr.mxu0 0.0
    %1544 = vmatpush1.msra.mxu0 0.0
    %1545 = vmatprep.subr.mxu0 0.0
    %1546 = vmatpush1.msra.mxu0 0.0
    %1547 = vmatprep.subr.mxu0 0.0
    %1548 = vmatpush1.msra.mxu0 0.0
    %1549 = vmatprep.subr.mxu0 0.0
    %1550 = vmatpush1.msra.mxu0 0.0
    %1551 = vmatprep.subr.mxu0 0.0
    %1552 = vmatpush1.msra.mxu0 0.0
    %1553 = vmatprep.subr.mxu0 0.0
    %1554 = vmatpush1.msra.mxu0 0.0
    %1555 = vmatprep.subr.mxu0 0.0
    %1556 = vmatpush1.msra.mxu0 %v116
    %1557 = vmatprep.subr.mxu0 0.0
    %1558 = vmatpush1.msra.mxu0 %v115
    %1559 = vmatprep.subr.mxu0 0.0
    %1560 = vmatpush1.msra.mxu0 %v114
    %1561 = vmatprep.subr.mxu0 0.0
    %1562 = vmatpush1.msra.mxu0 %v113
    %1563 = vmatprep.subr.mxu0 0.0
    %1564 = vmatpush2.msra.mxu0 0.0
    %1565 = vmatprep.subr.mxu0 0.0
    %1566 = vmatpush2.msra.mxu0 0.0
    %1567 = vmatprep.subr.mxu0 0.0
    %1568 = vmatpush2.msra.mxu0 0.0
    %1569 = vmatprep.subr.mxu0 0.0
    %1570 = vmatpush2.msra.mxu0 0.0
    %1571 = vmatprep.subr.mxu0 0.0
    %1572 = vmatpush2.msra.mxu0 0.0
    %1573 = vmatprep.subr.mxu0 0.0
    %1574 = vmatpush2.msra.mxu0 0.0
    %1575 = vmatprep.subr.mxu0 0.0
    %1576 = vmatpush2.msra.mxu0 0.0
    %1577 = vmatprep.subr.mxu0 0.0
    %1578 = vmatpush2.msra.mxu0 0.0
    %1579 = vmatprep.subr.mxu0 0.0
    %1580 = vmatpush2.msra.mxu0 0.0
    %1581 = vmatprep.subr.mxu0 0.0
    %1582 = vmatpush2.msra.mxu0 0.0
    %1583 = vmatprep.subr.mxu0 0.0
    %1584 = vmatpush2.msra.mxu0 0.0
    %1585 = vmatprep.subr.mxu0 0.0
    %1586 = vmatpush2.msra.mxu0 0.0
    %1587 = vmatprep.subr.mxu0 0.0
    %1588 = vmatpush2.msra.mxu0 0.0
    %1589 = vmatprep.subr.mxu0 0.0
    %1590 = vmatpush2.msra.mxu0 0.0
    %1591 = vmatprep.subr.mxu0 0.0
    %1592 = vmatpush2.msra.mxu0 0.0
    %1593 = vmatprep.subr.mxu0 0.0
    %1594 = vmatpush2.msra.mxu0 0.0
    %1595 = vmatprep.mubr.f32.mxu0 0.0
    %1596 = vmatmul.mubr.f32.gmra.mxu0 %v1529
    %v1597 = vpop.f32.mrf.mxu0
    %v1598 = vadd.f32 %v1525, %v1597
    %v1599 = vpop.f32.mrf.mxu0
    %1600 = vdwg.mxu0
    %v1601 = vadd.f32 %v1598, %v276
    %v1602 = vxor.u32 %v1601, 2147483648
    %v1603 = vmul.f32 %v1602, 1.442695
    %v1604 = vpow.pop %v1603
    %v1605 = vadd.f32 %v1604, 1.0
    %v1606 = vrcp.pop %v1605
    %v1607 = vmul.f32 1.0, %v1606
    %v1608 = vtanh.pop %v1601
    %1610 = vrot.lane.b32.xlu0 %v1454, 32
    %v1611 = vpop.permute.xlu0 %1610
    %v1613 = vmul.f32 %v1607, %v1611
    %1615 = vrot.lane.b32.xlu0 %v1608, 64
    %v1616 = vpop.permute.xlu0 %1615
    %v1618 = vmul.f32 %v1607, %v1616
    %1620 = vrot.lane.b32.xlu0 %v1618, 32
    %v1621 = vpop.permute.xlu0 %1620
    %v1623 = vadd.f32 %v1613, %v1621
    %v1624 = vtanh.pop %v1623
    %1626 = vrot.lane.b32.xlu0 %v1624, 64
    %v1627 = vpop.permute.xlu0 %1626
    %v1629 = vmul.f32 %v1607, %v1627
    %1631 = vrot.lane.b32.xlu0 %v1629, 32
    %v1632 = vpop.permute.xlu0 %1631
    %1634 = vst.msk [vmem:[#allocation2] sm:$0x3] %vm110, %v1632
    %1636 = vrot.lane.b32.xlu0 %v1623, 96
    %v1637 = vpop.permute.xlu0 %1636
    %1639 = vst.msk [vmem:[#allocation3] sm:$0x3] %vm110, %v1637
    %vm1640 = vcmask 123904
    %1641 = vst.msk [vmem:[#allocation13] sm:$0x3] %vm1640, 0.0
    %v1642 = vld [vmem:[#allocation9] sm:$0xff]
    %v1643 = vld [vmem:[#allocation9 + $0x8] sm:$0xff]
    %v1644 = vld [vmem:[#allocation10] sm:$0xff]
    %v1645 = vld [vmem:[#allocation10 + $0x8] sm:$0xff]
    %v1646 = vld [vmem:[#allocation10 + $0x10] sm:$0xff]
    %v1647 = vld [vmem:[#allocation10 + $0x18] sm:$0xff]
    %v1648 = vld [vmem:[#allocation12] sm:$0xff]
    %v1649 = vld [vmem:[#allocation12 + $0x8] sm:$0xff]
    %v1650 = vld [vmem:[#allocation12 + $0x10] sm:$0xff]
    %v1651 = vld [vmem:[#allocation12 + $0x18] sm:$0xff]
    %v1652 = vld [vmem:[%s9] sm:$0x1]
    %v1653 = vld [vmem:[%s10] sm:$0xff]
    %v1654 = vld [vmem:[%s10 + $0x8] sm:$0xff]
    %v1655 = vld [vmem:[%s10 + $0x10] sm:$0xff]
    %v1656 = vld [vmem:[%s10 + $0x18] sm:$0xff]
    %v1657 = vld [vmem:[%s11] sm:$0x1]
    %v1658 = vlaneseq
    %v1659 = vand.u32 %v1658, 127
    %v1660 = vld [vmem:[#allocation7] sm:$0x3]
    %vm1661 = vcmask 130048
    %v1663 = vsel %vm1661, %v1660, 0
    %1665 = vmatprep.subr.mxu0 0.0
    %1666 = vmatpush1.msra.mxu0 0.0
    %1667 = vmatprep.subr.mxu0 0.0
    %1668 = vmatpush1.msra.mxu0 0.0
    %1669 = vmatprep.subr.mxu0 0.0
    %1670 = vmatpush1.msra.mxu0 0.0
    %1671 = vmatprep.subr.mxu0 0.0
    %1672 = vmatpush1.msra.mxu0 0.0
    %1673 = vmatprep.subr.mxu0 0.0
    %1674 = vmatpush1.msra.mxu0 0.0
    %1675 = vmatprep.subr.mxu0 0.0
    %1676 = vmatpush1.msra.mxu0 0.0
    %1677 = vmatprep.subr.mxu0 0.0
    %1678 = vmatpush1.msra.mxu0 0.0
    %1679 = vmatprep.subr.mxu0 0.0
    %1680 = vmatpush1.msra.mxu0 0.0
    %1681 = vmatprep.subr.mxu0 0.0
    %1682 = vmatpush1.msra.mxu0 0.0
    %1683 = vmatprep.subr.mxu0 0.0
    %1684 = vmatpush1.msra.mxu0 0.0
    %1685 = vmatprep.subr.mxu0 0.0
    %1686 = vmatpush1.msra.mxu0 0.0
    %1687 = vmatprep.subr.mxu0 0.0
    %1688 = vmatpush1.msra.mxu0 0.0
    %1689 = vmatprep.subr.mxu0 0.0
    %1690 = vmatpush1.msra.mxu0 0.0
    %1691 = vmatprep.subr.mxu0 0.0
    %1692 = vmatpush1.msra.mxu0 0.0
    %1693 = vmatprep.subr.mxu0 0.0
    %1694 = vmatpush1.msra.mxu0 %v1643
    %1695 = vmatprep.subr.mxu0 0.0
    %1696 = vmatpush1.msra.mxu0 %v1642
    %1697 = vmatprep.subr.mxu0 0.0
    %1698 = vmatpush2.msra.mxu0 0.0
    %1699 = vmatprep.subr.mxu0 0.0
    %1700 = vmatpush2.msra.mxu0 0.0
    %1701 = vmatprep.subr.mxu0 0.0
    %1702 = vmatpush2.msra.mxu0 0.0
    %1703 = vmatprep.subr.mxu0 0.0
    %1704 = vmatpush2.msra.mxu0 0.0
    %1705 = vmatprep.subr.mxu0 0.0
    %1706 = vmatpush2.msra.mxu0 0.0
    %1707 = vmatprep.subr.mxu0 0.0
    %1708 = vmatpush2.msra.mxu0 0.0
    %1709 = vmatprep.subr.mxu0 0.0
    %1710 = vmatpush2.msra.mxu0 0.0
    %1711 = vmatprep.subr.mxu0 0.0
    %1712 = vmatpush2.msra.mxu0 0.0
    %1713 = vmatprep.subr.mxu0 0.0
    %1714 = vmatpush2.msra.mxu0 0.0
    %1715 = vmatprep.subr.mxu0 0.0
    %1716 = vmatpush2.msra.mxu0 0.0
    %1717 = vmatprep.subr.mxu0 0.0
    %1718 = vmatpush2.msra.mxu0 0.0
    %1719 = vmatprep.subr.mxu0 0.0
    %1720 = vmatpush2.msra.mxu0 0.0
    %1721 = vmatprep.subr.mxu0 0.0
    %1722 = vmatpush2.msra.mxu0 0.0
    %1723 = vmatprep.subr.mxu0 0.0
    %1724 = vmatpush2.msra.mxu0 0.0
    %1725 = vmatprep.subr.mxu0 0.0
    %1726 = vmatpush2.msra.mxu0 0.0
    %1727 = vmatprep.subr.mxu0 0.0
    %1728 = vmatpush2.msra.mxu0 0.0
    %1729 = vmatprep.mubr.f32.mxu0 0.0
    %1730 = vmatmul.mubr.f32.gmra.mxu0 %v1663
    %v1731 = vpop.f32.mrf.mxu0
    %v1732 = vadd.f32 0.0, %v1731
    %v1733 = vpop.f32.mrf.mxu0
    %1734 = vdwg.mxu0
    %v1735 = vld [vmem:[#allocation2] sm:$0x3]
    %v1736 = vld [vmem:[#allocation3] sm:$0x3]
    %v1738 = vsel %vm125, %v1735, 0
    %1740 = vmatprep.subr.mxu0 0.0
    %1741 = vmatpush1.msra.mxu0 0.0
    %1742 = vmatprep.subr.mxu0 0.0
    %1743 = vmatpush1.msra.mxu0 0.0
    %1744 = vmatprep.subr.mxu0 0.0
    %1745 = vmatpush1.msra.mxu0 0.0
    %1746 = vmatprep.subr.mxu0 0.0
    %1747 = vmatpush1.msra.mxu0 0.0
    %1748 = vmatprep.subr.mxu0 0.0
    %1749 = vmatpush1.msra.mxu0 0.0
    %1750 = vmatprep.subr.mxu0 0.0
    %1751 = vmatpush1.msra.mxu0 0.0
    %1752 = vmatprep.subr.mxu0 0.0
    %1753 = vmatpush1.msra.mxu0 0.0
    %1754 = vmatprep.subr.mxu0 0.0
    %1755 = vmatpush1.msra.mxu0 0.0
    %1756 = vmatprep.subr.mxu0 0.0
    %1757 = vmatpush1.msra.mxu0 0.0
    %1758 = vmatprep.subr.mxu0 0.0
    %1759 = vmatpush1.msra.mxu0 0.0
    %1760 = vmatprep.subr.mxu0 0.0
    %1761 = vmatpush1.msra.mxu0 0.0
    %1762 = vmatprep.subr.mxu0 0.0
    %1763 = vmatpush1.msra.mxu0 0.0
    %1764 = vmatprep.subr.mxu0 0.0
    %1765 = vmatpush1.msra.mxu0 %v1651
    %1766 = vmatprep.subr.mxu0 0.0
    %1767 = vmatpush1.msra.mxu0 %v1650
    %1768 = vmatprep.subr.mxu0 0.0
    %1769 = vmatpush1.msra.mxu0 %v1649
    %1770 = vmatprep.subr.mxu0 0.0
    %1771 = vmatpush1.msra.mxu0 %v1648
    %1772 = vmatprep.subr.mxu0 0.0
    %1773 = vmatpush2.msra.mxu0 0.0
    %1774 = vmatprep.subr.mxu0 0.0
    %1775 = vmatpush2.msra.mxu0 0.0
    %1776 = vmatprep.subr.mxu0 0.0
    %1777 = vmatpush2.msra.mxu0 0.0
    %1778 = vmatprep.subr.mxu0 0.0
    %1779 = vmatpush2.msra.mxu0 0.0
    %1780 = vmatprep.subr.mxu0 0.0
    %1781 = vmatpush2.msra.mxu0 0.0
    %1782 = vmatprep.subr.mxu0 0.0
    %1783 = vmatpush2.msra.mxu0 0.0
    %1784 = vmatprep.subr.mxu0 0.0
    %1785 = vmatpush2.msra.mxu0 0.0
    %1786 = vmatprep.subr.mxu0 0.0
    %1787 = vmatpush2.msra.mxu0 0.0
    %1788 = vmatprep.subr.mxu0 0.0
    %1789 = vmatpush2.msra.mxu0 0.0
    %1790 = vmatprep.subr.mxu0 0.0
    %1791 = vmatpush2.msra.mxu0 0.0
    %1792 = vmatprep.subr.mxu0 0.0
    %1793 = vmatpush2.msra.mxu0 0.0
    %1794 = vmatprep.subr.mxu0 0.0
    %1795 = vmatpush2.msra.mxu0 0.0
    %1796 = vmatprep.subr.mxu0 0.0
    %1797 = vmatpush2.msra.mxu0 0.0
    %1798 = vmatprep.subr.mxu0 0.0
    %1799 = vmatpush2.msra.mxu0 0.0
    %1800 = vmatprep.subr.mxu0 0.0
    %1801 = vmatpush2.msra.mxu0 0.0
    %1802 = vmatprep.subr.mxu0 0.0
    %1803 = vmatpush2.msra.mxu0 0.0
    %1804 = vmatprep.mubr.f32.mxu0 0.0
    %1805 = vmatmul.mubr.f32.gmra.mxu0 %v1738
    %v1806 = vpop.f32.mrf.mxu0
    %v1807 = vadd.f32 0.0, %v1806
    %v1808 = vpop.f32.mrf.mxu0
    %1809 = vdwg.mxu0
    %v1811 = vsel %vm125, %v1732, 0
    %1813 = vmatprep.subr.mxu0 0.0
    %1814 = vmatpush1.msra.mxu0 0.0
    %1815 = vmatprep.subr.mxu0 0.0
    %1816 = vmatpush1.msra.mxu0 0.0
    %1817 = vmatprep.subr.mxu0 0.0
    %1818 = vmatpush1.msra.mxu0 0.0
    %1819 = vmatprep.subr.mxu0 0.0
    %1820 = vmatpush1.msra.mxu0 0.0
    %1821 = vmatprep.subr.mxu0 0.0
    %1822 = vmatpush1.msra.mxu0 0.0
    %1823 = vmatprep.subr.mxu0 0.0
    %1824 = vmatpush1.msra.mxu0 0.0
    %1825 = vmatprep.subr.mxu0 0.0
    %1826 = vmatpush1.msra.mxu0 0.0
    %1827 = vmatprep.subr.mxu0 0.0
    %1828 = vmatpush1.msra.mxu0 0.0
    %1829 = vmatprep.subr.mxu0 0.0
    %1830 = vmatpush1.msra.mxu0 0.0
    %1831 = vmatprep.subr.mxu0 0.0
    %1832 = vmatpush1.msra.mxu0 0.0
    %1833 = vmatprep.subr.mxu0 0.0
    %1834 = vmatpush1.msra.mxu0 0.0
    %1835 = vmatprep.subr.mxu0 0.0
    %1836 = vmatpush1.msra.mxu0 0.0
    %1837 = vmatprep.subr.mxu0 0.0
    %1838 = vmatpush1.msra.mxu0 %v1647
    %1839 = vmatprep.subr.mxu0 0.0
    %1840 = vmatpush1.msra.mxu0 %v1646
    %1841 = vmatprep.subr.mxu0 0.0
    %1842 = vmatpush1.msra.mxu0 %v1645
    %1843 = vmatprep.subr.mxu0 0.0
    %1844 = vmatpush1.msra.mxu0 %v1644
    %1845 = vmatprep.subr.mxu0 0.0
    %1846 = vmatpush2.msra.mxu0 0.0
    %1847 = vmatprep.subr.mxu0 0.0
    %1848 = vmatpush2.msra.mxu0 0.0
    %1849 = vmatprep.subr.mxu0 0.0
    %1850 = vmatpush2.msra.mxu0 0.0
    %1851 = vmatprep.subr.mxu0 0.0
    %1852 = vmatpush2.msra.mxu0 0.0
    %1853 = vmatprep.subr.mxu0 0.0
    %1854 = vmatpush2.msra.mxu0 0.0
    %1855 = vmatprep.subr.mxu0 0.0
    %1856 = vmatpush2.msra.mxu0 0.0
    %1857 = vmatprep.subr.mxu0 0.0
    %1858 = vmatpush2.msra.mxu0 0.0
    %1859 = vmatprep.subr.mxu0 0.0
    %1860 = vmatpush2.msra.mxu0 0.0
    %1861 = vmatprep.subr.mxu0 0.0
    %1862 = vmatpush2.msra.mxu0 0.0
    %1863 = vmatprep.subr.mxu0 0.0
    %1864 = vmatpush2.msra.mxu0 0.0
    %1865 = vmatprep.subr.mxu0 0.0
    %1866 = vmatpush2.msra.mxu0 0.0
    %1867 = vmatprep.subr.mxu0 0.0
    %1868 = vmatpush2.msra.mxu0 0.0
    %1869 = vmatprep.subr.mxu0 0.0
    %1870 = vmatpush2.msra.mxu0 0.0
    %1871 = vmatprep.subr.mxu0 0.0
    %1872 = vmatpush2.msra.mxu0 0.0
    %1873 = vmatprep.subr.mxu0 0.0
    %1874 = vmatpush2.msra.mxu0 0.0
    %1875 = vmatprep.subr.mxu0 0.0
    %1876 = vmatpush2.msra.mxu0 0.0
    %1877 = vmatprep.mubr.f32.mxu0 0.0
    %1878 = vmatmul.mubr.f32.gmra.mxu0 %v1811
    %v1879 = vpop.f32.mrf.mxu0
    %v1880 = vadd.f32 %v1807, %v1879
    %v1881 = vpop.f32.mrf.mxu0
    %1882 = vdwg.mxu0
    %v1884 = vlaneseq
    %v1885 = vshrl.u32 %v1884, 7
    %v1886 = vsub.s32 0, %v1885
    %v1887 = vrot.slane %v1652, %v1886
    %v1889 = vadd.f32 %v1880, %v1887
    %v1890 = vxor.u32 %v1889, 2147483648
    %v1891 = vmul.f32 %v1890, 1.442695
    %v1892 = vpow.pop %v1891
    %v1893 = vadd.f32 %v1892, 1.0
    %v1894 = vrcp.pop %v1893
    %v1895 = vmul.f32 1.0, %v1894
    %v1896 = vtanh.pop %v1889
    %1898 = vrot.lane.b32.xlu0 %v1736, 32
    %v1899 = vpop.permute.xlu0 %1898
    %v1901 = vmul.f32 %v1895, %v1899
    %1903 = vrot.lane.b32.xlu0 %v1896, 64
    %v1904 = vpop.permute.xlu0 %1903
    %v1906 = vmul.f32 %v1895, %v1904
    %1908 = vrot.lane.b32.xlu0 %v1906, 32
    %v1909 = vpop.permute.xlu0 %1908
    %v1911 = vadd.f32 %v1901, %v1909
    %v1912 = vtanh.pop %v1911
    %1914 = vrot.lane.b32.xlu0 %v1912, 64
    %v1915 = vpop.permute.xlu0 %1914
    %v1917 = vmul.f32 %v1895, %v1915
    %1919 = vrot.lane.b32.xlu0 %v1917, 32
    %v1920 = vpop.permute.xlu0 %1919
    %1922 = vst.msk [vmem:[#allocation2] sm:$0x3] %vm110, %v1920
    %1924 = vrot.lane.b32.xlu0 %v1911, 96
    %v1925 = vpop.permute.xlu0 %1924
    %1927 = vst.msk [vmem:[#allocation3] sm:$0x3] %vm110, %v1925
    %v1929 = vlaneseq
    %v1930 = vshrl.u32 %v1929, 7
    %v1931 = vsub.s32 0, %v1930
    %v1932 = vrot.slane %v1657, %v1931
    %v1934 = vsel %vm125, %v1920, 0
    %1936 = vmatprep.subr.mxu0 0.0
    %1937 = vmatpush1.msra.mxu0 0.0
    %1938 = vmatprep.subr.mxu0 0.0
    %1939 = vmatpush1.msra.mxu0 0.0
    %1940 = vmatprep.subr.mxu0 0.0
    %1941 = vmatpush1.msra.mxu0 0.0
    %1942 = vmatprep.subr.mxu0 0.0
    %1943 = vmatpush1.msra.mxu0 0.0
    %1944 = vmatprep.subr.mxu0 0.0
    %1945 = vmatpush1.msra.mxu0 0.0
    %1946 = vmatprep.subr.mxu0 0.0
    %1947 = vmatpush1.msra.mxu0 0.0
    %1948 = vmatprep.subr.mxu0 0.0
    %1949 = vmatpush1.msra.mxu0 0.0
    %1950 = vmatprep.subr.mxu0 0.0
    %1951 = vmatpush1.msra.mxu0 0.0
    %1952 = vmatprep.subr.mxu0 0.0
    %1953 = vmatpush1.msra.mxu0 0.0
    %1954 = vmatprep.subr.mxu0 0.0
    %1955 = vmatpush1.msra.mxu0 0.0
    %1956 = vmatprep.subr.mxu0 0.0
    %1957 = vmatpush1.msra.mxu0 0.0
    %1958 = vmatprep.subr.mxu0 0.0
    %1959 = vmatpush1.msra.mxu0 0.0
    %1960 = vmatprep.subr.mxu0 0.0
    %1961 = vmatpush1.msra.mxu0 %v1656
    %1962 = vmatprep.subr.mxu0 0.0
    %1963 = vmatpush1.msra.mxu0 %v1655
    %1964 = vmatprep.subr.mxu0 0.0
    %1965 = vmatpush1.msra.mxu0 %v1654
    %1966 = vmatprep.subr.mxu0 0.0
    %1967 = vmatpush1.msra.mxu0 %v1653
    %1968 = vmatprep.subr.mxu0 0.0
    %1969 = vmatpush2.msra.mxu0 0.0
    %1970 = vmatprep.subr.mxu0 0.0
    %1971 = vmatpush2.msra.mxu0 0.0
    %1972 = vmatprep.subr.mxu0 0.0
    %1973 = vmatpush2.msra.mxu0 0.0
    %1974 = vmatprep.subr.mxu0 0.0
    %1975 = vmatpush2.msra.mxu0 0.0
    %1976 = vmatprep.subr.mxu0 0.0
    %1977 = vmatpush2.msra.mxu0 0.0
    %1978 = vmatprep.subr.mxu0 0.0
    %1979 = vmatpush2.msra.mxu0 0.0
    %1980 = vmatprep.subr.mxu0 0.0
    %1981 = vmatpush2.msra.mxu0 0.0
    %1982 = vmatprep.subr.mxu0 0.0
    %1983 = vmatpush2.msra.mxu0 0.0
    %1984 = vmatprep.subr.mxu0 0.0
    %1985 = vmatpush2.msra.mxu0 0.0
    %1986 = vmatprep.subr.mxu0 0.0
    %1987 = vmatpush2.msra.mxu0 0.0
    %1988 = vmatprep.subr.mxu0 0.0
    %1989 = vmatpush2.msra.mxu0 0.0
    %1990 = vmatprep.subr.mxu0 0.0
    %1991 = vmatpush2.msra.mxu0 0.0
    %1992 = vmatprep.subr.mxu0 0.0
    %1993 = vmatpush2.msra.mxu0 0.0
    %1994 = vmatprep.subr.mxu0 0.0
    %1995 = vmatpush2.msra.mxu0 0.0
    %1996 = vmatprep.subr.mxu0 0.0
    %1997 = vmatpush2.msra.mxu0 0.0
    %1998 = vmatprep.subr.mxu0 0.0
    %1999 = vmatpush2.msra.mxu0 0.0
    %2000 = vmatprep.mubr.f32.mxu0 0.0
    %2001 = vmatmul.mubr.f32.gmra.mxu0 %v1934
    %v2002 = vpop.f32.mrf.mxu0
    %v2003 = vadd.f32 %v1932, %v2002
    %v2004 = vpop.f32.mrf.mxu0
    %2005 = vdwg.mxu0
    %s2006 = scalar_lea.vmem [#allocation13], 2
    %2007 = vst.msk [vmem:[%s2006] sm:$0x3] %vm1640, %v2003
    %v2008 = vsel %vm1640, %v2003, -inf
    %2009 = vmax.xlane.f32.xlu0 %v2008
    %v2010 = vpop.xlane.xlu0 %2009
    %vm2011 = vcmp.eq.f32.partialorder %v2003, %v2010
    %v2012 = vsel %vm2011, %v1659, 16
    %v2013 = vsel %vm1640, %v2012, 2147483647
    %v2014 = vand.u32 %v2013, 65535
    %v2015 = vshra.s32 %v2013, 16
    %v2016 = vcvt.s32.f32 %v2014
    %v2017 = vcvt.s32.f32 %v2015
    %2018 = vmin.xlane.f32.xlu0 %v2017
    %v2019 = vpop.xlane.xlu0 %2018
    %vm2020 = vcmp.eq.f32.partialorder %v2017, %v2019
    %v2021 = vsel %vm2020, %v2016, inf
    %2022 = vmin.xlane.f32.xlu0 %v2021
    %v2023 = vpop.xlane.xlu0 %2022
    %v2024 = vcvt.f32.s32 %v2023
    %v2025 = vcvt.f32.s32 %v2019
    %v2026 = vshll.u32 %v2025, 16
    %v2027 = vadd.s32 %v2026, %v2024
    %vm2028 = vcmp.eq.s32.totalorder %v1659, %v2027
    %v2029 = vsel %vm2028, 1, 0
    %v2030 = vcvt.s32.f32 %v2029
    %s2031 = scalar_lea.vmem %s2, 1
    %v2032 = vld [vmem:[%s2031] sm:$0x1]
    %s2033 = scalar_lea.vmem [#allocation7], 2
    %v2034 = vld [vmem:[%s2033] sm:$0x3]
    %v2036 = vlaneseq
    %v2037 = vshrl.u32 %v2036, 7
    %v2038 = vsub.s32 0, %v2037
    %v2039 = vrot.slane %v2032, %v2038
    %2040 = vset.pattern.permute.xlu0 0
    %2041 = vperm.xlu0 %2040, %v2039
    %v2042 = vpop.permute.xlu0 %2041
    %v2044 = vmul.f32 %v2042, %v2034
    %v2045 = vsub.f32 1.0, %v2032
    %v2047 = vlaneseq
    %v2048 = vshrl.u32 %v2047, 7
    %v2049 = vsub.s32 0, %v2048
    %v2050 = vrot.slane %v2045, %v2049
    %2051 = vset.pattern.permute.xlu0 0
    %2052 = vperm.xlu0 %2051, %v2050
    %v2053 = vpop.permute.xlu0 %2052
    %v2055 = vmul.f32 %v2053, %v2030
    %v2056 = vadd.f32 %v2044, %v2055
    %v2058 = vsel %vm1661, %v2056, 0
    %2060 = vmatprep.subr.mxu0 0.0
    %2061 = vmatpush1.msra.mxu0 0.0
    %2062 = vmatprep.subr.mxu0 0.0
    %2063 = vmatpush1.msra.mxu0 0.0
    %2064 = vmatprep.subr.mxu0 0.0
    %2065 = vmatpush1.msra.mxu0 0.0
    %2066 = vmatprep.subr.mxu0 0.0
    %2067 = vmatpush1.msra.mxu0 0.0
    %2068 = vmatprep.subr.mxu0 0.0
    %2069 = vmatpush1.msra.mxu0 0.0
    %2070 = vmatprep.subr.mxu0 0.0
    %2071 = vmatpush1.msra.mxu0 0.0
    %2072 = vmatprep.subr.mxu0 0.0
    %2073 = vmatpush1.msra.mxu0 0.0
    %2074 = vmatprep.subr.mxu0 0.0
    %2075 = vmatpush1.msra.mxu0 0.0
    %2076 = vmatprep.subr.mxu0 0.0
    %2077 = vmatpush1.msra.mxu0 0.0
    %2078 = vmatprep.subr.mxu0 0.0
    %2079 = vmatpush1.msra.mxu0 0.0
    %2080 = vmatprep.subr.mxu0 0.0
    %2081 = vmatpush1.msra.mxu0 0.0
    %2082 = vmatprep.subr.mxu0 0.0
    %2083 = vmatpush1.msra.mxu0 0.0
    %2084 = vmatprep.subr.mxu0 0.0
    %2085 = vmatpush1.msra.mxu0 0.0
    %2086 = vmatprep.subr.mxu0 0.0
    %2087 = vmatpush1.msra.mxu0 0.0
    %2088 = vmatprep.subr.mxu0 0.0
    %2089 = vmatpush1.msra.mxu0 %v1643
    %2090 = vmatprep.subr.mxu0 0.0
    %2091 = vmatpush1.msra.mxu0 %v1642
    %2092 = vmatprep.subr.mxu0 0.0
    %2093 = vmatpush2.msra.mxu0 0.0
    %2094 = vmatprep.subr.mxu0 0.0
    %2095 = vmatpush2.msra.mxu0 0.0
    %2096 = vmatprep.subr.mxu0 0.0
    %2097 = vmatpush2.msra.mxu0 0.0
    %2098 = vmatprep.subr.mxu0 0.0
    %2099 = vmatpush2.msra.mxu0 0.0
    %2100 = vmatprep.subr.mxu0 0.0
    %2101 = vmatpush2.msra.mxu0 0.0
    %2102 = vmatprep.subr.mxu0 0.0
    %2103 = vmatpush2.msra.mxu0 0.0
    %2104 = vmatprep.subr.mxu0 0.0
    %2105 = vmatpush2.msra.mxu0 0.0
    %2106 = vmatprep.subr.mxu0 0.0
    %2107 = vmatpush2.msra.mxu0 0.0
    %2108 = vmatprep.subr.mxu0 0.0
    %2109 = vmatpush2.msra.mxu0 0.0
    %2110 = vmatprep.subr.mxu0 0.0
    %2111 = vmatpush2.msra.mxu0 0.0
    %2112 = vmatprep.subr.mxu0 0.0
    %2113 = vmatpush2.msra.mxu0 0.0
    %2114 = vmatprep.subr.mxu0 0.0
    %2115 = vmatpush2.msra.mxu0 0.0
    %2116 = vmatprep.subr.mxu0 0.0
    %2117 = vmatpush2.msra.mxu0 0.0
    %2118 = vmatprep.subr.mxu0 0.0
    %2119 = vmatpush2.msra.mxu0 0.0
    %2120 = vmatprep.subr.mxu0 0.0
    %2121 = vmatpush2.msra.mxu0 0.0
    %2122 = vmatprep.subr.mxu0 0.0
    %2123 = vmatpush2.msra.mxu0 0.0
    %2124 = vmatprep.mubr.f32.mxu0 0.0
    %2125 = vmatmul.mubr.f32.gmra.mxu0 %v2058
    %v2126 = vpop.f32.mrf.mxu0
    %v2127 = vadd.f32 0.0, %v2126
    %v2128 = vpop.f32.mrf.mxu0
    %2129 = vdwg.mxu0
    %v2130 = vld [vmem:[#allocation2] sm:$0x3]
    %v2131 = vld [vmem:[#allocation3] sm:$0x3]
    %v2133 = vsel %vm125, %v2130, 0
    %2135 = vmatprep.subr.mxu0 0.0
    %2136 = vmatpush1.msra.mxu0 0.0
    %2137 = vmatprep.subr.mxu0 0.0
    %2138 = vmatpush1.msra.mxu0 0.0
    %2139 = vmatprep.subr.mxu0 0.0
    %2140 = vmatpush1.msra.mxu0 0.0
    %2141 = vmatprep.subr.mxu0 0.0
    %2142 = vmatpush1.msra.mxu0 0.0
    %2143 = vmatprep.subr.mxu0 0.0
    %2144 = vmatpush1.msra.mxu0 0.0
    %2145 = vmatprep.subr.mxu0 0.0
    %2146 = vmatpush1.msra.mxu0 0.0
    %2147 = vmatprep.subr.mxu0 0.0
    %2148 = vmatpush1.msra.mxu0 0.0
    %2149 = vmatprep.subr.mxu0 0.0
    %2150 = vmatpush1.msra.mxu0 0.0
    %2151 = vmatprep.subr.mxu0 0.0
    %2152 = vmatpush1.msra.mxu0 0.0
    %2153 = vmatprep.subr.mxu0 0.0
    %2154 = vmatpush1.msra.mxu0 0.0
    %2155 = vmatprep.subr.mxu0 0.0
    %2156 = vmatpush1.msra.mxu0 0.0
    %2157 = vmatprep.subr.mxu0 0.0
    %2158 = vmatpush1.msra.mxu0 0.0
    %2159 = vmatprep.subr.mxu0 0.0
    %2160 = vmatpush1.msra.mxu0 %v1651
    %2161 = vmatprep.subr.mxu0 0.0
    %2162 = vmatpush1.msra.mxu0 %v1650
    %2163 = vmatprep.subr.mxu0 0.0
    %2164 = vmatpush1.msra.mxu0 %v1649
    %2165 = vmatprep.subr.mxu0 0.0
    %2166 = vmatpush1.msra.mxu0 %v1648
    %2167 = vmatprep.subr.mxu0 0.0
    %2168 = vmatpush2.msra.mxu0 0.0
    %2169 = vmatprep.subr.mxu0 0.0
    %2170 = vmatpush2.msra.mxu0 0.0
    %2171 = vmatprep.subr.mxu0 0.0
    %2172 = vmatpush2.msra.mxu0 0.0
    %2173 = vmatprep.subr.mxu0 0.0
    %2174 = vmatpush2.msra.mxu0 0.0
    %2175 = vmatprep.subr.mxu0 0.0
    %2176 = vmatpush2.msra.mxu0 0.0
    %2177 = vmatprep.subr.mxu0 0.0
    %2178 = vmatpush2.msra.mxu0 0.0
    %2179 = vmatprep.subr.mxu0 0.0
    %2180 = vmatpush2.msra.mxu0 0.0
    %2181 = vmatprep.subr.mxu0 0.0
    %2182 = vmatpush2.msra.mxu0 0.0
    %2183 = vmatprep.subr.mxu0 0.0
    %2184 = vmatpush2.msra.mxu0 0.0
    %2185 = vmatprep.subr.mxu0 0.0
    %2186 = vmatpush2.msra.mxu0 0.0
    %2187 = vmatprep.subr.mxu0 0.0
    %2188 = vmatpush2.msra.mxu0 0.0
    %2189 = vmatprep.subr.mxu0 0.0
    %2190 = vmatpush2.msra.mxu0 0.0
    %2191 = vmatprep.subr.mxu0 0.0
    %2192 = vmatpush2.msra.mxu0 0.0
    %2193 = vmatprep.subr.mxu0 0.0
    %2194 = vmatpush2.msra.mxu0 0.0
    %2195 = vmatprep.subr.mxu0 0.0
    %2196 = vmatpush2.msra.mxu0 0.0
    %2197 = vmatprep.subr.mxu0 0.0
    %2198 = vmatpush2.msra.mxu0 0.0
    %2199 = vmatprep.mubr.f32.mxu0 0.0
    %2200 = vmatmul.mubr.f32.gmra.mxu0 %v2133
    %v2201 = vpop.f32.mrf.mxu0
    %v2202 = vadd.f32 0.0, %v2201
    %v2203 = vpop.f32.mrf.mxu0
    %2204 = vdwg.mxu0
    %v2206 = vsel %vm125, %v2127, 0
    %2208 = vmatprep.subr.mxu0 0.0
    %2209 = vmatpush1.msra.mxu0 0.0
    %2210 = vmatprep.subr.mxu0 0.0
    %2211 = vmatpush1.msra.mxu0 0.0
    %2212 = vmatprep.subr.mxu0 0.0
    %2213 = vmatpush1.msra.mxu0 0.0
    %2214 = vmatprep.subr.mxu0 0.0
    %2215 = vmatpush1.msra.mxu0 0.0
    %2216 = vmatprep.subr.mxu0 0.0
    %2217 = vmatpush1.msra.mxu0 0.0
    %2218 = vmatprep.subr.mxu0 0.0
    %2219 = vmatpush1.msra.mxu0 0.0
    %2220 = vmatprep.subr.mxu0 0.0
    %2221 = vmatpush1.msra.mxu0 0.0
    %2222 = vmatprep.subr.mxu0 0.0
    %2223 = vmatpush1.msra.mxu0 0.0
    %2224 = vmatprep.subr.mxu0 0.0
    %2225 = vmatpush1.msra.mxu0 0.0
    %2226 = vmatprep.subr.mxu0 0.0
    %2227 = vmatpush1.msra.mxu0 0.0
    %2228 = vmatprep.subr.mxu0 0.0
    %2229 = vmatpush1.msra.mxu0 0.0
    %2230 = vmatprep.subr.mxu0 0.0
    %2231 = vmatpush1.msra.mxu0 0.0
    %2232 = vmatprep.subr.mxu0 0.0
    %2233 = vmatpush1.msra.mxu0 %v1647
    %2234 = vmatprep.subr.mxu0 0.0
    %2235 = vmatpush1.msra.mxu0 %v1646
    %2236 = vmatprep.subr.mxu0 0.0
    %2237 = vmatpush1.msra.mxu0 %v1645
    %2238 = vmatprep.subr.mxu0 0.0
    %2239 = vmatpush1.msra.mxu0 %v1644
    %2240 = vmatprep.subr.mxu0 0.0
    %2241 = vmatpush2.msra.mxu0 0.0
    %2242 = vmatprep.subr.mxu0 0.0
    %2243 = vmatpush2.msra.mxu0 0.0
    %2244 = vmatprep.subr.mxu0 0.0
    %2245 = vmatpush2.msra.mxu0 0.0
    %2246 = vmatprep.subr.mxu0 0.0
    %2247 = vmatpush2.msra.mxu0 0.0
    %2248 = vmatprep.subr.mxu0 0.0
    %2249 = vmatpush2.msra.mxu0 0.0
    %2250 = vmatprep.subr.mxu0 0.0
    %2251 = vmatpush2.msra.mxu0 0.0
    %2252 = vmatprep.subr.mxu0 0.0
    %2253 = vmatpush2.msra.mxu0 0.0
    %2254 = vmatprep.subr.mxu0 0.0
    %2255 = vmatpush2.msra.mxu0 0.0
    %2256 = vmatprep.subr.mxu0 0.0
    %2257 = vmatpush2.msra.mxu0 0.0
    %2258 = vmatprep.subr.mxu0 0.0
    %2259 = vmatpush2.msra.mxu0 0.0
    %2260 = vmatprep.subr.mxu0 0.0
    %2261 = vmatpush2.msra.mxu0 0.0
    %2262 = vmatprep.subr.mxu0 0.0
    %2263 = vmatpush2.msra.mxu0 0.0
    %2264 = vmatprep.subr.mxu0 0.0
    %2265 = vmatpush2.msra.mxu0 0.0
    %2266 = vmatprep.subr.mxu0 0.0
    %2267 = vmatpush2.msra.mxu0 0.0
    %2268 = vmatprep.subr.mxu0 0.0
    %2269 = vmatpush2.msra.mxu0 0.0
    %2270 = vmatprep.subr.mxu0 0.0
    %2271 = vmatpush2.msra.mxu0 0.0
    %2272 = vmatprep.mubr.f32.mxu0 0.0
    %2273 = vmatmul.mubr.f32.gmra.mxu0 %v2206
    %v2274 = vpop.f32.mrf.mxu0
    %v2275 = vadd.f32 %v2202, %v2274
    %v2276 = vpop.f32.mrf.mxu0
    %2277 = vdwg.mxu0
    %v2278 = vadd.f32 %v2275, %v1887
    %v2279 = vxor.u32 %v2278, 2147483648
    %v2280 = vmul.f32 %v2279, 1.442695
    %v2281 = vpow.pop %v2280
    %v2282 = vadd.f32 %v2281, 1.0
    %v2283 = vrcp.pop %v2282
    %v2284 = vmul.f32 1.0, %v2283
    %v2285 = vtanh.pop %v2278
    %2287 = vrot.lane.b32.xlu0 %v2131, 32
    %v2288 = vpop.permute.xlu0 %2287
    %v2290 = vmul.f32 %v2284, %v2288
    %2292 = vrot.lane.b32.xlu0 %v2285, 64
    %v2293 = vpop.permute.xlu0 %2292
    %v2295 = vmul.f32 %v2284, %v2293
    %2297 = vrot.lane.b32.xlu0 %v2295, 32
    %v2298 = vpop.permute.xlu0 %2297
    %v2300 = vadd.f32 %v2290, %v2298
    %v2301 = vtanh.pop %v2300
    %2303 = vrot.lane.b32.xlu0 %v2301, 64
    %v2304 = vpop.permute.xlu0 %2303
    %v2306 = vmul.f32 %v2284, %v2304
    %2308 = vrot.lane.b32.xlu0 %v2306, 32
    %v2309 = vpop.permute.xlu0 %2308
    %2311 = vst.msk [vmem:[#allocation2] sm:$0x3] %vm110, %v2309
    %2313 = vrot.lane.b32.xlu0 %v2300, 96
    %v2314 = vpop.permute.xlu0 %2313
    %2316 = vst.msk [vmem:[#allocation3] sm:$0x3] %vm110, %v2314
    %v2317 = vsel %vm125, %v2309, 0
    %2319 = vmatprep.subr.mxu0 0.0
    %2320 = vmatpush1.msra.mxu0 0.0
    %2321 = vmatprep.subr.mxu0 0.0
    %2322 = vmatpush1.msra.mxu0 0.0
    %2323 = vmatprep.subr.mxu0 0.0
    %2324 = vmatpush1.msra.mxu0 0.0
    %2325 = vmatprep.subr.mxu0 0.0
    %2326 = vmatpush1.msra.mxu0 0.0
    %2327 = vmatprep.subr.mxu0 0.0
    %2328 = vmatpush1.msra.mxu0 0.0
    %2329 = vmatprep.subr.mxu0 0.0
    %2330 = vmatpush1.msra.mxu0 0.0
    %2331 = vmatprep.subr.mxu0 0.0
    %2332 = vmatpush1.msra.mxu0 0.0
    %2333 = vmatprep.subr.mxu0 0.0
    %2334 = vmatpush1.msra.mxu0 0.0
    %2335 = vmatprep.subr.mxu0 0.0
    %2336 = vmatpush1.msra.mxu0 0.0
    %2337 = vmatprep.subr.mxu0 0.0
    %2338 = vmatpush1.msra.mxu0 0.0
    %2339 = vmatprep.subr.mxu0 0.0
    %2340 = vmatpush1.msra.mxu0 0.0
    %2341 = vmatprep.subr.mxu0 0.0
    %2342 = vmatpush1.msra.mxu0 0.0
    %2343 = vmatprep.subr.mxu0 0.0
    %2344 = vmatpush1.msra.mxu0 %v1656
    %2345 = vmatprep.subr.mxu0 0.0
    %2346 = vmatpush1.msra.mxu0 %v1655
    %2347 = vmatprep.subr.mxu0 0.0
    %2348 = vmatpush1.msra.mxu0 %v1654
    %2349 = vmatprep.subr.mxu0 0.0
    %2350 = vmatpush1.msra.mxu0 %v1653
    %2351 = vmatprep.subr.mxu0 0.0
    %2352 = vmatpush2.msra.mxu0 0.0
    %2353 = vmatprep.subr.mxu0 0.0
    %2354 = vmatpush2.msra.mxu0 0.0
    %2355 = vmatprep.subr.mxu0 0.0
    %2356 = vmatpush2.msra.mxu0 0.0
    %2357 = vmatprep.subr.mxu0 0.0
    %2358 = vmatpush2.msra.mxu0 0.0
    %2359 = vmatprep.subr.mxu0 0.0
    %2360 = vmatpush2.msra.mxu0 0.0
    %2361 = vmatprep.subr.mxu0 0.0
    %2362 = vmatpush2.msra.mxu0 0.0
    %2363 = vmatprep.subr.mxu0 0.0
    %2364 = vmatpush2.msra.mxu0 0.0
    %2365 = vmatprep.subr.mxu0 0.0
    %2366 = vmatpush2.msra.mxu0 0.0
    %2367 = vmatprep.subr.mxu0 0.0
    %2368 = vmatpush2.msra.mxu0 0.0
    %2369 = vmatprep.subr.mxu0 0.0
    %2370 = vmatpush2.msra.mxu0 0.0
    %2371 = vmatprep.subr.mxu0 0.0
    %2372 = vmatpush2.msra.mxu0 0.0
    %2373 = vmatprep.subr.mxu0 0.0
    %2374 = vmatpush2.msra.mxu0 0.0
    %2375 = vmatprep.subr.mxu0 0.0
    %2376 = vmatpush2.msra.mxu0 0.0
    %2377 = vmatprep.subr.mxu0 0.0
    %2378 = vmatpush2.msra.mxu0 0.0
    %2379 = vmatprep.subr.mxu0 0.0
    %2380 = vmatpush2.msra.mxu0 0.0
    %2381 = vmatprep.subr.mxu0 0.0
    %2382 = vmatpush2.msra.mxu0 0.0
    %2383 = vmatprep.mubr.f32.mxu0 0.0
    %2384 = vmatmul.mubr.f32.gmra.mxu0 %v2317
    %v2385 = vpop.f32.mrf.mxu0
    %v2386 = vadd.f32 %v1932, %v2385
    %v2387 = vpop.f32.mrf.mxu0
    %2388 = vdwg.mxu0
    %s2389 = scalar_lea.vmem [#allocation13], 4
    %2390 = vst.msk [vmem:[%s2389] sm:$0x3] %vm1640, %v2386
    %v2391 = vsel %vm1640, %v2386, -inf
    %2392 = vmax.xlane.f32.xlu0 %v2391
    %v2393 = vpop.xlane.xlu0 %2392
    %vm2394 = vcmp.eq.f32.partialorder %v2386, %v2393
    %v2395 = vsel %vm2394, %v1659, 16
    %v2396 = vsel %vm1640, %v2395, 2147483647
    %v2397 = vand.u32 %v2396, 65535
    %v2398 = vshra.s32 %v2396, 16
    %v2399 = vcvt.s32.f32 %v2397
    %v2400 = vcvt.s32.f32 %v2398
    %2401 = vmin.xlane.f32.xlu0 %v2400
    %v2402 = vpop.xlane.xlu0 %2401
    %vm2403 = vcmp.eq.f32.partialorder %v2400, %v2402
    %v2404 = vsel %vm2403, %v2399, inf
    %2405 = vmin.xlane.f32.xlu0 %v2404
    %v2406 = vpop.xlane.xlu0 %2405
    %v2407 = vcvt.f32.s32 %v2406
    %v2408 = vcvt.f32.s32 %v2402
    %v2409 = vshll.u32 %v2408, 16
    %v2410 = vadd.s32 %v2409, %v2407
    %vm2411 = vcmp.eq.s32.totalorder %v1659, %v2410
    %v2412 = vsel %vm2411, 1, 0
    %v2413 = vcvt.s32.f32 %v2412
    %s2414 = scalar_lea.vmem %s2, 2
    %v2415 = vld [vmem:[%s2414] sm:$0x1]
    %s2416 = scalar_lea.vmem [#allocation7], 4
    %v2417 = vld [vmem:[%s2416] sm:$0x3]
    %v2419 = vlaneseq
    %v2420 = vshrl.u32 %v2419, 7
    %v2421 = vsub.s32 0, %v2420
    %v2422 = vrot.slane %v2415, %v2421
    %2423 = vset.pattern.permute.xlu0 0
    %2424 = vperm.xlu0 %2423, %v2422
    %v2425 = vpop.permute.xlu0 %2424
    %v2427 = vmul.f32 %v2425, %v2417
    %v2428 = vsub.f32 1.0, %v2415
    %v2430 = vlaneseq
    %v2431 = vshrl.u32 %v2430, 7
    %v2432 = vsub.s32 0, %v2431
    %v2433 = vrot.slane %v2428, %v2432
    %2434 = vset.pattern.permute.xlu0 0
    %2435 = vperm.xlu0 %2434, %v2433
    %v2436 = vpop.permute.xlu0 %2435
    %v2438 = vmul.f32 %v2436, %v2413
    %v2439 = vadd.f32 %v2427, %v2438
    %v2441 = vsel %vm1661, %v2439, 0
    %2443 = vmatprep.subr.mxu0 0.0
    %2444 = vmatpush1.msra.mxu0 0.0
    %2445 = vmatprep.subr.mxu0 0.0
    %2446 = vmatpush1.msra.mxu0 0.0
    %2447 = vmatprep.subr.mxu0 0.0
    %2448 = vmatpush1.msra.mxu0 0.0
    %2449 = vmatprep.subr.mxu0 0.0
    %2450 = vmatpush1.msra.mxu0 0.0
    %2451 = vmatprep.subr.mxu0 0.0
    %2452 = vmatpush1.msra.mxu0 0.0
    %2453 = vmatprep.subr.mxu0 0.0
    %2454 = vmatpush1.msra.mxu0 0.0
    %2455 = vmatprep.subr.mxu0 0.0
    %2456 = vmatpush1.msra.mxu0 0.0
    %2457 = vmatprep.subr.mxu0 0.0
    %2458 = vmatpush1.msra.mxu0 0.0
    %2459 = vmatprep.subr.mxu0 0.0
    %2460 = vmatpush1.msra.mxu0 0.0
    %2461 = vmatprep.subr.mxu0 0.0
    %2462 = vmatpush1.msra.mxu0 0.0
    %2463 = vmatprep.subr.mxu0 0.0
    %2464 = vmatpush1.msra.mxu0 0.0
    %2465 = vmatprep.subr.mxu0 0.0
    %2466 = vmatpush1.msra.mxu0 0.0
    %2467 = vmatprep.subr.mxu0 0.0
    %2468 = vmatpush1.msra.mxu0 0.0
    %2469 = vmatprep.subr.mxu0 0.0
    %2470 = vmatpush1.msra.mxu0 0.0
    %2471 = vmatprep.subr.mxu0 0.0
    %2472 = vmatpush1.msra.mxu0 %v1643
    %2473 = vmatprep.subr.mxu0 0.0
    %2474 = vmatpush1.msra.mxu0 %v1642
    %2475 = vmatprep.subr.mxu0 0.0
    %2476 = vmatpush2.msra.mxu0 0.0
    %2477 = vmatprep.subr.mxu0 0.0
    %2478 = vmatpush2.msra.mxu0 0.0
    %2479 = vmatprep.subr.mxu0 0.0
    %2480 = vmatpush2.msra.mxu0 0.0
    %2481 = vmatprep.subr.mxu0 0.0
    %2482 = vmatpush2.msra.mxu0 0.0
    %2483 = vmatprep.subr.mxu0 0.0
    %2484 = vmatpush2.msra.mxu0 0.0
    %2485 = vmatprep.subr.mxu0 0.0
    %2486 = vmatpush2.msra.mxu0 0.0
    %2487 = vmatprep.subr.mxu0 0.0
    %2488 = vmatpush2.msra.mxu0 0.0
    %2489 = vmatprep.subr.mxu0 0.0
    %2490 = vmatpush2.msra.mxu0 0.0
    %2491 = vmatprep.subr.mxu0 0.0
    %2492 = vmatpush2.msra.mxu0 0.0
    %2493 = vmatprep.subr.mxu0 0.0
    %2494 = vmatpush2.msra.mxu0 0.0
    %2495 = vmatprep.subr.mxu0 0.0
    %2496 = vmatpush2.msra.mxu0 0.0
    %2497 = vmatprep.subr.mxu0 0.0
    %2498 = vmatpush2.msra.mxu0 0.0
    %2499 = vmatprep.subr.mxu0 0.0
    %2500 = vmatpush2.msra.mxu0 0.0
    %2501 = vmatprep.subr.mxu0 0.0
    %2502 = vmatpush2.msra.mxu0 0.0
    %2503 = vmatprep.subr.mxu0 0.0
    %2504 = vmatpush2.msra.mxu0 0.0
    %2505 = vmatprep.subr.mxu0 0.0
    %2506 = vmatpush2.msra.mxu0 0.0
    %2507 = vmatprep.mubr.f32.mxu0 0.0
    %2508 = vmatmul.mubr.f32.gmra.mxu0 %v2441
    %v2509 = vpop.f32.mrf.mxu0
    %v2510 = vadd.f32 0.0, %v2509
    %v2511 = vpop.f32.mrf.mxu0
    %2512 = vdwg.mxu0
    %v2513 = vld [vmem:[#allocation2] sm:$0x3]
    %v2514 = vld [vmem:[#allocation3] sm:$0x3]
    %v2516 = vsel %vm125, %v2513, 0
    %2518 = vmatprep.subr.mxu0 0.0
    %2519 = vmatpush1.msra.mxu0 0.0
    %2520 = vmatprep.subr.mxu0 0.0
    %2521 = vmatpush1.msra.mxu0 0.0
    %2522 = vmatprep.subr.mxu0 0.0
    %2523 = vmatpush1.msra.mxu0 0.0
    %2524 = vmatprep.subr.mxu0 0.0
    %2525 = vmatpush1.msra.mxu0 0.0
    %2526 = vmatprep.subr.mxu0 0.0
    %2527 = vmatpush1.msra.mxu0 0.0
    %2528 = vmatprep.subr.mxu0 0.0
    %2529 = vmatpush1.msra.mxu0 0.0
    %2530 = vmatprep.subr.mxu0 0.0
    %2531 = vmatpush1.msra.mxu0 0.0
    %2532 = vmatprep.subr.mxu0 0.0
    %2533 = vmatpush1.msra.mxu0 0.0
    %2534 = vmatprep.subr.mxu0 0.0
    %2535 = vmatpush1.msra.mxu0 0.0
    %2536 = vmatprep.subr.mxu0 0.0
    %2537 = vmatpush1.msra.mxu0 0.0
    %2538 = vmatprep.subr.mxu0 0.0
    %2539 = vmatpush1.msra.mxu0 0.0
    %2540 = vmatprep.subr.mxu0 0.0
    %2541 = vmatpush1.msra.mxu0 0.0
    %2542 = vmatprep.subr.mxu0 0.0
    %2543 = vmatpush1.msra.mxu0 %v1651
    %2544 = vmatprep.subr.mxu0 0.0
    %2545 = vmatpush1.msra.mxu0 %v1650
    %2546 = vmatprep.subr.mxu0 0.0
    %2547 = vmatpush1.msra.mxu0 %v1649
    %2548 = vmatprep.subr.mxu0 0.0
    %2549 = vmatpush1.msra.mxu0 %v1648
    %2550 = vmatprep.subr.mxu0 0.0
    %2551 = vmatpush2.msra.mxu0 0.0
    %2552 = vmatprep.subr.mxu0 0.0
    %2553 = vmatpush2.msra.mxu0 0.0
    %2554 = vmatprep.subr.mxu0 0.0
    %2555 = vmatpush2.msra.mxu0 0.0
    %2556 = vmatprep.subr.mxu0 0.0
    %2557 = vmatpush2.msra.mxu0 0.0
    %2558 = vmatprep.subr.mxu0 0.0
    %2559 = vmatpush2.msra.mxu0 0.0
    %2560 = vmatprep.subr.mxu0 0.0
    %2561 = vmatpush2.msra.mxu0 0.0
    %2562 = vmatprep.subr.mxu0 0.0
    %2563 = vmatpush2.msra.mxu0 0.0
    %2564 = vmatprep.subr.mxu0 0.0
    %2565 = vmatpush2.msra.mxu0 0.0
    %2566 = vmatprep.subr.mxu0 0.0
    %2567 = vmatpush2.msra.mxu0 0.0
    %2568 = vmatprep.subr.mxu0 0.0
    %2569 = vmatpush2.msra.mxu0 0.0
    %2570 = vmatprep.subr.mxu0 0.0
    %2571 = vmatpush2.msra.mxu0 0.0
    %2572 = vmatprep.subr.mxu0 0.0
    %2573 = vmatpush2.msra.mxu0 0.0
    %2574 = vmatprep.subr.mxu0 0.0
    %2575 = vmatpush2.msra.mxu0 0.0
    %2576 = vmatprep.subr.mxu0 0.0
    %2577 = vmatpush2.msra.mxu0 0.0
    %2578 = vmatprep.subr.mxu0 0.0
    %2579 = vmatpush2.msra.mxu0 0.0
    %2580 = vmatprep.subr.mxu0 0.0
    %2581 = vmatpush2.msra.mxu0 0.0
    %2582 = vmatprep.mubr.f32.mxu0 0.0
    %2583 = vmatmul.mubr.f32.gmra.mxu0 %v2516
    %v2584 = vpop.f32.mrf.mxu0
    %v2585 = vadd.f32 0.0, %v2584
    %v2586 = vpop.f32.mrf.mxu0
    %2587 = vdwg.mxu0
    %v2589 = vsel %vm125, %v2510, 0
    %2591 = vmatprep.subr.mxu0 0.0
    %2592 = vmatpush1.msra.mxu0 0.0
    %2593 = vmatprep.subr.mxu0 0.0
    %2594 = vmatpush1.msra.mxu0 0.0
    %2595 = vmatprep.subr.mxu0 0.0
    %2596 = vmatpush1.msra.mxu0 0.0
    %2597 = vmatprep.subr.mxu0 0.0
    %2598 = vmatpush1.msra.mxu0 0.0
    %2599 = vmatprep.subr.mxu0 0.0
    %2600 = vmatpush1.msra.mxu0 0.0
    %2601 = vmatprep.subr.mxu0 0.0
    %2602 = vmatpush1.msra.mxu0 0.0
    %2603 = vmatprep.subr.mxu0 0.0
    %2604 = vmatpush1.msra.mxu0 0.0
    %2605 = vmatprep.subr.mxu0 0.0
    %2606 = vmatpush1.msra.mxu0 0.0
    %2607 = vmatprep.subr.mxu0 0.0
    %2608 = vmatpush1.msra.mxu0 0.0
    %2609 = vmatprep.subr.mxu0 0.0
    %2610 = vmatpush1.msra.mxu0 0.0
    %2611 = vmatprep.subr.mxu0 0.0
    %2612 = vmatpush1.msra.mxu0 0.0
    %2613 = vmatprep.subr.mxu0 0.0
    %2614 = vmatpush1.msra.mxu0 0.0
    %2615 = vmatprep.subr.mxu0 0.0
    %2616 = vmatpush1.msra.mxu0 %v1647
    %2617 = vmatprep.subr.mxu0 0.0
    %2618 = vmatpush1.msra.mxu0 %v1646
    %2619 = vmatprep.subr.mxu0 0.0
    %2620 = vmatpush1.msra.mxu0 %v1645
    %2621 = vmatprep.subr.mxu0 0.0
    %2622 = vmatpush1.msra.mxu0 %v1644
    %2623 = vmatprep.subr.mxu0 0.0
    %2624 = vmatpush2.msra.mxu0 0.0
    %2625 = vmatprep.subr.mxu0 0.0
    %2626 = vmatpush2.msra.mxu0 0.0
    %2627 = vmatprep.subr.mxu0 0.0
    %2628 = vmatpush2.msra.mxu0 0.0
    %2629 = vmatprep.subr.mxu0 0.0
    %2630 = vmatpush2.msra.mxu0 0.0
    %2631 = vmatprep.subr.mxu0 0.0
    %2632 = vmatpush2.msra.mxu0 0.0
    %2633 = vmatprep.subr.mxu0 0.0
    %2634 = vmatpush2.msra.mxu0 0.0
    %2635 = vmatprep.subr.mxu0 0.0
    %2636 = vmatpush2.msra.mxu0 0.0
    %2637 = vmatprep.subr.mxu0 0.0
    %2638 = vmatpush2.msra.mxu0 0.0
    %2639 = vmatprep.subr.mxu0 0.0
    %2640 = vmatpush2.msra.mxu0 0.0
    %2641 = vmatprep.subr.mxu0 0.0
    %2642 = vmatpush2.msra.mxu0 0.0
    %2643 = vmatprep.subr.mxu0 0.0
    %2644 = vmatpush2.msra.mxu0 0.0
    %2645 = vmatprep.subr.mxu0 0.0
    %2646 = vmatpush2.msra.mxu0 0.0
    %2647 = vmatprep.subr.mxu0 0.0
    %2648 = vmatpush2.msra.mxu0 0.0
    %2649 = vmatprep.subr.mxu0 0.0
    %2650 = vmatpush2.msra.mxu0 0.0
    %2651 = vmatprep.subr.mxu0 0.0
    %2652 = vmatpush2.msra.mxu0 0.0
    %2653 = vmatprep.subr.mxu0 0.0
    %2654 = vmatpush2.msra.mxu0 0.0
    %2655 = vmatprep.mubr.f32.mxu0 0.0
    %2656 = vmatmul.mubr.f32.gmra.mxu0 %v2589
    %v2657 = vpop.f32.mrf.mxu0
    %v2658 = vadd.f32 %v2585, %v2657
    %v2659 = vpop.f32.mrf.mxu0
    %2660 = vdwg.mxu0
    %v2661 = vadd.f32 %v2658, %v1887
    %v2662 = vxor.u32 %v2661, 2147483648
    %v2663 = vmul.f32 %v2662, 1.442695
    %v2664 = vpow.pop %v2663
    %v2665 = vadd.f32 %v2664, 1.0
    %v2666 = vrcp.pop %v2665
    %v2667 = vmul.f32 1.0, %v2666
    %v2668 = vtanh.pop %v2661
    %2670 = vrot.lane.b32.xlu0 %v2514, 32
    %v2671 = vpop.permute.xlu0 %2670
    %v2673 = vmul.f32 %v2667, %v2671
    %2675 = vrot.lane.b32.xlu0 %v2668, 64
    %v2676 = vpop.permute.xlu0 %2675
    %v2678 = vmul.f32 %v2667, %v2676
    %2680 = vrot.lane.b32.xlu0 %v2678, 32
    %v2681 = vpop.permute.xlu0 %2680
    %v2683 = vadd.f32 %v2673, %v2681
    %v2684 = vtanh.pop %v2683
    %2686 = vrot.lane.b32.xlu0 %v2684, 64
    %v2687 = vpop.permute.xlu0 %2686
    %v2689 = vmul.f32 %v2667, %v2687
    %2691 = vrot.lane.b32.xlu0 %v2689, 32
    %v2692 = vpop.permute.xlu0 %2691
    %2694 = vst.msk [vmem:[#allocation2] sm:$0x3] %vm110, %v2692
    %2696 = vrot.lane.b32.xlu0 %v2683, 96
    %v2697 = vpop.permute.xlu0 %2696
    %2699 = vst.msk [vmem:[#allocation3] sm:$0x3] %vm110, %v2697
    %v2700 = vsel %vm125, %v2692, 0
    %2702 = vmatprep.subr.mxu0 0.0
    %2703 = vmatpush1.msra.mxu0 0.0
    %2704 = vmatprep.subr.mxu0 0.0
    %2705 = vmatpush1.msra.mxu0 0.0
    %2706 = vmatprep.subr.mxu0 0.0
    %2707 = vmatpush1.msra.mxu0 0.0
    %2708 = vmatprep.subr.mxu0 0.0
    %2709 = vmatpush1.msra.mxu0 0.0
    %2710 = vmatprep.subr.mxu0 0.0
    %2711 = vmatpush1.msra.mxu0 0.0
    %2712 = vmatprep.subr.mxu0 0.0
    %2713 = vmatpush1.msra.mxu0 0.0
    %2714 = vmatprep.subr.mxu0 0.0
    %2715 = vmatpush1.msra.mxu0 0.0
    %2716 = vmatprep.subr.mxu0 0.0
    %2717 = vmatpush1.msra.mxu0 0.0
    %2718 = vmatprep.subr.mxu0 0.0
    %2719 = vmatpush1.msra.mxu0 0.0
    %2720 = vmatprep.subr.mxu0 0.0
    %2721 = vmatpush1.msra.mxu0 0.0
    %2722 = vmatprep.subr.mxu0 0.0
    %2723 = vmatpush1.msra.mxu0 0.0
    %2724 = vmatprep.subr.mxu0 0.0
    %2725 = vmatpush1.msra.mxu0 0.0
    %2726 = vmatprep.subr.mxu0 0.0
    %2727 = vmatpush1.msra.mxu0 %v1656
    %2728 = vmatprep.subr.mxu0 0.0
    %2729 = vmatpush1.msra.mxu0 %v1655
    %2730 = vmatprep.subr.mxu0 0.0
    %2731 = vmatpush1.msra.mxu0 %v1654
    %2732 = vmatprep.subr.mxu0 0.0
    %2733 = vmatpush1.msra.mxu0 %v1653
    %2734 = vmatprep.subr.mxu0 0.0
    %2735 = vmatpush2.msra.mxu0 0.0
    %2736 = vmatprep.subr.mxu0 0.0
    %2737 = vmatpush2.msra.mxu0 0.0
    %2738 = vmatprep.subr.mxu0 0.0
    %2739 = vmatpush2.msra.mxu0 0.0
    %2740 = vmatprep.subr.mxu0 0.0
    %2741 = vmatpush2.msra.mxu0 0.0
    %2742 = vmatprep.subr.mxu0 0.0
    %2743 = vmatpush2.msra.mxu0 0.0
    %2744 = vmatprep.subr.mxu0 0.0
    %2745 = vmatpush2.msra.mxu0 0.0
    %2746 = vmatprep.subr.mxu0 0.0
    %2747 = vmatpush2.msra.mxu0 0.0
    %2748 = vmatprep.subr.mxu0 0.0
    %2749 = vmatpush2.msra.mxu0 0.0
    %2750 = vmatprep.subr.mxu0 0.0
    %2751 = vmatpush2.msra.mxu0 0.0
    %2752 = vmatprep.subr.mxu0 0.0
    %2753 = vmatpush2.msra.mxu0 0.0
    %2754 = vmatprep.subr.mxu0 0.0
    %2755 = vmatpush2.msra.mxu0 0.0
    %2756 = vmatprep.subr.mxu0 0.0
    %2757 = vmatpush2.msra.mxu0 0.0
    %2758 = vmatprep.subr.mxu0 0.0
    %2759 = vmatpush2.msra.mxu0 0.0
    %2760 = vmatprep.subr.mxu0 0.0
    %2761 = vmatpush2.msra.mxu0 0.0
    %2762 = vmatprep.subr.mxu0 0.0
    %2763 = vmatpush2.msra.mxu0 0.0
    %2764 = vmatprep.subr.mxu0 0.0
    %2765 = vmatpush2.msra.mxu0 0.0
    %2766 = vmatprep.mubr.f32.mxu0 0.0
    %2767 = vmatmul.mubr.f32.gmra.mxu0 %v2700
    %v2768 = vpop.f32.mrf.mxu0
    %v2769 = vadd.f32 %v1932, %v2768
    %v2770 = vpop.f32.mrf.mxu0
    %2771 = vdwg.mxu0
    %s2772 = scalar_lea.vmem [#allocation13], 6
    %2773 = vst.msk [vmem:[%s2772] sm:$0x3] %vm1640, %v2769
    %v2774 = vsel %vm1640, %v2769, -inf
    %2775 = vmax.xlane.f32.xlu0 %v2774
    %v2776 = vpop.xlane.xlu0 %2775
    %vm2777 = vcmp.eq.f32.partialorder %v2769, %v2776
    %v2778 = vsel %vm2777, %v1659, 16
    %v2779 = vsel %vm1640, %v2778, 2147483647
    %v2780 = vand.u32 %v2779, 65535
    %v2781 = vshra.s32 %v2779, 16
    %v2782 = vcvt.s32.f32 %v2780
    %v2783 = vcvt.s32.f32 %v2781
    %2784 = vmin.xlane.f32.xlu0 %v2783
    %v2785 = vpop.xlane.xlu0 %2784
    %vm2786 = vcmp.eq.f32.partialorder %v2783, %v2785
    %v2787 = vsel %vm2786, %v2782, inf
    %2788 = vmin.xlane.f32.xlu0 %v2787
    %v2789 = vpop.xlane.xlu0 %2788
    %v2790 = vcvt.f32.s32 %v2789
    %v2791 = vcvt.f32.s32 %v2785
    %v2792 = vshll.u32 %v2791, 16
    %v2793 = vadd.s32 %v2792, %v2790
    %vm2794 = vcmp.eq.s32.totalorder %v1659, %v2793
    %v2795 = vsel %vm2794, 1, 0
    %v2796 = vcvt.s32.f32 %v2795
    %s2797 = scalar_lea.vmem %s2, 3
    %v2798 = vld [vmem:[%s2797] sm:$0x1]
    %s2799 = scalar_lea.vmem [#allocation7], 6
    %v2800 = vld [vmem:[%s2799] sm:$0x3]
    %v2802 = vlaneseq
    %v2803 = vshrl.u32 %v2802, 7
    %v2804 = vsub.s32 0, %v2803
    %v2805 = vrot.slane %v2798, %v2804
    %2806 = vset.pattern.permute.xlu0 0
    %2807 = vperm.xlu0 %2806, %v2805
    %v2808 = vpop.permute.xlu0 %2807
    %v2810 = vmul.f32 %v2808, %v2800
    %v2811 = vsub.f32 1.0, %v2798
    %v2813 = vlaneseq
    %v2814 = vshrl.u32 %v2813, 7
    %v2815 = vsub.s32 0, %v2814
    %v2816 = vrot.slane %v2811, %v2815
    %2817 = vset.pattern.permute.xlu0 0
    %2818 = vperm.xlu0 %2817, %v2816
    %v2819 = vpop.permute.xlu0 %2818
    %v2821 = vmul.f32 %v2819, %v2796
    %v2822 = vadd.f32 %v2810, %v2821
    %v2824 = vsel %vm1661, %v2822, 0
    %2826 = vmatprep.subr.mxu0 0.0
    %2827 = vmatpush1.msra.mxu0 0.0
    %2828 = vmatprep.subr.mxu0 0.0
    %2829 = vmatpush1.msra.mxu0 0.0
    %2830 = vmatprep.subr.mxu0 0.0
    %2831 = vmatpush1.msra.mxu0 0.0
    %2832 = vmatprep.subr.mxu0 0.0
    %2833 = vmatpush1.msra.mxu0 0.0
    %2834 = vmatprep.subr.mxu0 0.0
    %2835 = vmatpush1.msra.mxu0 0.0
    %2836 = vmatprep.subr.mxu0 0.0
    %2837 = vmatpush1.msra.mxu0 0.0
    %2838 = vmatprep.subr.mxu0 0.0
    %2839 = vmatpush1.msra.mxu0 0.0
    %2840 = vmatprep.subr.mxu0 0.0
    %2841 = vmatpush1.msra.mxu0 0.0
    %2842 = vmatprep.subr.mxu0 0.0
    %2843 = vmatpush1.msra.mxu0 0.0
    %2844 = vmatprep.subr.mxu0 0.0
    %2845 = vmatpush1.msra.mxu0 0.0
    %2846 = vmatprep.subr.mxu0 0.0
    %2847 = vmatpush1.msra.mxu0 0.0
    %2848 = vmatprep.subr.mxu0 0.0
    %2849 = vmatpush1.msra.mxu0 0.0
    %2850 = vmatprep.subr.mxu0 0.0
    %2851 = vmatpush1.msra.mxu0 0.0
    %2852 = vmatprep.subr.mxu0 0.0
    %2853 = vmatpush1.msra.mxu0 0.0
    %2854 = vmatprep.subr.mxu0 0.0
    %2855 = vmatpush1.msra.mxu0 %v1643
    %2856 = vmatprep.subr.mxu0 0.0
    %2857 = vmatpush1.msra.mxu0 %v1642
    %2858 = vmatprep.subr.mxu0 0.0
    %2859 = vmatpush2.msra.mxu0 0.0
    %2860 = vmatprep.subr.mxu0 0.0
    %2861 = vmatpush2.msra.mxu0 0.0
    %2862 = vmatprep.subr.mxu0 0.0
    %2863 = vmatpush2.msra.mxu0 0.0
    %2864 = vmatprep.subr.mxu0 0.0
    %2865 = vmatpush2.msra.mxu0 0.0
    %2866 = vmatprep.subr.mxu0 0.0
    %2867 = vmatpush2.msra.mxu0 0.0
    %2868 = vmatprep.subr.mxu0 0.0
    %2869 = vmatpush2.msra.mxu0 0.0
    %2870 = vmatprep.subr.mxu0 0.0
    %2871 = vmatpush2.msra.mxu0 0.0
    %2872 = vmatprep.subr.mxu0 0.0
    %2873 = vmatpush2.msra.mxu0 0.0
    %2874 = vmatprep.subr.mxu0 0.0
    %2875 = vmatpush2.msra.mxu0 0.0
    %2876 = vmatprep.subr.mxu0 0.0
    %2877 = vmatpush2.msra.mxu0 0.0
    %2878 = vmatprep.subr.mxu0 0.0
    %2879 = vmatpush2.msra.mxu0 0.0
    %2880 = vmatprep.subr.mxu0 0.0
    %2881 = vmatpush2.msra.mxu0 0.0
    %2882 = vmatprep.subr.mxu0 0.0
    %2883 = vmatpush2.msra.mxu0 0.0
    %2884 = vmatprep.subr.mxu0 0.0
    %2885 = vmatpush2.msra.mxu0 0.0
    %2886 = vmatprep.subr.mxu0 0.0
    %2887 = vmatpush2.msra.mxu0 0.0
    %2888 = vmatprep.subr.mxu0 0.0
    %2889 = vmatpush2.msra.mxu0 0.0
    %2890 = vmatprep.mubr.f32.mxu0 0.0
    %2891 = vmatmul.mubr.f32.gmra.mxu0 %v2824
    %v2892 = vpop.f32.mrf.mxu0
    %v2893 = vadd.f32 0.0, %v2892
    %v2894 = vpop.f32.mrf.mxu0
    %2895 = vdwg.mxu0
    %v2896 = vld [vmem:[#allocation2] sm:$0x3]
    %v2897 = vld [vmem:[#allocation3] sm:$0x3]
    %v2899 = vsel %vm125, %v2896, 0
    %2901 = vmatprep.subr.mxu0 0.0
    %2902 = vmatpush1.msra.mxu0 0.0
    %2903 = vmatprep.subr.mxu0 0.0
    %2904 = vmatpush1.msra.mxu0 0.0
    %2905 = vmatprep.subr.mxu0 0.0
    %2906 = vmatpush1.msra.mxu0 0.0
    %2907 = vmatprep.subr.mxu0 0.0
    %2908 = vmatpush1.msra.mxu0 0.0
    %2909 = vmatprep.subr.mxu0 0.0
    %2910 = vmatpush1.msra.mxu0 0.0
    %2911 = vmatprep.subr.mxu0 0.0
    %2912 = vmatpush1.msra.mxu0 0.0
    %2913 = vmatprep.subr.mxu0 0.0
    %2914 = vmatpush1.msra.mxu0 0.0
    %2915 = vmatprep.subr.mxu0 0.0
    %2916 = vmatpush1.msra.mxu0 0.0
    %2917 = vmatprep.subr.mxu0 0.0
    %2918 = vmatpush1.msra.mxu0 0.0
    %2919 = vmatprep.subr.mxu0 0.0
    %2920 = vmatpush1.msra.mxu0 0.0
    %2921 = vmatprep.subr.mxu0 0.0
    %2922 = vmatpush1.msra.mxu0 0.0
    %2923 = vmatprep.subr.mxu0 0.0
    %2924 = vmatpush1.msra.mxu0 0.0
    %2925 = vmatprep.subr.mxu0 0.0
    %2926 = vmatpush1.msra.mxu0 %v1651
    %2927 = vmatprep.subr.mxu0 0.0
    %2928 = vmatpush1.msra.mxu0 %v1650
    %2929 = vmatprep.subr.mxu0 0.0
    %2930 = vmatpush1.msra.mxu0 %v1649
    %2931 = vmatprep.subr.mxu0 0.0
    %2932 = vmatpush1.msra.mxu0 %v1648
    %2933 = vmatprep.subr.mxu0 0.0
    %2934 = vmatpush2.msra.mxu0 0.0
    %2935 = vmatprep.subr.mxu0 0.0
    %2936 = vmatpush2.msra.mxu0 0.0
    %2937 = vmatprep.subr.mxu0 0.0
    %2938 = vmatpush2.msra.mxu0 0.0
    %2939 = vmatprep.subr.mxu0 0.0
    %2940 = vmatpush2.msra.mxu0 0.0
    %2941 = vmatprep.subr.mxu0 0.0
    %2942 = vmatpush2.msra.mxu0 0.0
    %2943 = vmatprep.subr.mxu0 0.0
    %2944 = vmatpush2.msra.mxu0 0.0
    %2945 = vmatprep.subr.mxu0 0.0
    %2946 = vmatpush2.msra.mxu0 0.0
    %2947 = vmatprep.subr.mxu0 0.0
    %2948 = vmatpush2.msra.mxu0 0.0
    %2949 = vmatprep.subr.mxu0 0.0
    %2950 = vmatpush2.msra.mxu0 0.0
    %2951 = vmatprep.subr.mxu0 0.0
    %2952 = vmatpush2.msra.mxu0 0.0
    %2953 = vmatprep.subr.mxu0 0.0
    %2954 = vmatpush2.msra.mxu0 0.0
    %2955 = vmatprep.subr.mxu0 0.0
    %2956 = vmatpush2.msra.mxu0 0.0
    %2957 = vmatprep.subr.mxu0 0.0
    %2958 = vmatpush2.msra.mxu0 0.0
    %2959 = vmatprep.subr.mxu0 0.0
    %2960 = vmatpush2.msra.mxu0 0.0
    %2961 = vmatprep.subr.mxu0 0.0
    %2962 = vmatpush2.msra.mxu0 0.0
    %2963 = vmatprep.subr.mxu0 0.0
    %2964 = vmatpush2.msra.mxu0 0.0
    %2965 = vmatprep.mubr.f32.mxu0 0.0
    %2966 = vmatmul.mubr.f32.gmra.mxu0 %v2899
    %v2967 = vpop.f32.mrf.mxu0
    %v2968 = vadd.f32 0.0, %v2967
    %v2969 = vpop.f32.mrf.mxu0
    %2970 = vdwg.mxu0
    %v2972 = vsel %vm125, %v2893, 0
    %2974 = vmatprep.subr.mxu0 0.0
    %2975 = vmatpush1.msra.mxu0 0.0
    %2976 = vmatprep.subr.mxu0 0.0
    %2977 = vmatpush1.msra.mxu0 0.0
    %2978 = vmatprep.subr.mxu0 0.0
    %2979 = vmatpush1.msra.mxu0 0.0
    %2980 = vmatprep.subr.mxu0 0.0
    %2981 = vmatpush1.msra.mxu0 0.0
    %2982 = vmatprep.subr.mxu0 0.0
    %2983 = vmatpush1.msra.mxu0 0.0
    %2984 = vmatprep.subr.mxu0 0.0
    %2985 = vmatpush1.msra.mxu0 0.0
    %2986 = vmatprep.subr.mxu0 0.0
    %2987 = vmatpush1.msra.mxu0 0.0
    %2988 = vmatprep.subr.mxu0 0.0
    %2989 = vmatpush1.msra.mxu0 0.0
    %2990 = vmatprep.subr.mxu0 0.0
    %2991 = vmatpush1.msra.mxu0 0.0
    %2992 = vmatprep.subr.mxu0 0.0
    %2993 = vmatpush1.msra.mxu0 0.0
    %2994 = vmatprep.subr.mxu0 0.0
    %2995 = vmatpush1.msra.mxu0 0.0
    %2996 = vmatprep.subr.mxu0 0.0
    %2997 = vmatpush1.msra.mxu0 0.0
    %2998 = vmatprep.subr.mxu0 0.0
    %2999 = vmatpush1.msra.mxu0 %v1647
    %3000 = vmatprep.subr.mxu0 0.0
    %3001 = vmatpush1.msra.mxu0 %v1646
    %3002 = vmatprep.subr.mxu0 0.0
    %3003 = vmatpush1.msra.mxu0 %v1645
    %3004 = vmatprep.subr.mxu0 0.0
    %3005 = vmatpush1.msra.mxu0 %v1644
    %3006 = vmatprep.subr.mxu0 0.0
    %3007 = vmatpush2.msra.mxu0 0.0
    %3008 = vmatprep.subr.mxu0 0.0
    %3009 = vmatpush2.msra.mxu0 0.0
    %3010 = vmatprep.subr.mxu0 0.0
    %3011 = vmatpush2.msra.mxu0 0.0
    %3012 = vmatprep.subr.mxu0 0.0
    %3013 = vmatpush2.msra.mxu0 0.0
    %3014 = vmatprep.subr.mxu0 0.0
    %3015 = vmatpush2.msra.mxu0 0.0
    %3016 = vmatprep.subr.mxu0 0.0
    %3017 = vmatpush2.msra.mxu0 0.0
    %3018 = vmatprep.subr.mxu0 0.0
    %3019 = vmatpush2.msra.mxu0 0.0
    %3020 = vmatprep.subr.mxu0 0.0
    %3021 = vmatpush2.msra.mxu0 0.0
    %3022 = vmatprep.subr.mxu0 0.0
    %3023 = vmatpush2.msra.mxu0 0.0
    %3024 = vmatprep.subr.mxu0 0.0
    %3025 = vmatpush2.msra.mxu0 0.0
    %3026 = vmatprep.subr.mxu0 0.0
    %3027 = vmatpush2.msra.mxu0 0.0
    %3028 = vmatprep.subr.mxu0 0.0
    %3029 = vmatpush2.msra.mxu0 0.0
    %3030 = vmatprep.subr.mxu0 0.0
    %3031 = vmatpush2.msra.mxu0 0.0
    %3032 = vmatprep.subr.mxu0 0.0
    %3033 = vmatpush2.msra.mxu0 0.0
    %3034 = vmatprep.subr.mxu0 0.0
    %3035 = vmatpush2.msra.mxu0 0.0
    %3036 = vmatprep.subr.mxu0 0.0
    %3037 = vmatpush2.msra.mxu0 0.0
    %3038 = vmatprep.mubr.f32.mxu0 0.0
    %3039 = vmatmul.mubr.f32.gmra.mxu0 %v2972
    %v3040 = vpop.f32.mrf.mxu0
    %v3041 = vadd.f32 %v2968, %v3040
    %v3042 = vpop.f32.mrf.mxu0
    %3043 = vdwg.mxu0
    %v3044 = vadd.f32 %v3041, %v1887
    %v3045 = vxor.u32 %v3044, 2147483648
    %v3046 = vmul.f32 %v3045, 1.442695
    %v3047 = vpow.pop %v3046
    %v3048 = vadd.f32 %v3047, 1.0
    %v3049 = vrcp.pop %v3048
    %v3050 = vmul.f32 1.0, %v3049
    %v3051 = vtanh.pop %v3044
    %3053 = vrot.lane.b32.xlu0 %v2897, 32
    %v3054 = vpop.permute.xlu0 %3053
    %v3056 = vmul.f32 %v3050, %v3054
    %3058 = vrot.lane.b32.xlu0 %v3051, 64
    %v3059 = vpop.permute.xlu0 %3058
    %v3061 = vmul.f32 %v3050, %v3059
    %3063 = vrot.lane.b32.xlu0 %v3061, 32
    %v3064 = vpop.permute.xlu0 %3063
    %v3066 = vadd.f32 %v3056, %v3064
    %v3067 = vtanh.pop %v3066
    %3069 = vrot.lane.b32.xlu0 %v3067, 64
    %v3070 = vpop.permute.xlu0 %3069
    %v3072 = vmul.f32 %v3050, %v3070
    %3074 = vrot.lane.b32.xlu0 %v3072, 32
    %v3075 = vpop.permute.xlu0 %3074
    %3077 = vst.msk [vmem:[#allocation2] sm:$0x3] %vm110, %v3075
    %3079 = vrot.lane.b32.xlu0 %v3066, 96
    %v3080 = vpop.permute.xlu0 %3079
    %3082 = vst.msk [vmem:[#allocation3] sm:$0x3] %vm110, %v3080
    %v3083 = vsel %vm125, %v3075, 0
    %3085 = vmatprep.subr.mxu0 0.0
    %3086 = vmatpush1.msra.mxu0 0.0
    %3087 = vmatprep.subr.mxu0 0.0
    %3088 = vmatpush1.msra.mxu0 0.0
    %3089 = vmatprep.subr.mxu0 0.0
    %3090 = vmatpush1.msra.mxu0 0.0
    %3091 = vmatprep.subr.mxu0 0.0
    %3092 = vmatpush1.msra.mxu0 0.0
    %3093 = vmatprep.subr.mxu0 0.0
    %3094 = vmatpush1.msra.mxu0 0.0
    %3095 = vmatprep.subr.mxu0 0.0
    %3096 = vmatpush1.msra.mxu0 0.0
    %3097 = vmatprep.subr.mxu0 0.0
    %3098 = vmatpush1.msra.mxu0 0.0
    %3099 = vmatprep.subr.mxu0 0.0
    %3100 = vmatpush1.msra.mxu0 0.0
    %3101 = vmatprep.subr.mxu0 0.0
    %3102 = vmatpush1.msra.mxu0 0.0
    %3103 = vmatprep.subr.mxu0 0.0
    %3104 = vmatpush1.msra.mxu0 0.0
    %3105 = vmatprep.subr.mxu0 0.0
    %3106 = vmatpush1.msra.mxu0 0.0
    %3107 = vmatprep.subr.mxu0 0.0
    %3108 = vmatpush1.msra.mxu0 0.0
    %3109 = vmatprep.subr.mxu0 0.0
    %3110 = vmatpush1.msra.mxu0 %v1656
    %3111 = vmatprep.subr.mxu0 0.0
    %3112 = vmatpush1.msra.mxu0 %v1655
    %3113 = vmatprep.subr.mxu0 0.0
    %3114 = vmatpush1.msra.mxu0 %v1654
    %3115 = vmatprep.subr.mxu0 0.0
    %3116 = vmatpush1.msra.mxu0 %v1653
    %3117 = vmatprep.subr.mxu0 0.0
    %3118 = vmatpush2.msra.mxu0 0.0
    %3119 = vmatprep.subr.mxu0 0.0
    %3120 = vmatpush2.msra.mxu0 0.0
    %3121 = vmatprep.subr.mxu0 0.0
    %3122 = vmatpush2.msra.mxu0 0.0
    %3123 = vmatprep.subr.mxu0 0.0
    %3124 = vmatpush2.msra.mxu0 0.0
    %3125 = vmatprep.subr.mxu0 0.0
    %3126 = vmatpush2.msra.mxu0 0.0
    %3127 = vmatprep.subr.mxu0 0.0
    %3128 = vmatpush2.msra.mxu0 0.0
    %3129 = vmatprep.subr.mxu0 0.0
    %3130 = vmatpush2.msra.mxu0 0.0
    %3131 = vmatprep.subr.mxu0 0.0
    %3132 = vmatpush2.msra.mxu0 0.0
    %3133 = vmatprep.subr.mxu0 0.0
    %3134 = vmatpush2.msra.mxu0 0.0
    %3135 = vmatprep.subr.mxu0 0.0
    %3136 = vmatpush2.msra.mxu0 0.0
    %3137 = vmatprep.subr.mxu0 0.0
    %3138 = vmatpush2.msra.mxu0 0.0
    %3139 = vmatprep.subr.mxu0 0.0
    %3140 = vmatpush2.msra.mxu0 0.0
    %3141 = vmatprep.subr.mxu0 0.0
    %3142 = vmatpush2.msra.mxu0 0.0
    %3143 = vmatprep.subr.mxu0 0.0
    %3144 = vmatpush2.msra.mxu0 0.0
    %3145 = vmatprep.subr.mxu0 0.0
    %3146 = vmatpush2.msra.mxu0 0.0
    %3147 = vmatprep.subr.mxu0 0.0
    %3148 = vmatpush2.msra.mxu0 0.0
    %3149 = vmatprep.mubr.f32.mxu0 0.0
    %3150 = vmatmul.mubr.f32.gmra.mxu0 %v3083
    %v3151 = vpop.f32.mrf.mxu0
    %v3152 = vadd.f32 %v1932, %v3151
    %v3153 = vpop.f32.mrf.mxu0
    %3154 = vdwg.mxu0
    %s3155 = scalar_lea.vmem [#allocation13], 8
    %3156 = vst.msk [vmem:[%s3155] sm:$0x3] %vm1640, %v3152
    %v3157 = vsel %vm1640, %v3152, -inf
    %3158 = vmax.xlane.f32.xlu0 %v3157
    %v3159 = vpop.xlane.xlu0 %3158
    %vm3160 = vcmp.eq.f32.partialorder %v3152, %v3159
    %v3161 = vsel %vm3160, %v1659, 16
    %v3162 = vsel %vm1640, %v3161, 2147483647
    %v3163 = vand.u32 %v3162, 65535
    %v3164 = vshra.s32 %v3162, 16
    %v3165 = vcvt.s32.f32 %v3163
    %v3166 = vcvt.s32.f32 %v3164
    %3167 = vmin.xlane.f32.xlu0 %v3166
    %v3168 = vpop.xlane.xlu0 %3167
    %vm3169 = vcmp.eq.f32.partialorder %v3166, %v3168
    %v3170 = vsel %vm3169, %v3165, inf
    %3171 = vmin.xlane.f32.xlu0 %v3170
    %v3172 = vpop.xlane.xlu0 %3171
    %v3173 = vcvt.f32.s32 %v3172
    %v3174 = vcvt.f32.s32 %v3168
    %v3175 = vshll.u32 %v3174, 16
    %v3176 = vadd.s32 %v3175, %v3173
    %vm3177 = vcmp.eq.s32.totalorder %v1659, %v3176
    %v3178 = vsel %vm3177, 1, 0
    %v3179 = vcvt.s32.f32 %v3178
    %s3180 = scalar_lea.vmem %s2, 4
    %v3181 = vld [vmem:[%s3180] sm:$0x1]
    %s3182 = scalar_lea.vmem [#allocation7], 8
    %v3183 = vld [vmem:[%s3182] sm:$0x3]
    %v3185 = vlaneseq
    %v3186 = vshrl.u32 %v3185, 7
    %v3187 = vsub.s32 0, %v3186
    %v3188 = vrot.slane %v3181, %v3187
    %3189 = vset.pattern.permute.xlu0 0
    %3190 = vperm.xlu0 %3189, %v3188
    %v3191 = vpop.permute.xlu0 %3190
    %v3193 = vmul.f32 %v3191, %v3183
    %v3194 = vsub.f32 1.0, %v3181
    %v3196 = vlaneseq
    %v3197 = vshrl.u32 %v3196, 7
    %v3198 = vsub.s32 0, %v3197
    %v3199 = vrot.slane %v3194, %v3198
    %3200 = vset.pattern.permute.xlu0 0
    %3201 = vperm.xlu0 %3200, %v3199
    %v3202 = vpop.permute.xlu0 %3201
    %v3204 = vmul.f32 %v3202, %v3179
    %v3205 = vadd.f32 %v3193, %v3204
    %v3207 = vsel %vm1661, %v3205, 0
    %3209 = vmatprep.subr.mxu0 0.0
    %3210 = vmatpush1.msra.mxu0 0.0
    %3211 = vmatprep.subr.mxu0 0.0
    %3212 = vmatpush1.msra.mxu0 0.0
    %3213 = vmatprep.subr.mxu0 0.0
    %3214 = vmatpush1.msra.mxu0 0.0
    %3215 = vmatprep.subr.mxu0 0.0
    %3216 = vmatpush1.msra.mxu0 0.0
    %3217 = vmatprep.subr.mxu0 0.0
    %3218 = vmatpush1.msra.mxu0 0.0
    %3219 = vmatprep.subr.mxu0 0.0
    %3220 = vmatpush1.msra.mxu0 0.0
    %3221 = vmatprep.subr.mxu0 0.0
    %3222 = vmatpush1.msra.mxu0 0.0
    %3223 = vmatprep.subr.mxu0 0.0
    %3224 = vmatpush1.msra.mxu0 0.0
    %3225 = vmatprep.subr.mxu0 0.0
    %3226 = vmatpush1.msra.mxu0 0.0
    %3227 = vmatprep.subr.mxu0 0.0
    %3228 = vmatpush1.msra.mxu0 0.0
    %3229 = vmatprep.subr.mxu0 0.0
    %3230 = vmatpush1.msra.mxu0 0.0
    %3231 = vmatprep.subr.mxu0 0.0
    %3232 = vmatpush1.msra.mxu0 0.0
    %3233 = vmatprep.subr.mxu0 0.0
    %3234 = vmatpush1.msra.mxu0 0.0
    %3235 = vmatprep.subr.mxu0 0.0
    %3236 = vmatpush1.msra.mxu0 0.0
    %3237 = vmatprep.subr.mxu0 0.0
    %3238 = vmatpush1.msra.mxu0 %v1643
    %3239 = vmatprep.subr.mxu0 0.0
    %3240 = vmatpush1.msra.mxu0 %v1642
    %3241 = vmatprep.subr.mxu0 0.0
    %3242 = vmatpush2.msra.mxu0 0.0
    %3243 = vmatprep.subr.mxu0 0.0
    %3244 = vmatpush2.msra.mxu0 0.0
    %3245 = vmatprep.subr.mxu0 0.0
    %3246 = vmatpush2.msra.mxu0 0.0
    %3247 = vmatprep.subr.mxu0 0.0
    %3248 = vmatpush2.msra.mxu0 0.0
    %3249 = vmatprep.subr.mxu0 0.0
    %3250 = vmatpush2.msra.mxu0 0.0
    %3251 = vmatprep.subr.mxu0 0.0
    %3252 = vmatpush2.msra.mxu0 0.0
    %3253 = vmatprep.subr.mxu0 0.0
    %3254 = vmatpush2.msra.mxu0 0.0
    %3255 = vmatprep.subr.mxu0 0.0
    %3256 = vmatpush2.msra.mxu0 0.0
    %3257 = vmatprep.subr.mxu0 0.0
    %3258 = vmatpush2.msra.mxu0 0.0
    %3259 = vmatprep.subr.mxu0 0.0
    %3260 = vmatpush2.msra.mxu0 0.0
    %3261 = vmatprep.subr.mxu0 0.0
    %3262 = vmatpush2.msra.mxu0 0.0
    %3263 = vmatprep.subr.mxu0 0.0
    %3264 = vmatpush2.msra.mxu0 0.0
    %3265 = vmatprep.subr.mxu0 0.0
    %3266 = vmatpush2.msra.mxu0 0.0
    %3267 = vmatprep.subr.mxu0 0.0
    %3268 = vmatpush2.msra.mxu0 0.0
    %3269 = vmatprep.subr.mxu0 0.0
    %3270 = vmatpush2.msra.mxu0 0.0
    %3271 = vmatprep.subr.mxu0 0.0
    %3272 = vmatpush2.msra.mxu0 0.0
    %3273 = vmatprep.mubr.f32.mxu0 0.0
    %3274 = vmatmul.mubr.f32.gmra.mxu0 %v3207
    %v3275 = vpop.f32.mrf.mxu0
    %v3276 = vadd.f32 0.0, %v3275
    %v3277 = vpop.f32.mrf.mxu0
    %3278 = vdwg.mxu0
    %v3279 = vld [vmem:[#allocation2] sm:$0x3]
    %v3280 = vld [vmem:[#allocation3] sm:$0x3]
    %v3282 = vsel %vm125, %v3279, 0
    %3284 = vmatprep.subr.mxu0 0.0
    %3285 = vmatpush1.msra.mxu0 0.0
    %3286 = vmatprep.subr.mxu0 0.0
    %3287 = vmatpush1.msra.mxu0 0.0
    %3288 = vmatprep.subr.mxu0 0.0
    %3289 = vmatpush1.msra.mxu0 0.0
    %3290 = vmatprep.subr.mxu0 0.0
    %3291 = vmatpush1.msra.mxu0 0.0
    %3292 = vmatprep.subr.mxu0 0.0
    %3293 = vmatpush1.msra.mxu0 0.0
    %3294 = vmatprep.subr.mxu0 0.0
    %3295 = vmatpush1.msra.mxu0 0.0
    %3296 = vmatprep.subr.mxu0 0.0
    %3297 = vmatpush1.msra.mxu0 0.0
    %3298 = vmatprep.subr.mxu0 0.0
    %3299 = vmatpush1.msra.mxu0 0.0
    %3300 = vmatprep.subr.mxu0 0.0
    %3301 = vmatpush1.msra.mxu0 0.0
    %3302 = vmatprep.subr.mxu0 0.0
    %3303 = vmatpush1.msra.mxu0 0.0
    %3304 = vmatprep.subr.mxu0 0.0
    %3305 = vmatpush1.msra.mxu0 0.0
    %3306 = vmatprep.subr.mxu0 0.0
    %3307 = vmatpush1.msra.mxu0 0.0
    %3308 = vmatprep.subr.mxu0 0.0
    %3309 = vmatpush1.msra.mxu0 %v1651
    %3310 = vmatprep.subr.mxu0 0.0
    %3311 = vmatpush1.msra.mxu0 %v1650
    %3312 = vmatprep.subr.mxu0 0.0
    %3313 = vmatpush1.msra.mxu0 %v1649
    %3314 = vmatprep.subr.mxu0 0.0
    %3315 = vmatpush1.msra.mxu0 %v1648
    %3316 = vmatprep.subr.mxu0 0.0
    %3317 = vmatpush2.msra.mxu0 0.0
    %3318 = vmatprep.subr.mxu0 0.0
    %3319 = vmatpush2.msra.mxu0 0.0
    %3320 = vmatprep.subr.mxu0 0.0
    %3321 = vmatpush2.msra.mxu0 0.0
    %3322 = vmatprep.subr.mxu0 0.0
    %3323 = vmatpush2.msra.mxu0 0.0
    %3324 = vmatprep.subr.mxu0 0.0
    %3325 = vmatpush2.msra.mxu0 0.0
    %3326 = vmatprep.subr.mxu0 0.0
    %3327 = vmatpush2.msra.mxu0 0.0
    %3328 = vmatprep.subr.mxu0 0.0
    %3329 = vmatpush2.msra.mxu0 0.0
    %3330 = vmatprep.subr.mxu0 0.0
    %3331 = vmatpush2.msra.mxu0 0.0
    %3332 = vmatprep.subr.mxu0 0.0
    %3333 = vmatpush2.msra.mxu0 0.0
    %3334 = vmatprep.subr.mxu0 0.0
    %3335 = vmatpush2.msra.mxu0 0.0
    %3336 = vmatprep.subr.mxu0 0.0
    %3337 = vmatpush2.msra.mxu0 0.0
    %3338 = vmatprep.subr.mxu0 0.0
    %3339 = vmatpush2.msra.mxu0 0.0
    %3340 = vmatprep.subr.mxu0 0.0
    %3341 = vmatpush2.msra.mxu0 0.0
    %3342 = vmatprep.subr.mxu0 0.0
    %3343 = vmatpush2.msra.mxu0 0.0
    %3344 = vmatprep.subr.mxu0 0.0
    %3345 = vmatpush2.msra.mxu0 0.0
    %3346 = vmatprep.subr.mxu0 0.0
    %3347 = vmatpush2.msra.mxu0 0.0
    %3348 = vmatprep.mubr.f32.mxu0 0.0
    %3349 = vmatmul.mubr.f32.gmra.mxu0 %v3282
    %v3350 = vpop.f32.mrf.mxu0
    %v3351 = vadd.f32 0.0, %v3350
    %v3352 = vpop.f32.mrf.mxu0
    %3353 = vdwg.mxu0
    %v3355 = vsel %vm125, %v3276, 0
    %3357 = vmatprep.subr.mxu0 0.0
    %3358 = vmatpush1.msra.mxu0 0.0
    %3359 = vmatprep.subr.mxu0 0.0
    %3360 = vmatpush1.msra.mxu0 0.0
    %3361 = vmatprep.subr.mxu0 0.0
    %3362 = vmatpush1.msra.mxu0 0.0
    %3363 = vmatprep.subr.mxu0 0.0
    %3364 = vmatpush1.msra.mxu0 0.0
    %3365 = vmatprep.subr.mxu0 0.0
    %3366 = vmatpush1.msra.mxu0 0.0
    %3367 = vmatprep.subr.mxu0 0.0
    %3368 = vmatpush1.msra.mxu0 0.0
    %3369 = vmatprep.subr.mxu0 0.0
    %3370 = vmatpush1.msra.mxu0 0.0
    %3371 = vmatprep.subr.mxu0 0.0
    %3372 = vmatpush1.msra.mxu0 0.0
    %3373 = vmatprep.subr.mxu0 0.0
    %3374 = vmatpush1.msra.mxu0 0.0
    %3375 = vmatprep.subr.mxu0 0.0
    %3376 = vmatpush1.msra.mxu0 0.0
    %3377 = vmatprep.subr.mxu0 0.0
    %3378 = vmatpush1.msra.mxu0 0.0
    %3379 = vmatprep.subr.mxu0 0.0
    %3380 = vmatpush1.msra.mxu0 0.0
    %3381 = vmatprep.subr.mxu0 0.0
    %3382 = vmatpush1.msra.mxu0 %v1647
    %3383 = vmatprep.subr.mxu0 0.0
    %3384 = vmatpush1.msra.mxu0 %v1646
    %3385 = vmatprep.subr.mxu0 0.0
    %3386 = vmatpush1.msra.mxu0 %v1645
    %3387 = vmatprep.subr.mxu0 0.0
    %3388 = vmatpush1.msra.mxu0 %v1644
    %3389 = vmatprep.subr.mxu0 0.0
    %3390 = vmatpush2.msra.mxu0 0.0
    %3391 = vmatprep.subr.mxu0 0.0
    %3392 = vmatpush2.msra.mxu0 0.0
    %3393 = vmatprep.subr.mxu0 0.0
    %3394 = vmatpush2.msra.mxu0 0.0
    %3395 = vmatprep.subr.mxu0 0.0
    %3396 = vmatpush2.msra.mxu0 0.0
    %3397 = vmatprep.subr.mxu0 0.0
    %3398 = vmatpush2.msra.mxu0 0.0
    %3399 = vmatprep.subr.mxu0 0.0
    %3400 = vmatpush2.msra.mxu0 0.0
    %3401 = vmatprep.subr.mxu0 0.0
    %3402 = vmatpush2.msra.mxu0 0.0
    %3403 = vmatprep.subr.mxu0 0.0
    %3404 = vmatpush2.msra.mxu0 0.0
    %3405 = vmatprep.subr.mxu0 0.0
    %3406 = vmatpush2.msra.mxu0 0.0
    %3407 = vmatprep.subr.mxu0 0.0
    %3408 = vmatpush2.msra.mxu0 0.0
    %3409 = vmatprep.subr.mxu0 0.0
    %3410 = vmatpush2.msra.mxu0 0.0
    %3411 = vmatprep.subr.mxu0 0.0
    %3412 = vmatpush2.msra.mxu0 0.0
    %3413 = vmatprep.subr.mxu0 0.0
    %3414 = vmatpush2.msra.mxu0 0.0
    %3415 = vmatprep.subr.mxu0 0.0
    %3416 = vmatpush2.msra.mxu0 0.0
    %3417 = vmatprep.subr.mxu0 0.0
    %3418 = vmatpush2.msra.mxu0 0.0
    %3419 = vmatprep.subr.mxu0 0.0
    %3420 = vmatpush2.msra.mxu0 0.0
    %3421 = vmatprep.mubr.f32.mxu0 0.0
    %3422 = vmatmul.mubr.f32.gmra.mxu0 %v3355
    %v3423 = vpop.f32.mrf.mxu0
    %v3424 = vadd.f32 %v3351, %v3423
    %v3425 = vpop.f32.mrf.mxu0
    %3426 = vdwg.mxu0
    %v3427 = vadd.f32 %v3424, %v1887
    %v3428 = vxor.u32 %v3427, 2147483648
    %v3429 = vmul.f32 %v3428, 1.442695
    %v3430 = vpow.pop %v3429
    %v3431 = vadd.f32 %v3430, 1.0
    %v3432 = vrcp.pop %v3431
    %v3433 = vmul.f32 1.0, %v3432
    %v3434 = vtanh.pop %v3427
    %3436 = vrot.lane.b32.xlu0 %v3280, 32
    %v3437 = vpop.permute.xlu0 %3436
    %v3439 = vmul.f32 %v3433, %v3437
    %3441 = vrot.lane.b32.xlu0 %v3434, 64
    %v3442 = vpop.permute.xlu0 %3441
    %v3444 = vmul.f32 %v3433, %v3442
    %3446 = vrot.lane.b32.xlu0 %v3444, 32
    %v3447 = vpop.permute.xlu0 %3446
    %v3449 = vadd.f32 %v3439, %v3447
    %v3450 = vtanh.pop %v3449
    %3452 = vrot.lane.b32.xlu0 %v3450, 64
    %v3453 = vpop.permute.xlu0 %3452
    %v3455 = vmul.f32 %v3433, %v3453
    %3457 = vrot.lane.b32.xlu0 %v3455, 32
    %v3458 = vpop.permute.xlu0 %3457
    %3460 = vst.msk [vmem:[#allocation2] sm:$0x3] %vm110, %v3458
    %3462 = vrot.lane.b32.xlu0 %v3449, 96
    %v3463 = vpop.permute.xlu0 %3462
    %3465 = vst.msk [vmem:[#allocation3] sm:$0x3] %vm110, %v3463
    %v3466 = vsel %vm125, %v3458, 0
    %3468 = vmatprep.subr.mxu0 0.0
    %3469 = vmatpush1.msra.mxu0 0.0
    %3470 = vmatprep.subr.mxu0 0.0
    %3471 = vmatpush1.msra.mxu0 0.0
    %3472 = vmatprep.subr.mxu0 0.0
    %3473 = vmatpush1.msra.mxu0 0.0
    %3474 = vmatprep.subr.mxu0 0.0
    %3475 = vmatpush1.msra.mxu0 0.0
    %3476 = vmatprep.subr.mxu0 0.0
    %3477 = vmatpush1.msra.mxu0 0.0
    %3478 = vmatprep.subr.mxu0 0.0
    %3479 = vmatpush1.msra.mxu0 0.0
    %3480 = vmatprep.subr.mxu0 0.0
    %3481 = vmatpush1.msra.mxu0 0.0
    %3482 = vmatprep.subr.mxu0 0.0
    %3483 = vmatpush1.msra.mxu0 0.0
    %3484 = vmatprep.subr.mxu0 0.0
    %3485 = vmatpush1.msra.mxu0 0.0
    %3486 = vmatprep.subr.mxu0 0.0
    %3487 = vmatpush1.msra.mxu0 0.0
    %3488 = vmatprep.subr.mxu0 0.0
    %3489 = vmatpush1.msra.mxu0 0.0
    %3490 = vmatprep.subr.mxu0 0.0
    %3491 = vmatpush1.msra.mxu0 0.0
    %3492 = vmatprep.subr.mxu0 0.0
    %3493 = vmatpush1.msra.mxu0 %v1656
    %3494 = vmatprep.subr.mxu0 0.0
    %3495 = vmatpush1.msra.mxu0 %v1655
    %3496 = vmatprep.subr.mxu0 0.0
    %3497 = vmatpush1.msra.mxu0 %v1654
    %3498 = vmatprep.subr.mxu0 0.0
    %3499 = vmatpush1.msra.mxu0 %v1653
    %3500 = vmatprep.subr.mxu0 0.0
    %3501 = vmatpush2.msra.mxu0 0.0
    %3502 = vmatprep.subr.mxu0 0.0
    %3503 = vmatpush2.msra.mxu0 0.0
    %3504 = vmatprep.subr.mxu0 0.0
    %3505 = vmatpush2.msra.mxu0 0.0
    %3506 = vmatprep.subr.mxu0 0.0
    %3507 = vmatpush2.msra.mxu0 0.0
    %3508 = vmatprep.subr.mxu0 0.0
    %3509 = vmatpush2.msra.mxu0 0.0
    %3510 = vmatprep.subr.mxu0 0.0
    %3511 = vmatpush2.msra.mxu0 0.0
    %3512 = vmatprep.subr.mxu0 0.0
    %3513 = vmatpush2.msra.mxu0 0.0
    %3514 = vmatprep.subr.mxu0 0.0
    %3515 = vmatpush2.msra.mxu0 0.0
    %3516 = vmatprep.subr.mxu0 0.0
    %3517 = vmatpush2.msra.mxu0 0.0
    %3518 = vmatprep.subr.mxu0 0.0
    %3519 = vmatpush2.msra.mxu0 0.0
    %3520 = vmatprep.subr.mxu0 0.0
    %3521 = vmatpush2.msra.mxu0 0.0
    %3522 = vmatprep.subr.mxu0 0.0
    %3523 = vmatpush2.msra.mxu0 0.0
    %3524 = vmatprep.subr.mxu0 0.0
    %3525 = vmatpush2.msra.mxu0 0.0
    %3526 = vmatprep.subr.mxu0 0.0
    %3527 = vmatpush2.msra.mxu0 0.0
    %3528 = vmatprep.subr.mxu0 0.0
    %3529 = vmatpush2.msra.mxu0 0.0
    %3530 = vmatprep.subr.mxu0 0.0
    %3531 = vmatpush2.msra.mxu0 0.0
    %3532 = vmatprep.mubr.f32.mxu0 0.0
    %3533 = vmatmul.mubr.f32.gmra.mxu0 %v3466
    %v3534 = vpop.f32.mrf.mxu0
    %v3535 = vadd.f32 %v1932, %v3534
    %v3536 = vpop.f32.mrf.mxu0
    %3537 = vdwg.mxu0
    %s3538 = scalar_lea.vmem [#allocation13], 10
    %3539 = vst.msk [vmem:[%s3538] sm:$0x3] %vm1640, %v3535
    %v3540 = vsel %vm1640, %v3535, -inf
    %3541 = vmax.xlane.f32.xlu0 %v3540
    %v3542 = vpop.xlane.xlu0 %3541
    %vm3543 = vcmp.eq.f32.partialorder %v3535, %v3542
    %v3544 = vsel %vm3543, %v1659, 16
    %v3545 = vsel %vm1640, %v3544, 2147483647
    %v3546 = vand.u32 %v3545, 65535
    %v3547 = vshra.s32 %v3545, 16
    %v3548 = vcvt.s32.f32 %v3546
    %v3549 = vcvt.s32.f32 %v3547
    %3550 = vmin.xlane.f32.xlu0 %v3549
    %v3551 = vpop.xlane.xlu0 %3550
    %vm3552 = vcmp.eq.f32.partialorder %v3549, %v3551
    %v3553 = vsel %vm3552, %v3548, inf
    %3554 = vmin.xlane.f32.xlu0 %v3553
    %v3555 = vpop.xlane.xlu0 %3554
    %v3556 = vcvt.f32.s32 %v3555
    %v3557 = vcvt.f32.s32 %v3551
    %v3558 = vshll.u32 %v3557, 16
    %v3559 = vadd.s32 %v3558, %v3556
    %vm3560 = vcmp.eq.s32.totalorder %v1659, %v3559
    %v3561 = vsel %vm3560, 1, 0
    %v3562 = vcvt.s32.f32 %v3561
    %s3563 = scalar_lea.vmem %s2, 5
    %v3564 = vld [vmem:[%s3563] sm:$0x1]
    %s3565 = scalar_lea.vmem [#allocation7], 10
    %v3566 = vld [vmem:[%s3565] sm:$0x3]
    %v3568 = vlaneseq
    %v3569 = vshrl.u32 %v3568, 7
    %v3570 = vsub.s32 0, %v3569
    %v3571 = vrot.slane %v3564, %v3570
    %3572 = vset.pattern.permute.xlu0 0
    %3573 = vperm.xlu0 %3572, %v3571
    %v3574 = vpop.permute.xlu0 %3573
    %v3576 = vmul.f32 %v3574, %v3566
    %v3577 = vsub.f32 1.0, %v3564
    %v3579 = vlaneseq
    %v3580 = vshrl.u32 %v3579, 7
    %v3581 = vsub.s32 0, %v3580
    %v3582 = vrot.slane %v3577, %v3581
    %3583 = vset.pattern.permute.xlu0 0
    %3584 = vperm.xlu0 %3583, %v3582
    %v3585 = vpop.permute.xlu0 %3584
    %v3587 = vmul.f32 %v3585, %v3562
    %v3588 = vadd.f32 %v3576, %v3587
    %v3590 = vsel %vm1661, %v3588, 0
    %3592 = vmatprep.subr.mxu0 0.0
    %3593 = vmatpush1.msra.mxu0 0.0
    %3594 = vmatprep.subr.mxu0 0.0
    %3595 = vmatpush1.msra.mxu0 0.0
    %3596 = vmatprep.subr.mxu0 0.0
    %3597 = vmatpush1.msra.mxu0 0.0
    %3598 = vmatprep.subr.mxu0 0.0
    %3599 = vmatpush1.msra.mxu0 0.0
    %3600 = vmatprep.subr.mxu0 0.0
    %3601 = vmatpush1.msra.mxu0 0.0
    %3602 = vmatprep.subr.mxu0 0.0
    %3603 = vmatpush1.msra.mxu0 0.0
    %3604 = vmatprep.subr.mxu0 0.0
    %3605 = vmatpush1.msra.mxu0 0.0
    %3606 = vmatprep.subr.mxu0 0.0
    %3607 = vmatpush1.msra.mxu0 0.0
    %3608 = vmatprep.subr.mxu0 0.0
    %3609 = vmatpush1.msra.mxu0 0.0
    %3610 = vmatprep.subr.mxu0 0.0
    %3611 = vmatpush1.msra.mxu0 0.0
    %3612 = vmatprep.subr.mxu0 0.0
    %3613 = vmatpush1.msra.mxu0 0.0
    %3614 = vmatprep.subr.mxu0 0.0
    %3615 = vmatpush1.msra.mxu0 0.0
    %3616 = vmatprep.subr.mxu0 0.0
    %3617 = vmatpush1.msra.mxu0 0.0
    %3618 = vmatprep.subr.mxu0 0.0
    %3619 = vmatpush1.msra.mxu0 0.0
    %3620 = vmatprep.subr.mxu0 0.0
    %3621 = vmatpush1.msra.mxu0 %v1643
    %3622 = vmatprep.subr.mxu0 0.0
    %3623 = vmatpush1.msra.mxu0 %v1642
    %3624 = vmatprep.subr.mxu0 0.0
    %3625 = vmatpush2.msra.mxu0 0.0
    %3626 = vmatprep.subr.mxu0 0.0
    %3627 = vmatpush2.msra.mxu0 0.0
    %3628 = vmatprep.subr.mxu0 0.0
    %3629 = vmatpush2.msra.mxu0 0.0
    %3630 = vmatprep.subr.mxu0 0.0
    %3631 = vmatpush2.msra.mxu0 0.0
    %3632 = vmatprep.subr.mxu0 0.0
    %3633 = vmatpush2.msra.mxu0 0.0
    %3634 = vmatprep.subr.mxu0 0.0
    %3635 = vmatpush2.msra.mxu0 0.0
    %3636 = vmatprep.subr.mxu0 0.0
    %3637 = vmatpush2.msra.mxu0 0.0
    %3638 = vmatprep.subr.mxu0 0.0
    %3639 = vmatpush2.msra.mxu0 0.0
    %3640 = vmatprep.subr.mxu0 0.0
    %3641 = vmatpush2.msra.mxu0 0.0
    %3642 = vmatprep.subr.mxu0 0.0
    %3643 = vmatpush2.msra.mxu0 0.0
    %3644 = vmatprep.subr.mxu0 0.0
    %3645 = vmatpush2.msra.mxu0 0.0
    %3646 = vmatprep.subr.mxu0 0.0
    %3647 = vmatpush2.msra.mxu0 0.0
    %3648 = vmatprep.subr.mxu0 0.0
    %3649 = vmatpush2.msra.mxu0 0.0
    %3650 = vmatprep.subr.mxu0 0.0
    %3651 = vmatpush2.msra.mxu0 0.0
    %3652 = vmatprep.subr.mxu0 0.0
    %3653 = vmatpush2.msra.mxu0 0.0
    %3654 = vmatprep.subr.mxu0 0.0
    %3655 = vmatpush2.msra.mxu0 0.0
    %3656 = vmatprep.mubr.f32.mxu0 0.0
    %3657 = vmatmul.mubr.f32.gmra.mxu0 %v3590
    %v3658 = vpop.f32.mrf.mxu0
    %v3659 = vadd.f32 0.0, %v3658
    %v3660 = vpop.f32.mrf.mxu0
    %3661 = vdwg.mxu0
    %v3662 = vld [vmem:[#allocation2] sm:$0x3]
    %v3663 = vld [vmem:[#allocation3] sm:$0x3]
    %v3665 = vsel %vm125, %v3662, 0
    %3667 = vmatprep.subr.mxu0 0.0
    %3668 = vmatpush1.msra.mxu0 0.0
    %3669 = vmatprep.subr.mxu0 0.0
    %3670 = vmatpush1.msra.mxu0 0.0
    %3671 = vmatprep.subr.mxu0 0.0
    %3672 = vmatpush1.msra.mxu0 0.0
    %3673 = vmatprep.subr.mxu0 0.0
    %3674 = vmatpush1.msra.mxu0 0.0
    %3675 = vmatprep.subr.mxu0 0.0
    %3676 = vmatpush1.msra.mxu0 0.0
    %3677 = vmatprep.subr.mxu0 0.0
    %3678 = vmatpush1.msra.mxu0 0.0
    %3679 = vmatprep.subr.mxu0 0.0
    %3680 = vmatpush1.msra.mxu0 0.0
    %3681 = vmatprep.subr.mxu0 0.0
    %3682 = vmatpush1.msra.mxu0 0.0
    %3683 = vmatprep.subr.mxu0 0.0
    %3684 = vmatpush1.msra.mxu0 0.0
    %3685 = vmatprep.subr.mxu0 0.0
    %3686 = vmatpush1.msra.mxu0 0.0
    %3687 = vmatprep.subr.mxu0 0.0
    %3688 = vmatpush1.msra.mxu0 0.0
    %3689 = vmatprep.subr.mxu0 0.0
    %3690 = vmatpush1.msra.mxu0 0.0
    %3691 = vmatprep.subr.mxu0 0.0
    %3692 = vmatpush1.msra.mxu0 %v1651
    %3693 = vmatprep.subr.mxu0 0.0
    %3694 = vmatpush1.msra.mxu0 %v1650
    %3695 = vmatprep.subr.mxu0 0.0
    %3696 = vmatpush1.msra.mxu0 %v1649
    %3697 = vmatprep.subr.mxu0 0.0
    %3698 = vmatpush1.msra.mxu0 %v1648
    %3699 = vmatprep.subr.mxu0 0.0
    %3700 = vmatpush2.msra.mxu0 0.0
    %3701 = vmatprep.subr.mxu0 0.0
    %3702 = vmatpush2.msra.mxu0 0.0
    %3703 = vmatprep.subr.mxu0 0.0
    %3704 = vmatpush2.msra.mxu0 0.0
    %3705 = vmatprep.subr.mxu0 0.0
    %3706 = vmatpush2.msra.mxu0 0.0
    %3707 = vmatprep.subr.mxu0 0.0
    %3708 = vmatpush2.msra.mxu0 0.0
    %3709 = vmatprep.subr.mxu0 0.0
    %3710 = vmatpush2.msra.mxu0 0.0
    %3711 = vmatprep.subr.mxu0 0.0
    %3712 = vmatpush2.msra.mxu0 0.0
    %3713 = vmatprep.subr.mxu0 0.0
    %3714 = vmatpush2.msra.mxu0 0.0
    %3715 = vmatprep.subr.mxu0 0.0
    %3716 = vmatpush2.msra.mxu0 0.0
    %3717 = vmatprep.subr.mxu0 0.0
    %3718 = vmatpush2.msra.mxu0 0.0
    %3719 = vmatprep.subr.mxu0 0.0
    %3720 = vmatpush2.msra.mxu0 0.0
    %3721 = vmatprep.subr.mxu0 0.0
    %3722 = vmatpush2.msra.mxu0 0.0
    %3723 = vmatprep.subr.mxu0 0.0
    %3724 = vmatpush2.msra.mxu0 0.0
    %3725 = vmatprep.subr.mxu0 0.0
    %3726 = vmatpush2.msra.mxu0 0.0
    %3727 = vmatprep.subr.mxu0 0.0
    %3728 = vmatpush2.msra.mxu0 0.0
    %3729 = vmatprep.subr.mxu0 0.0
    %3730 = vmatpush2.msra.mxu0 0.0
    %3731 = vmatprep.mubr.f32.mxu0 0.0
    %3732 = vmatmul.mubr.f32.gmra.mxu0 %v3665
    %v3733 = vpop.f32.mrf.mxu0
    %v3734 = vadd.f32 0.0, %v3733
    %v3735 = vpop.f32.mrf.mxu0
    %3736 = vdwg.mxu0
    %v3738 = vsel %vm125, %v3659, 0
    %3740 = vmatprep.subr.mxu0 0.0
    %3741 = vmatpush1.msra.mxu0 0.0
    %3742 = vmatprep.subr.mxu0 0.0
    %3743 = vmatpush1.msra.mxu0 0.0
    %3744 = vmatprep.subr.mxu0 0.0
    %3745 = vmatpush1.msra.mxu0 0.0
    %3746 = vmatprep.subr.mxu0 0.0
    %3747 = vmatpush1.msra.mxu0 0.0
    %3748 = vmatprep.subr.mxu0 0.0
    %3749 = vmatpush1.msra.mxu0 0.0
    %3750 = vmatprep.subr.mxu0 0.0
    %3751 = vmatpush1.msra.mxu0 0.0
    %3752 = vmatprep.subr.mxu0 0.0
    %3753 = vmatpush1.msra.mxu0 0.0
    %3754 = vmatprep.subr.mxu0 0.0
    %3755 = vmatpush1.msra.mxu0 0.0
    %3756 = vmatprep.subr.mxu0 0.0
    %3757 = vmatpush1.msra.mxu0 0.0
    %3758 = vmatprep.subr.mxu0 0.0
    %3759 = vmatpush1.msra.mxu0 0.0
    %3760 = vmatprep.subr.mxu0 0.0
    %3761 = vmatpush1.msra.mxu0 0.0
    %3762 = vmatprep.subr.mxu0 0.0
    %3763 = vmatpush1.msra.mxu0 0.0
    %3764 = vmatprep.subr.mxu0 0.0
    %3765 = vmatpush1.msra.mxu0 %v1647
    %3766 = vmatprep.subr.mxu0 0.0
    %3767 = vmatpush1.msra.mxu0 %v1646
    %3768 = vmatprep.subr.mxu0 0.0
    %3769 = vmatpush1.msra.mxu0 %v1645
    %3770 = vmatprep.subr.mxu0 0.0
    %3771 = vmatpush1.msra.mxu0 %v1644
    %3772 = vmatprep.subr.mxu0 0.0
    %3773 = vmatpush2.msra.mxu0 0.0
    %3774 = vmatprep.subr.mxu0 0.0
    %3775 = vmatpush2.msra.mxu0 0.0
    %3776 = vmatprep.subr.mxu0 0.0
    %3777 = vmatpush2.msra.mxu0 0.0
    %3778 = vmatprep.subr.mxu0 0.0
    %3779 = vmatpush2.msra.mxu0 0.0
    %3780 = vmatprep.subr.mxu0 0.0
    %3781 = vmatpush2.msra.mxu0 0.0
    %3782 = vmatprep.subr.mxu0 0.0
    %3783 = vmatpush2.msra.mxu0 0.0
    %3784 = vmatprep.subr.mxu0 0.0
    %3785 = vmatpush2.msra.mxu0 0.0
    %3786 = vmatprep.subr.mxu0 0.0
    %3787 = vmatpush2.msra.mxu0 0.0
    %3788 = vmatprep.subr.mxu0 0.0
    %3789 = vmatpush2.msra.mxu0 0.0
    %3790 = vmatprep.subr.mxu0 0.0
    %3791 = vmatpush2.msra.mxu0 0.0
    %3792 = vmatprep.subr.mxu0 0.0
    %3793 = vmatpush2.msra.mxu0 0.0
    %3794 = vmatprep.subr.mxu0 0.0
    %3795 = vmatpush2.msra.mxu0 0.0
    %3796 = vmatprep.subr.mxu0 0.0
    %3797 = vmatpush2.msra.mxu0 0.0
    %3798 = vmatprep.subr.mxu0 0.0
    %3799 = vmatpush2.msra.mxu0 0.0
    %3800 = vmatprep.subr.mxu0 0.0
    %3801 = vmatpush2.msra.mxu0 0.0
    %3802 = vmatprep.subr.mxu0 0.0
    %3803 = vmatpush2.msra.mxu0 0.0
    %3804 = vmatprep.mubr.f32.mxu0 0.0
    %3805 = vmatmul.mubr.f32.gmra.mxu0 %v3738
    %v3806 = vpop.f32.mrf.mxu0
    %v3807 = vadd.f32 %v3734, %v3806
    %v3808 = vpop.f32.mrf.mxu0
    %3809 = vdwg.mxu0
    %v3810 = vadd.f32 %v3807, %v1887
    %v3811 = vxor.u32 %v3810, 2147483648
    %v3812 = vmul.f32 %v3811, 1.442695
    %v3813 = vpow.pop %v3812
    %v3814 = vadd.f32 %v3813, 1.0
    %v3815 = vrcp.pop %v3814
    %v3816 = vmul.f32 1.0, %v3815
    %v3817 = vtanh.pop %v3810
    %3819 = vrot.lane.b32.xlu0 %v3663, 32
    %v3820 = vpop.permute.xlu0 %3819
    %v3822 = vmul.f32 %v3816, %v3820
    %3824 = vrot.lane.b32.xlu0 %v3817, 64
    %v3825 = vpop.permute.xlu0 %3824
    %v3827 = vmul.f32 %v3816, %v3825
    %3829 = vrot.lane.b32.xlu0 %v3827, 32
    %v3830 = vpop.permute.xlu0 %3829
    %v3832 = vadd.f32 %v3822, %v3830
    %v3833 = vtanh.pop %v3832
    %3835 = vrot.lane.b32.xlu0 %v3833, 64
    %v3836 = vpop.permute.xlu0 %3835
    %v3838 = vmul.f32 %v3816, %v3836
    %3840 = vrot.lane.b32.xlu0 %v3838, 32
    %v3841 = vpop.permute.xlu0 %3840
    %3843 = vst.msk [vmem:[#allocation2] sm:$0x3] %vm110, %v3841
    %3845 = vrot.lane.b32.xlu0 %v3832, 96
    %v3846 = vpop.permute.xlu0 %3845
    %3848 = vst.msk [vmem:[#allocation3] sm:$0x3] %vm110, %v3846
    %v3849 = vsel %vm125, %v3841, 0
    %3851 = vmatprep.subr.mxu0 0.0
    %3852 = vmatpush1.msra.mxu0 0.0
    %3853 = vmatprep.subr.mxu0 0.0
    %3854 = vmatpush1.msra.mxu0 0.0
    %3855 = vmatprep.subr.mxu0 0.0
    %3856 = vmatpush1.msra.mxu0 0.0
    %3857 = vmatprep.subr.mxu0 0.0
    %3858 = vmatpush1.msra.mxu0 0.0
    %3859 = vmatprep.subr.mxu0 0.0
    %3860 = vmatpush1.msra.mxu0 0.0
    %3861 = vmatprep.subr.mxu0 0.0
    %3862 = vmatpush1.msra.mxu0 0.0
    %3863 = vmatprep.subr.mxu0 0.0
    %3864 = vmatpush1.msra.mxu0 0.0
    %3865 = vmatprep.subr.mxu0 0.0
    %3866 = vmatpush1.msra.mxu0 0.0
    %3867 = vmatprep.subr.mxu0 0.0
    %3868 = vmatpush1.msra.mxu0 0.0
    %3869 = vmatprep.subr.mxu0 0.0
    %3870 = vmatpush1.msra.mxu0 0.0
    %3871 = vmatprep.subr.mxu0 0.0
    %3872 = vmatpush1.msra.mxu0 0.0
    %3873 = vmatprep.subr.mxu0 0.0
    %3874 = vmatpush1.msra.mxu0 0.0
    %3875 = vmatprep.subr.mxu0 0.0
    %3876 = vmatpush1.msra.mxu0 %v1656
    %3877 = vmatprep.subr.mxu0 0.0
    %3878 = vmatpush1.msra.mxu0 %v1655
    %3879 = vmatprep.subr.mxu0 0.0
    %3880 = vmatpush1.msra.mxu0 %v1654
    %3881 = vmatprep.subr.mxu0 0.0
    %3882 = vmatpush1.msra.mxu0 %v1653
    %3883 = vmatprep.subr.mxu0 0.0
    %3884 = vmatpush2.msra.mxu0 0.0
    %3885 = vmatprep.subr.mxu0 0.0
    %3886 = vmatpush2.msra.mxu0 0.0
    %3887 = vmatprep.subr.mxu0 0.0
    %3888 = vmatpush2.msra.mxu0 0.0
    %3889 = vmatprep.subr.mxu0 0.0
    %3890 = vmatpush2.msra.mxu0 0.0
    %3891 = vmatprep.subr.mxu0 0.0
    %3892 = vmatpush2.msra.mxu0 0.0
    %3893 = vmatprep.subr.mxu0 0.0
    %3894 = vmatpush2.msra.mxu0 0.0
    %3895 = vmatprep.subr.mxu0 0.0
    %3896 = vmatpush2.msra.mxu0 0.0
    %3897 = vmatprep.subr.mxu0 0.0
    %3898 = vmatpush2.msra.mxu0 0.0
    %3899 = vmatprep.subr.mxu0 0.0
    %3900 = vmatpush2.msra.mxu0 0.0
    %3901 = vmatprep.subr.mxu0 0.0
    %3902 = vmatpush2.msra.mxu0 0.0
    %3903 = vmatprep.subr.mxu0 0.0
    %3904 = vmatpush2.msra.mxu0 0.0
    %3905 = vmatprep.subr.mxu0 0.0
    %3906 = vmatpush2.msra.mxu0 0.0
    %3907 = vmatprep.subr.mxu0 0.0
    %3908 = vmatpush2.msra.mxu0 0.0
    %3909 = vmatprep.subr.mxu0 0.0
    %3910 = vmatpush2.msra.mxu0 0.0
    %3911 = vmatprep.subr.mxu0 0.0
    %3912 = vmatpush2.msra.mxu0 0.0
    %3913 = vmatprep.subr.mxu0 0.0
    %3914 = vmatpush2.msra.mxu0 0.0
    %3915 = vmatprep.mubr.f32.mxu0 0.0
    %3916 = vmatmul.mubr.f32.gmra.mxu0 %v3849
    %v3917 = vpop.f32.mrf.mxu0
    %v3918 = vadd.f32 %v1932, %v3917
    %v3919 = vpop.f32.mrf.mxu0
    %3920 = vdwg.mxu0
    %s3921 = scalar_lea.vmem [#allocation13], 12
    %3922 = vst.msk [vmem:[%s3921] sm:$0x3] %vm1640, %v3918
    %v3923 = vsel %vm1640, %v3918, -inf
    %3924 = vmax.xlane.f32.xlu0 %v3923
    %v3925 = vpop.xlane.xlu0 %3924
    %vm3926 = vcmp.eq.f32.partialorder %v3918, %v3925
    %v3927 = vsel %vm3926, %v1659, 16
    %v3928 = vsel %vm1640, %v3927, 2147483647
    %v3929 = vand.u32 %v3928, 65535
    %v3930 = vshra.s32 %v3928, 16
    %v3931 = vcvt.s32.f32 %v3929
    %v3932 = vcvt.s32.f32 %v3930
    %3933 = vmin.xlane.f32.xlu0 %v3932
    %v3934 = vpop.xlane.xlu0 %3933
    %vm3935 = vcmp.eq.f32.partialorder %v3932, %v3934
    %v3936 = vsel %vm3935, %v3931, inf
    %3937 = vmin.xlane.f32.xlu0 %v3936
    %v3938 = vpop.xlane.xlu0 %3937
    %v3939 = vcvt.f32.s32 %v3938
    %v3940 = vcvt.f32.s32 %v3934
    %v3941 = vshll.u32 %v3940, 16
    %v3942 = vadd.s32 %v3941, %v3939
    %vm3943 = vcmp.eq.s32.totalorder %v1659, %v3942
    %v3944 = vsel %vm3943, 1, 0
    %v3945 = vcvt.s32.f32 %v3944
    %s3946 = scalar_lea.vmem %s2, 6
    %v3947 = vld [vmem:[%s3946] sm:$0x1]
    %s3948 = scalar_lea.vmem [#allocation7], 12
    %v3949 = vld [vmem:[%s3948] sm:$0x3]
    %v3951 = vlaneseq
    %v3952 = vshrl.u32 %v3951, 7
    %v3953 = vsub.s32 0, %v3952
    %v3954 = vrot.slane %v3947, %v3953
    %3955 = vset.pattern.permute.xlu0 0
    %3956 = vperm.xlu0 %3955, %v3954
    %v3957 = vpop.permute.xlu0 %3956
    %v3959 = vmul.f32 %v3957, %v3949
    %v3960 = vsub.f32 1.0, %v3947
    %v3962 = vlaneseq
    %v3963 = vshrl.u32 %v3962, 7
    %v3964 = vsub.s32 0, %v3963
    %v3965 = vrot.slane %v3960, %v3964
    %3966 = vset.pattern.permute.xlu0 0
    %3967 = vperm.xlu0 %3966, %v3965
    %v3968 = vpop.permute.xlu0 %3967
    %v3970 = vmul.f32 %v3968, %v3945
    %v3971 = vadd.f32 %v3959, %v3970
    %v3973 = vsel %vm1661, %v3971, 0
    %3975 = vmatprep.subr.mxu0 0.0
    %3976 = vmatpush1.msra.mxu0 0.0
    %3977 = vmatprep.subr.mxu0 0.0
    %3978 = vmatpush1.msra.mxu0 0.0
    %3979 = vmatprep.subr.mxu0 0.0
    %3980 = vmatpush1.msra.mxu0 0.0
    %3981 = vmatprep.subr.mxu0 0.0
    %3982 = vmatpush1.msra.mxu0 0.0
    %3983 = vmatprep.subr.mxu0 0.0
    %3984 = vmatpush1.msra.mxu0 0.0
    %3985 = vmatprep.subr.mxu0 0.0
    %3986 = vmatpush1.msra.mxu0 0.0
    %3987 = vmatprep.subr.mxu0 0.0
    %3988 = vmatpush1.msra.mxu0 0.0
    %3989 = vmatprep.subr.mxu0 0.0
    %3990 = vmatpush1.msra.mxu0 0.0
    %3991 = vmatprep.subr.mxu0 0.0
    %3992 = vmatpush1.msra.mxu0 0.0
    %3993 = vmatprep.subr.mxu0 0.0
    %3994 = vmatpush1.msra.mxu0 0.0
    %3995 = vmatprep.subr.mxu0 0.0
    %3996 = vmatpush1.msra.mxu0 0.0
    %3997 = vmatprep.subr.mxu0 0.0
    %3998 = vmatpush1.msra.mxu0 0.0
    %3999 = vmatprep.subr.mxu0 0.0
    %4000 = vmatpush1.msra.mxu0 0.0
    %4001 = vmatprep.subr.mxu0 0.0
    %4002 = vmatpush1.msra.mxu0 0.0
    %4003 = vmatprep.subr.mxu0 0.0
    %4004 = vmatpush1.msra.mxu0 %v1643
    %4005 = vmatprep.subr.mxu0 0.0
    %4006 = vmatpush1.msra.mxu0 %v1642
    %4007 = vmatprep.subr.mxu0 0.0
    %4008 = vmatpush2.msra.mxu0 0.0
    %4009 = vmatprep.subr.mxu0 0.0
    %4010 = vmatpush2.msra.mxu0 0.0
    %4011 = vmatprep.subr.mxu0 0.0
    %4012 = vmatpush2.msra.mxu0 0.0
    %4013 = vmatprep.subr.mxu0 0.0
    %4014 = vmatpush2.msra.mxu0 0.0
    %4015 = vmatprep.subr.mxu0 0.0
    %4016 = vmatpush2.msra.mxu0 0.0
    %4017 = vmatprep.subr.mxu0 0.0
    %4018 = vmatpush2.msra.mxu0 0.0
    %4019 = vmatprep.subr.mxu0 0.0
    %4020 = vmatpush2.msra.mxu0 0.0
    %4021 = vmatprep.subr.mxu0 0.0
    %4022 = vmatpush2.msra.mxu0 0.0
    %4023 = vmatprep.subr.mxu0 0.0
    %4024 = vmatpush2.msra.mxu0 0.0
    %4025 = vmatprep.subr.mxu0 0.0
    %4026 = vmatpush2.msra.mxu0 0.0
    %4027 = vmatprep.subr.mxu0 0.0
    %4028 = vmatpush2.msra.mxu0 0.0
    %4029 = vmatprep.subr.mxu0 0.0
    %4030 = vmatpush2.msra.mxu0 0.0
    %4031 = vmatprep.subr.mxu0 0.0
    %4032 = vmatpush2.msra.mxu0 0.0
    %4033 = vmatprep.subr.mxu0 0.0
    %4034 = vmatpush2.msra.mxu0 0.0
    %4035 = vmatprep.subr.mxu0 0.0
    %4036 = vmatpush2.msra.mxu0 0.0
    %4037 = vmatprep.subr.mxu0 0.0
    %4038 = vmatpush2.msra.mxu0 0.0
    %4039 = vmatprep.mubr.f32.mxu0 0.0
    %4040 = vmatmul.mubr.f32.gmra.mxu0 %v3973
    %v4041 = vpop.f32.mrf.mxu0
    %v4042 = vadd.f32 0.0, %v4041
    %v4043 = vpop.f32.mrf.mxu0
    %4044 = vdwg.mxu0
    %v4045 = vld [vmem:[#allocation2] sm:$0x3]
    %v4046 = vld [vmem:[#allocation3] sm:$0x3]
    %v4048 = vsel %vm125, %v4045, 0
    %4050 = vmatprep.subr.mxu0 0.0
    %4051 = vmatpush1.msra.mxu0 0.0
    %4052 = vmatprep.subr.mxu0 0.0
    %4053 = vmatpush1.msra.mxu0 0.0
    %4054 = vmatprep.subr.mxu0 0.0
    %4055 = vmatpush1.msra.mxu0 0.0
    %4056 = vmatprep.subr.mxu0 0.0
    %4057 = vmatpush1.msra.mxu0 0.0
    %4058 = vmatprep.subr.mxu0 0.0
    %4059 = vmatpush1.msra.mxu0 0.0
    %4060 = vmatprep.subr.mxu0 0.0
    %4061 = vmatpush1.msra.mxu0 0.0
    %4062 = vmatprep.subr.mxu0 0.0
    %4063 = vmatpush1.msra.mxu0 0.0
    %4064 = vmatprep.subr.mxu0 0.0
    %4065 = vmatpush1.msra.mxu0 0.0
    %4066 = vmatprep.subr.mxu0 0.0
    %4067 = vmatpush1.msra.mxu0 0.0
    %4068 = vmatprep.subr.mxu0 0.0
    %4069 = vmatpush1.msra.mxu0 0.0
    %4070 = vmatprep.subr.mxu0 0.0
    %4071 = vmatpush1.msra.mxu0 0.0
    %4072 = vmatprep.subr.mxu0 0.0
    %4073 = vmatpush1.msra.mxu0 0.0
    %4074 = vmatprep.subr.mxu0 0.0
    %4075 = vmatpush1.msra.mxu0 %v1651
    %4076 = vmatprep.subr.mxu0 0.0
    %4077 = vmatpush1.msra.mxu0 %v1650
    %4078 = vmatprep.subr.mxu0 0.0
    %4079 = vmatpush1.msra.mxu0 %v1649
    %4080 = vmatprep.subr.mxu0 0.0
    %4081 = vmatpush1.msra.mxu0 %v1648
    %4082 = vmatprep.subr.mxu0 0.0
    %4083 = vmatpush2.msra.mxu0 0.0
    %4084 = vmatprep.subr.mxu0 0.0
    %4085 = vmatpush2.msra.mxu0 0.0
    %4086 = vmatprep.subr.mxu0 0.0
    %4087 = vmatpush2.msra.mxu0 0.0
    %4088 = vmatprep.subr.mxu0 0.0
    %4089 = vmatpush2.msra.mxu0 0.0
    %4090 = vmatprep.subr.mxu0 0.0
    %4091 = vmatpush2.msra.mxu0 0.0
    %4092 = vmatprep.subr.mxu0 0.0
    %4093 = vmatpush2.msra.mxu0 0.0
    %4094 = vmatprep.subr.mxu0 0.0
    %4095 = vmatpush2.msra.mxu0 0.0
    %4096 = vmatprep.subr.mxu0 0.0
    %4097 = vmatpush2.msra.mxu0 0.0
    %4098 = vmatprep.subr.mxu0 0.0
    %4099 = vmatpush2.msra.mxu0 0.0
    %4100 = vmatprep.subr.mxu0 0.0
    %4101 = vmatpush2.msra.mxu0 0.0
    %4102 = vmatprep.subr.mxu0 0.0
    %4103 = vmatpush2.msra.mxu0 0.0
    %4104 = vmatprep.subr.mxu0 0.0
    %4105 = vmatpush2.msra.mxu0 0.0
    %4106 = vmatprep.subr.mxu0 0.0
    %4107 = vmatpush2.msra.mxu0 0.0
    %4108 = vmatprep.subr.mxu0 0.0
    %4109 = vmatpush2.msra.mxu0 0.0
    %4110 = vmatprep.subr.mxu0 0.0
    %4111 = vmatpush2.msra.mxu0 0.0
    %4112 = vmatprep.subr.mxu0 0.0
    %4113 = vmatpush2.msra.mxu0 0.0
    %4114 = vmatprep.mubr.f32.mxu0 0.0
    %4115 = vmatmul.mubr.f32.gmra.mxu0 %v4048
    %v4116 = vpop.f32.mrf.mxu0
    %v4117 = vadd.f32 0.0, %v4116
    %v4118 = vpop.f32.mrf.mxu0
    %4119 = vdwg.mxu0
    %v4121 = vsel %vm125, %v4042, 0
    %4123 = vmatprep.subr.mxu0 0.0
    %4124 = vmatpush1.msra.mxu0 0.0
    %4125 = vmatprep.subr.mxu0 0.0
    %4126 = vmatpush1.msra.mxu0 0.0
    %4127 = vmatprep.subr.mxu0 0.0
    %4128 = vmatpush1.msra.mxu0 0.0
    %4129 = vmatprep.subr.mxu0 0.0
    %4130 = vmatpush1.msra.mxu0 0.0
    %4131 = vmatprep.subr.mxu0 0.0
    %4132 = vmatpush1.msra.mxu0 0.0
    %4133 = vmatprep.subr.mxu0 0.0
    %4134 = vmatpush1.msra.mxu0 0.0
    %4135 = vmatprep.subr.mxu0 0.0
    %4136 = vmatpush1.msra.mxu0 0.0
    %4137 = vmatprep.subr.mxu0 0.0
    %4138 = vmatpush1.msra.mxu0 0.0
    %4139 = vmatprep.subr.mxu0 0.0
    %4140 = vmatpush1.msra.mxu0 0.0
    %4141 = vmatprep.subr.mxu0 0.0
    %4142 = vmatpush1.msra.mxu0 0.0
    %4143 = vmatprep.subr.mxu0 0.0
    %4144 = vmatpush1.msra.mxu0 0.0
    %4145 = vmatprep.subr.mxu0 0.0
    %4146 = vmatpush1.msra.mxu0 0.0
    %4147 = vmatprep.subr.mxu0 0.0
    %4148 = vmatpush1.msra.mxu0 %v1647
    %4149 = vmatprep.subr.mxu0 0.0
    %4150 = vmatpush1.msra.mxu0 %v1646
    %4151 = vmatprep.subr.mxu0 0.0
    %4152 = vmatpush1.msra.mxu0 %v1645
    %4153 = vmatprep.subr.mxu0 0.0
    %4154 = vmatpush1.msra.mxu0 %v1644
    %4155 = vmatprep.subr.mxu0 0.0
    %4156 = vmatpush2.msra.mxu0 0.0
    %4157 = vmatprep.subr.mxu0 0.0
    %4158 = vmatpush2.msra.mxu0 0.0
    %4159 = vmatprep.subr.mxu0 0.0
    %4160 = vmatpush2.msra.mxu0 0.0
    %4161 = vmatprep.subr.mxu0 0.0
    %4162 = vmatpush2.msra.mxu0 0.0
    %4163 = vmatprep.subr.mxu0 0.0
    %4164 = vmatpush2.msra.mxu0 0.0
    %4165 = vmatprep.subr.mxu0 0.0
    %4166 = vmatpush2.msra.mxu0 0.0
    %4167 = vmatprep.subr.mxu0 0.0
    %4168 = vmatpush2.msra.mxu0 0.0
    %4169 = vmatprep.subr.mxu0 0.0
    %4170 = vmatpush2.msra.mxu0 0.0
    %4171 = vmatprep.subr.mxu0 0.0
    %4172 = vmatpush2.msra.mxu0 0.0
    %4173 = vmatprep.subr.mxu0 0.0
    %4174 = vmatpush2.msra.mxu0 0.0
    %4175 = vmatprep.subr.mxu0 0.0
    %4176 = vmatpush2.msra.mxu0 0.0
    %4177 = vmatprep.subr.mxu0 0.0
    %4178 = vmatpush2.msra.mxu0 0.0
    %4179 = vmatprep.subr.mxu0 0.0
    %4180 = vmatpush2.msra.mxu0 0.0
    %4181 = vmatprep.subr.mxu0 0.0
    %4182 = vmatpush2.msra.mxu0 0.0
    %4183 = vmatprep.subr.mxu0 0.0
    %4184 = vmatpush2.msra.mxu0 0.0
    %4185 = vmatprep.subr.mxu0 0.0
    %4186 = vmatpush2.msra.mxu0 0.0
    %4187 = vmatprep.mubr.f32.mxu0 0.0
    %4188 = vmatmul.mubr.f32.gmra.mxu0 %v4121
    %v4189 = vpop.f32.mrf.mxu0
    %v4190 = vadd.f32 %v4117, %v4189
    %v4191 = vpop.f32.mrf.mxu0
    %4192 = vdwg.mxu0
    %v4193 = vadd.f32 %v4190, %v1887
    %v4194 = vxor.u32 %v4193, 2147483648
    %v4195 = vmul.f32 %v4194, 1.442695
    %v4196 = vpow.pop %v4195
    %v4197 = vadd.f32 %v4196, 1.0
    %v4198 = vrcp.pop %v4197
    %v4199 = vmul.f32 1.0, %v4198
    %v4200 = vtanh.pop %v4193
    %4202 = vrot.lane.b32.xlu0 %v4046, 32
    %v4203 = vpop.permute.xlu0 %4202
    %v4205 = vmul.f32 %v4199, %v4203
    %4207 = vrot.lane.b32.xlu0 %v4200, 64
    %v4208 = vpop.permute.xlu0 %4207
    %v4210 = vmul.f32 %v4199, %v4208
    %4212 = vrot.lane.b32.xlu0 %v4210, 32
    %v4213 = vpop.permute.xlu0 %4212
    %v4215 = vadd.f32 %v4205, %v4213
    %v4216 = vtanh.pop %v4215
    %4218 = vrot.lane.b32.xlu0 %v4216, 64
    %v4219 = vpop.permute.xlu0 %4218
    %v4221 = vmul.f32 %v4199, %v4219
    %4223 = vrot.lane.b32.xlu0 %v4221, 32
    %v4224 = vpop.permute.xlu0 %4223
    %4226 = vst.msk [vmem:[#allocation2] sm:$0x3] %vm110, %v4224
    %4228 = vrot.lane.b32.xlu0 %v4215, 96
    %v4229 = vpop.permute.xlu0 %4228
    %4231 = vst.msk [vmem:[#allocation3] sm:$0x3] %vm110, %v4229
    %v4232 = vsel %vm125, %v4224, 0
    %4234 = vmatprep.subr.mxu0 0.0
    %4235 = vmatpush1.msra.mxu0 0.0
    %4236 = vmatprep.subr.mxu0 0.0
    %4237 = vmatpush1.msra.mxu0 0.0
    %4238 = vmatprep.subr.mxu0 0.0
    %4239 = vmatpush1.msra.mxu0 0.0
    %4240 = vmatprep.subr.mxu0 0.0
    %4241 = vmatpush1.msra.mxu0 0.0
    %4242 = vmatprep.subr.mxu0 0.0
    %4243 = vmatpush1.msra.mxu0 0.0
    %4244 = vmatprep.subr.mxu0 0.0
    %4245 = vmatpush1.msra.mxu0 0.0
    %4246 = vmatprep.subr.mxu0 0.0
    %4247 = vmatpush1.msra.mxu0 0.0
    %4248 = vmatprep.subr.mxu0 0.0
    %4249 = vmatpush1.msra.mxu0 0.0
    %4250 = vmatprep.subr.mxu0 0.0
    %4251 = vmatpush1.msra.mxu0 0.0
    %4252 = vmatprep.subr.mxu0 0.0
    %4253 = vmatpush1.msra.mxu0 0.0
    %4254 = vmatprep.subr.mxu0 0.0
    %4255 = vmatpush1.msra.mxu0 0.0
    %4256 = vmatprep.subr.mxu0 0.0
    %4257 = vmatpush1.msra.mxu0 0.0
    %4258 = vmatprep.subr.mxu0 0.0
    %4259 = vmatpush1.msra.mxu0 %v1656
    %4260 = vmatprep.subr.mxu0 0.0
    %4261 = vmatpush1.msra.mxu0 %v1655
    %4262 = vmatprep.subr.mxu0 0.0
    %4263 = vmatpush1.msra.mxu0 %v1654
    %4264 = vmatprep.subr.mxu0 0.0
    %4265 = vmatpush1.msra.mxu0 %v1653
    %4266 = vmatprep.subr.mxu0 0.0
    %4267 = vmatpush2.msra.mxu0 0.0
    %4268 = vmatprep.subr.mxu0 0.0
    %4269 = vmatpush2.msra.mxu0 0.0
    %4270 = vmatprep.subr.mxu0 0.0
    %4271 = vmatpush2.msra.mxu0 0.0
    %4272 = vmatprep.subr.mxu0 0.0
    %4273 = vmatpush2.msra.mxu0 0.0
    %4274 = vmatprep.subr.mxu0 0.0
    %4275 = vmatpush2.msra.mxu0 0.0
    %4276 = vmatprep.subr.mxu0 0.0
    %4277 = vmatpush2.msra.mxu0 0.0
    %4278 = vmatprep.subr.mxu0 0.0
    %4279 = vmatpush2.msra.mxu0 0.0
    %4280 = vmatprep.subr.mxu0 0.0
    %4281 = vmatpush2.msra.mxu0 0.0
    %4282 = vmatprep.subr.mxu0 0.0
    %4283 = vmatpush2.msra.mxu0 0.0
    %4284 = vmatprep.subr.mxu0 0.0
    %4285 = vmatpush2.msra.mxu0 0.0
    %4286 = vmatprep.subr.mxu0 0.0
    %4287 = vmatpush2.msra.mxu0 0.0
    %4288 = vmatprep.subr.mxu0 0.0
    %4289 = vmatpush2.msra.mxu0 0.0
    %4290 = vmatprep.subr.mxu0 0.0
    %4291 = vmatpush2.msra.mxu0 0.0
    %4292 = vmatprep.subr.mxu0 0.0
    %4293 = vmatpush2.msra.mxu0 0.0
    %4294 = vmatprep.subr.mxu0 0.0
    %4295 = vmatpush2.msra.mxu0 0.0
    %4296 = vmatprep.subr.mxu0 0.0
    %4297 = vmatpush2.msra.mxu0 0.0
    %4298 = vmatprep.mubr.f32.mxu0 0.0
    %4299 = vmatmul.mubr.f32.gmra.mxu0 %v4232
    %v4300 = vpop.f32.mrf.mxu0
    %v4301 = vadd.f32 %v1932, %v4300
    %v4302 = vpop.f32.mrf.mxu0
    %4303 = vdwg.mxu0
    %s4304 = scalar_lea.vmem [#allocation13], 14
    %4305 = vst.msk [vmem:[%s4304] sm:$0x3] %vm1640, %v4301
    // Predicated region
    $region70: #{tpu_custom_call.1} parent=1 // pred_check
      _
    $region71: #{tpu_custom_call.1} parent=1 // pred_check_branch
      %4307 = sbr.rel (0) target = $region73
    $region72: #{tpu_custom_call.1} parent=1 // pred_region
      %s4309 = ssub.s32 256, 256
      %4310 = vsyncadd [#allocation6], %s4309
      %s4311 = sshll.u32 [#allocation13], 4
      %s4312 = int_to_ptr.vmem [resolvable:$true] %s4311
      %4317 = dma.vmem_to_hbm [thread:$0]  %s4312, 256, %s12, [#allocation6], 32, 32, 2
    $region73: #{tpu_custom_call.1} parent=1 // pred_fallthru
      _
    // Predicated region
    $region74: #{tpu_custom_call.1} parent=1 // pred_check
      _
    $region75: #{tpu_custom_call.1} parent=1 // pred_check_branch
      %4319 = sbr.rel (0) target = $region77
    $region76: #{tpu_custom_call.1} parent=1 // pred_region
      %4320 = dma.done [#allocation6], 256
    $region77: #{tpu_custom_call.1} parent=1 // pred_fallthru
      _
    %4321 = vsyncpa [#allocation5], 1
    %4322 = vsyncpa [#allocation8], 1
    %4323 = vsyncpa [#allocation11], 1
    %4324 = vsyncpa [#allocation6], 1

</llo_original>
